<compile_context>
chip_gen: v6e
topology: v6e:2x2x1
jax: 0.10.0
libtpu: 0.0.40
codegen_flags: <defaults>
</compile_context>

<pallas_src>
import functools

import numpy as np
import jax
import jax.numpy as jnp
from jax import lax
from jax.experimental import pallas as pl
from jax.experimental.pallas import tpu as pltpu


# --------------------------------------------------------------------------
# Helpers
# --------------------------------------------------------------------------
def _round_up(x, m):
    return (x + m - 1) // m * m


def _plane_shift(a, off, width):
    """Circular shift along the last (lane) axis: out[..., p] = a[..., (p + off) % width].

    Implemented with two static lane slices + a lane concatenate (explicit,
    direction-unambiguous version of the 'roll' trick).  For interior output
    positions the wrap-around never matters; border positions are masked.
    """
    s = off % width
    if s == 0:
        return a
    return jnp.concatenate([a[..., s:], a[..., :s]], axis=-1)


# --------------------------------------------------------------------------
# Fused conv1 + conv2 + global-average-pool kernel (one (batch, depth-tile)
# grid point per invocation).
# --------------------------------------------------------------------------
def _fused_conv_pool_kernel(x_hbm, mask_ref, w1_ref, b1_ref, w2_ref, b2_ref,
                            out_ref, x_vmem, copy_sem, *,
                            TD, TDx, TDh, Wp, P_pad, C1, C2):
    """Refs:
      x_hbm   : (N, D_pad+4, P_pad)   zero-padded input, stays in HBM (pl.ANY)
      mask_ref: (TDh, 1, P_pad)       1.0 on valid (interior-plane, in-range-depth)
      w1_ref  : (27, 1, C1, 1)        conv1 taps (kd*9 + kh*3 + kw ordering)
      b1_ref  : (1, C1, 1)
      w2_ref  : (C2, 27*C1)           conv2, K ordered (kd, kh, kw, cin)
      b2_ref  : (C2, 1)
      out_ref : (C2, 1)               partial pooled sum for this (n, tile)
      x_vmem  : (TDx, P_pad)          VMEM scratch for the depth slab
      copy_sem: DMA semaphore
    """
    n = pl.program_id(0)
    t = pl.program_id(1)

    # ---- manual DMA of the depth slab: TD output rows + 2-row halo each side.
    start = pl.multiple_of(t * TD, TD)
    cp = pltpu.make_async_copy(x_hbm.at[n, pl.ds(start, TDx)], x_vmem, copy_sem)
    cp.start()
    cp.wait()
    x = x_vmem[...]                                   # (TDx, P_pad)

    mask = mask_ref[...]                              # (TDh, 1, P_pad)

    # ---- conv1 (Cin = 1): 27 broadcast FMAs on the VPU, plane taps via
    # ---- circular lane shifts, depth taps via sublane-row slices.
    h1 = jnp.zeros((TDh, C1, P_pad), jnp.float32)
    for kh in range(3):
        for kw in range(3):
            off = (kh - 1) * Wp + (kw - 1)
            xr = _plane_shift(x, off, P_pad)          # (TDx, P_pad)
            xr = xr[:, None, :]                       # (TDx, 1, P_pad)
            for kd in range(3):
                tap = kd * 9 + kh * 3 + kw
                h1 = h1 + w1_ref[tap] * xr[kd:kd + TDh]
    # Bias + ReLU; mask zeroes the plane border and out-of-range depth rows,
    # which is exactly the zero padding conv2 expects from its input.
    h1 = jnp.maximum(h1 + b1_ref[...], 0.0) * mask    # (TDh, C1, P_pad)
    h1 = h1.reshape(TDh * C1, P_pad)                  # depth-major rows, C1 = 8-aligned

    # Pre-shift h1 once per (kh, kw) plane offset (reused by every output row).
    h1s = []
    for kh in range(3):
        for kw in range(3):
            off = (kh - 1) * Wp + (kw - 1)
            h1s.append(_plane_shift(h1, off, P_pad))

    # ---- conv2 as one K = 27*C1 im2col matmul per output depth row, fused
    # ---- with bias, ReLU and the global-average-pool partial reduction.
    w2 = w2_ref[...]                                  # (C2, 27*C1)
    b2 = b2_ref[...]                                  # (C2, 1)
    pooled = jnp.zeros((C2, 1), jnp.float32)
    for r in range(TD):
        pieces = []
        for kd in range(3):
            for q in range(9):                        # q = kh*3 + kw
                j = r + kd
                pieces.append(h1s[q][j * C1:(j + 1) * C1, :])
        patches = jnp.concatenate(pieces, axis=0)     # (27*C1, P_pad)
        y = jnp.dot(w2, patches, preferred_element_type=jnp.float32) + b2
        y = jnp.maximum(y, 0.0) * mask[r + 1]         # (C2, P_pad), lane-dense
        pooled = pooled + jnp.sum(y, axis=1, keepdims=True)
    out_ref[...] = pooled


# --------------------------------------------------------------------------
# Wrapper: layout plumbing + pallas_call
# --------------------------------------------------------------------------
def shallow_3dcnn_forward(x, params, *, tile_d=8):
    if x.ndim == 4:                       # (N, D, H, W) -> like torch x.unsqueeze(1)
        x = x[:, None]
    elif x.ndim != 5:
        raise ValueError(f"Expected input dimension 4 or 5, but got {x.ndim}")
    if x.shape[1] != 1:
        raise ValueError("Shallow_3DCNN encoder expects a single input channel")
    x = x[:, 0].astype(jnp.float32)       # (N, D, H, W)
    N, D, H, W = x.shape

    C1 = params["conv1_w"].shape[0]
    C2 = params["conv2_w"].shape[0]

    TD = tile_d
    Hp, Wp = H + 2, W + 2
    P = Hp * Wp
    P_pad = _round_up(P, 128)             # spatial plane on the lane axis
    D_pad = _round_up(D, TD)
    KD = D_pad // TD
    TDx = TD + 4                          # input slab depth (2-row halo each side)
    TDh = TD + 2                          # conv1 rows needed per tile (1-row halo)
    Dp_total = D_pad + 4

    # Zero-pad: depth by 2 front / 2+alignment back, H and W by 1 ('same' conv);
    # flatten the padded plane and pad it to P_pad lanes.
    xp = jnp.pad(x, ((0, 0), (2, 2 + D_pad - D), (1, 1), (1, 1)))
    xp = xp.reshape(N, Dp_total, P)
    xp = jnp.pad(xp, ((0, 0), (0, 0), (0, P_pad - P)))        # (N, Dp_total, P_pad)

    # Per-tile validity mask: interior plane positions of depth rows that map to
    # a real input depth.  Row j of tile t corresponds to depth g = t*TD + j - 1.
    plane = np.zeros((Hp, Wp), np.float32)
    plane[1:H + 1, 1:W + 1] = 1.0
    plane_flat = np.zeros((P_pad,), np.float32)
    plane_flat[:P] = plane.reshape(-1)
    mask_np = np.zeros((KD, TDh, 1, P_pad), np.float32)
    for t in range(KD):
        for j in range(TDh):
            g = t * TD + j - 1
            if 0 <= g < D:
                mask_np[t, j, 0] = plane_flat
    mask = jnp.asarray(mask_np)

    # Weight layouts: conv1 taps as (27, 1, C1, 1); conv2 as (C2, 27*C1) with the
    # K axis ordered (kd, kh, kw, cin) to match the in-kernel im2col ordering.
    w1_taps = jnp.transpose(params["conv1_w"][:, 0], (1, 2, 3, 0)).reshape(27, 1, C1, 1)
    b1 = params["conv1_b"].reshape(1, C1, 1)
    w2_2d = jnp.transpose(params["conv2_w"], (0, 2, 3, 4, 1)).reshape(C2, 27 * C1)
    b2 = params["conv2_b"].reshape(C2, 1)

    kernel = functools.partial(
        _fused_conv_pool_kernel,
        TD=TD, TDx=TDx, TDh=TDh, Wp=Wp, P_pad=P_pad, C1=C1, C2=C2)

    pooled = pl.pallas_call(
        kernel,
        out_shape=jax.ShapeDtypeStruct((N, KD, C2, 1), jnp.float32),
        grid=(N, KD),
        in_specs=[
            pl.BlockSpec(memory_space=pl.ANY),                          # x: stays in HBM
            pl.BlockSpec((None, TDh, 1, P_pad), lambda n, t: (t, 0, 0, 0)),
            pl.BlockSpec((27, 1, C1, 1), lambda n, t: (0, 0, 0, 0)),
            pl.BlockSpec((1, C1, 1), lambda n, t: (0, 0, 0)),
            pl.BlockSpec((C2, 27 * C1), lambda n, t: (0, 0)),
            pl.BlockSpec((C2, 1), lambda n, t: (0, 0)),
        ],
        out_specs=pl.BlockSpec((None, None, C2, 1), lambda n, t: (n, t, 0, 0)),
        scratch_shapes=[
            pltpu.VMEM((TDx, P_pad), jnp.float32),
            pltpu.SemaphoreType.DMA,
        ],
        compiler_params=pltpu.CompilerParams(
            dimension_semantics=("parallel", "parallel")),
    )(xp, mask, w1_taps, b1, w2_2d, b2)

    # Finish the global average pool, then the two tiny dense layers in XLA.
    feats = jnp.sum(pooled.reshape(N, KD, C2), axis=1) / float(D * H * W)
    h = jnp.maximum(feats @ params["fc_w"].T + params["fc_b"], 0.0)
    logits = h @ params["dec_w"].T + params["dec_b"]
    return logits


# --------------------------------------------------------------------------
# Parameters (PyTorch layouts, converted at forward)
# --------------------------------------------------------------------------
def init_params(key, in_channels=1, c1=8, c2=16, feat=128, out_classes=8):
    ks = jax.random.split(key, 8)

    def u(kk, shape, fan_in):
        bound = 1.0 / float(fan_in) ** 0.5
        return jax.random.uniform(kk, shape, jnp.float32, -bound, bound)

    return {
        # Conv3d weights in torch layout (Cout, Cin, kD, kH, kW)
        "conv1_w": u(ks[0], (c1, in_channels, 3, 3, 3), in_channels * 27),
        "conv1_b": u(ks[1], (c1,), in_channels * 27),
        "conv2_w": u(ks[2], (c2, c1, 3, 3, 3), c1 * 27),
        "conv2_b": u(ks[3], (c2,), c1 * 27),
        # Linear weights in torch layout (out, in)
        "fc_w": u(ks[4], (feat, c2), c2),
        "fc_b": u(ks[5], (feat,), c2),
        "dec_w": u(ks[6], (out_classes, feat), feat),
        "dec_b": u(ks[7], (out_classes,), feat),
    }


# --------------------------------------------------------------------------
# Pure-JAX reference (for correctness check)
# --------------------------------------------------------------------------
def _conv_ref(x, w, b):
    y = lax.conv_general_dilated(
        x, w, window_strides=(1, 1, 1), padding="SAME",
        dimension_numbers=("NDHWC", "DHWIO", "NDHWC"))
    return jnp.maximum(y + b, 0.0)


def reference_forward(x, params):
    if x.ndim == 4:
        x = x[:, None]
    x = jnp.transpose(x, (0, 2, 3, 4, 1)).astype(jnp.float32)   # NCDHW -> NDHWC
    w1 = jnp.transpose(params["conv1_w"], (2, 3, 4, 1, 0))      # -> DHWIO
    w2 = jnp.transpose(params["conv2_w"], (2, 3, 4, 1, 0))
    h = _conv_ref(x, w1, params["conv1_b"])
    h = _conv_ref(h, w2, params["conv2_b"])
    h = jnp.mean(h.reshape(h.shape[0], -1, h.shape[-1]), axis=1)
    h = jnp.maximum(h @ params["fc_w"].T + params["fc_b"], 0.0)
    return h @ params["dec_w"].T + params["dec_b"]


# --------------------------------------------------------------------------
if __name__ == "__main__":
    key = jax.random.PRNGKey(0)
    kx, kp = jax.random.split(key)

    # Small stand-in for in_shape=(138, 17, 17): (D, H, W) = (12, 9, 9).
    # D=12 with depth-tile 8 also exercises the ragged/masked last tile.
    N, D, H, W = 2, 12, 9, 9
    x = jax.random.normal(kx, (N, D, H, W), jnp.float32)
    params = init_params(kp, out_classes=8)

    out = jax.jit(shallow_3dcnn_forward)(x, params)
    out = jax.block_until_ready(out)

    ref = reference_forward(x, params)
    assert out.shape == (N, 8), out.shape
    max_err = float(jnp.max(jnp.abs(out - ref)))
    assert jnp.allclose(out, ref, rtol=3e-3, atol=3e-3), max_err

    print("KERNEL_OK")
</pallas_src>

<mosaic_0001>
module attributes {stable_mosaic.version = 11 : i64} {
  func.func @_fused_conv_pool_kernel(%arg0: i32, %arg1: i32, %arg2: memref<2x20x128xf32, #tpu.memory_space<any>>, %arg3: memref<1x10x1x128xf32, #tpu.memory_space<vmem>>, %arg4: memref<27x1x8x1xf32, #tpu.memory_space<vmem>>, %arg5: memref<1x8x1xf32, #tpu.memory_space<vmem>>, %arg6: memref<16x216xf32, #tpu.memory_space<vmem>>, %arg7: memref<16x1xf32, #tpu.memory_space<vmem>>, %arg8: memref<1x1x16x1xf32, #tpu.memory_space<vmem>>, %arg9: memref<12x128xf32, #tpu.memory_space<vmem>>, %arg10: memref<!tpu.dma_semaphore, #tpu.memory_space<semaphore_mem>>) attributes {dimension_semantics = [#tpu.dimension_semantics<parallel>, #tpu.dimension_semantics<parallel>], iteration_bounds = array<i64: 2, 2>, scalar_prefetch = 0 : i64, scratch_operands = 2 : i64, tpu.core_type = #tpu.core_type<tc>, window_params = [{}, {transform_indices = @transform_1, window_bounds = array<i64: 1, 10, 1, 128>}, {pipeline_mode = #tpu.pipeline_mode<synchronous>, transform_indices = @transform_2, window_bounds = array<i64: 27, 1, 8, 1>}, {pipeline_mode = #tpu.pipeline_mode<synchronous>, transform_indices = @transform_3, window_bounds = array<i64: 1, 8, 1>}, {pipeline_mode = #tpu.pipeline_mode<synchronous>, transform_indices = @transform_4, window_bounds = array<i64: 16, 216>}, {pipeline_mode = #tpu.pipeline_mode<synchronous>, transform_indices = @transform_5, window_bounds = array<i64: 16, 1>}, {transform_indices = @transform_6, window_bounds = array<i64: 1, 1, 16, 1>}]} {
    %c8_i32 = arith.constant 8 : i32
    %0 = arith.muli %arg1, %c8_i32 : i32
    %1 = tpu.assume_multiple %0, 8 : i32
    %c0_i32 = arith.constant 0 : i32
    %2 = tpu.memref_slice %arg2[%arg0, %1, %c0_i32] : memref<2x20x128xf32, #tpu.memory_space<any>> -> memref<1x12x128xf32, #tpu.memory_space<any>>
    %3 = tpu.memref_squeeze %2 : memref<1x12x128xf32, #tpu.memory_space<any>> -> memref<12x128xf32, #tpu.memory_space<any>>
    tpu.enqueue_dma source(%3 : memref<12x128xf32, #tpu.memory_space<any>>) target(%arg9 : memref<12x128xf32, #tpu.memory_space<vmem>>) target_semaphore(%arg10 : memref<!tpu.dma_semaphore, #tpu.memory_space<semaphore_mem>>)
    %c0_i32_0 = arith.constant 0 : i32
    %4 = tpu.memref_slice %arg2[%arg0, %1, %c0_i32_0] : memref<2x20x128xf32, #tpu.memory_space<any>> -> memref<1x12x128xf32, #tpu.memory_space<any>>
    %5 = tpu.memref_squeeze %4 : memref<1x12x128xf32, #tpu.memory_space<any>> -> memref<12x128xf32, #tpu.memory_space<any>>
    tpu.wait_dma2 semaphore(%arg10 : memref<!tpu.dma_semaphore, #tpu.memory_space<semaphore_mem>>) src(%5 : memref<12x128xf32, #tpu.memory_space<any>>) dst(%arg9 : memref<12x128xf32, #tpu.memory_space<vmem>>)
    %c0 = arith.constant 0 : index
    %c0_1 = arith.constant 0 : index
    %6 = vector.load %arg9[%c0, %c0_1] : memref<12x128xf32, #tpu.memory_space<vmem>>, vector<12x128xf32>
    %c0_2 = arith.constant 0 : index
    %c0_3 = arith.constant 0 : index
    %c0_4 = arith.constant 0 : index
    %c0_5 = arith.constant 0 : index
    %7 = vector.load %arg3[%c0_2, %c0_3, %c0_4, %c0_5] : memref<1x10x1x128xf32, #tpu.memory_space<vmem>>, vector<1x10x1x128xf32>
    %8 = vector.shape_cast %7 : vector<1x10x1x128xf32> to vector<10x1x128xf32>
    %cst = arith.constant 0.000000e+00 : f32
    %9 = vector.broadcast %cst : f32 to vector<10x8x128xf32>
    %10 = vector.extract_strided_slice %6 {offsets = [0, 116], sizes = [12, 12], strides = [1, 1]} : vector<12x128xf32> to vector<12x12xf32>
    %11 = vector.extract_strided_slice %6 {offsets = [0, 0], sizes = [12, 116], strides = [1, 1]} : vector<12x128xf32> to vector<12x116xf32>
    %12 = tpu.concatenate %10, %11 in 1 : vector<12x12xf32>, vector<12x116xf32> -> vector<12x128xf32>
    %13 = vector.shape_cast %12 : vector<12x128xf32> to vector<12x1x128xf32>
    %c0_6 = arith.constant 0 : index
    %c0_7 = arith.constant 0 : index
    %c0_8 = arith.constant 0 : index
    %c0_9 = arith.constant 0 : index
    %14 = vector.load %arg4[%c0_6, %c0_7, %c0_8, %c0_9] : memref<27x1x8x1xf32, #tpu.memory_space<vmem>>, vector<1x1x8x1xf32>
    %15 = vector.shape_cast %14 : vector<1x1x8x1xf32> to vector<1x8x1xf32>
    %16 = vector.extract_strided_slice %13 {offsets = [0, 0, 0], sizes = [10, 1, 128], strides = [1, 1, 1]} : vector<12x1x128xf32> to vector<10x1x128xf32>
    %17 = vector.broadcast %15 : vector<1x8x1xf32> to vector<10x8x128xf32>
    %18 = vector.broadcast %16 : vector<10x1x128xf32> to vector<10x8x128xf32>
    %19 = arith.mulf %17, %18 : vector<10x8x128xf32>
    %20 = arith.addf %9, %19 : vector<10x8x128xf32>
    %c9 = arith.constant 9 : index
    %c0_10 = arith.constant 0 : index
    %c0_11 = arith.constant 0 : index
    %c0_12 = arith.constant 0 : index
    %21 = vector.load %arg4[%c9, %c0_10, %c0_11, %c0_12] : memref<27x1x8x1xf32, #tpu.memory_space<vmem>>, vector<1x1x8x1xf32>
    %22 = vector.shape_cast %21 : vector<1x1x8x1xf32> to vector<1x8x1xf32>
    %23 = vector.extract_strided_slice %13 {offsets = [1, 0, 0], sizes = [10, 1, 128], strides = [1, 1, 1]} : vector<12x1x128xf32> to vector<10x1x128xf32>
    %24 = vector.broadcast %22 : vector<1x8x1xf32> to vector<10x8x128xf32>
    %25 = vector.broadcast %23 : vector<10x1x128xf32> to vector<10x8x128xf32>
    %26 = arith.mulf %24, %25 : vector<10x8x128xf32>
    %27 = arith.addf %20, %26 : vector<10x8x128xf32>
    %c18 = arith.constant 18 : index
    %c0_13 = arith.constant 0 : index
    %c0_14 = arith.constant 0 : index
    %c0_15 = arith.constant 0 : index
    %28 = vector.load %arg4[%c18, %c0_13, %c0_14, %c0_15] : memref<27x1x8x1xf32, #tpu.memory_space<vmem>>, vector<1x1x8x1xf32>
    %29 = vector.shape_cast %28 : vector<1x1x8x1xf32> to vector<1x8x1xf32>
    %30 = vector.extract_strided_slice %13 {offsets = [2, 0, 0], sizes = [10, 1, 128], strides = [1, 1, 1]} : vector<12x1x128xf32> to vector<10x1x128xf32>
    %31 = vector.broadcast %29 : vector<1x8x1xf32> to vector<10x8x128xf32>
    %32 = vector.broadcast %30 : vector<10x1x128xf32> to vector<10x8x128xf32>
    %33 = arith.mulf %31, %32 : vector<10x8x128xf32>
    %34 = arith.addf %27, %33 : vector<10x8x128xf32>
    %35 = vector.extract_strided_slice %6 {offsets = [0, 117], sizes = [12, 11], strides = [1, 1]} : vector<12x128xf32> to vector<12x11xf32>
    %36 = vector.extract_strided_slice %6 {offsets = [0, 0], sizes = [12, 117], strides = [1, 1]} : vector<12x128xf32> to vector<12x117xf32>
    %37 = tpu.concatenate %35, %36 in 1 : vector<12x11xf32>, vector<12x117xf32> -> vector<12x128xf32>
    %38 = vector.shape_cast %37 : vector<12x128xf32> to vector<12x1x128xf32>
    %c1 = arith.constant 1 : index
    %c0_16 = arith.constant 0 : index
    %c0_17 = arith.constant 0 : index
    %c0_18 = arith.constant 0 : index
    %39 = vector.load %arg4[%c1, %c0_16, %c0_17, %c0_18] : memref<27x1x8x1xf32, #tpu.memory_space<vmem>>, vector<1x1x8x1xf32>
    %40 = vector.shape_cast %39 : vector<1x1x8x1xf32> to vector<1x8x1xf32>
    %41 = vector.extract_strided_slice %38 {offsets = [0, 0, 0], sizes = [10, 1, 128], strides = [1, 1, 1]} : vector<12x1x128xf32> to vector<10x1x128xf32>
    %42 = vector.broadcast %40 : vector<1x8x1xf32> to vector<10x8x128xf32>
    %43 = vector.broadcast %41 : vector<10x1x128xf32> to vector<10x8x128xf32>
    %44 = arith.mulf %42, %43 : vector<10x8x128xf32>
    %45 = arith.addf %34, %44 : vector<10x8x128xf32>
    %c10 = arith.constant 10 : index
    %c0_19 = arith.constant 0 : index
    %c0_20 = arith.constant 0 : index
    %c0_21 = arith.constant 0 : index
    %46 = vector.load %arg4[%c10, %c0_19, %c0_20, %c0_21] : memref<27x1x8x1xf32, #tpu.memory_space<vmem>>, vector<1x1x8x1xf32>
    %47 = vector.shape_cast %46 : vector<1x1x8x1xf32> to vector<1x8x1xf32>
    %48 = vector.extract_strided_slice %38 {offsets = [1, 0, 0], sizes = [10, 1, 128], strides = [1, 1, 1]} : vector<12x1x128xf32> to vector<10x1x128xf32>
    %49 = vector.broadcast %47 : vector<1x8x1xf32> to vector<10x8x128xf32>
    %50 = vector.broadcast %48 : vector<10x1x128xf32> to vector<10x8x128xf32>
    %51 = arith.mulf %49, %50 : vector<10x8x128xf32>
    %52 = arith.addf %45, %51 : vector<10x8x128xf32>
    %c19 = arith.constant 19 : index
    %c0_22 = arith.constant 0 : index
    %c0_23 = arith.constant 0 : index
    %c0_24 = arith.constant 0 : index
    %53 = vector.load %arg4[%c19, %c0_22, %c0_23, %c0_24] : memref<27x1x8x1xf32, #tpu.memory_space<vmem>>, vector<1x1x8x1xf32>
    %54 = vector.shape_cast %53 : vector<1x1x8x1xf32> to vector<1x8x1xf32>
    %55 = vector.extract_strided_slice %38 {offsets = [2, 0, 0], sizes = [10, 1, 128], strides = [1, 1, 1]} : vector<12x1x128xf32> to vector<10x1x128xf32>
    %56 = vector.broadcast %54 : vector<1x8x1xf32> to vector<10x8x128xf32>
    %57 = vector.broadcast %55 : vector<10x1x128xf32> to vector<10x8x128xf32>
    %58 = arith.mulf %56, %57 : vector<10x8x128xf32>
    %59 = arith.addf %52, %58 : vector<10x8x128xf32>
    %60 = vector.extract_strided_slice %6 {offsets = [0, 118], sizes = [12, 10], strides = [1, 1]} : vector<12x128xf32> to vector<12x10xf32>
    %61 = vector.extract_strided_slice %6 {offsets = [0, 0], sizes = [12, 118], strides = [1, 1]} : vector<12x128xf32> to vector<12x118xf32>
    %62 = tpu.concatenate %60, %61 in 1 : vector<12x10xf32>, vector<12x118xf32> -> vector<12x128xf32>
    %63 = vector.shape_cast %62 : vector<12x128xf32> to vector<12x1x128xf32>
    %c2 = arith.constant 2 : index
    %c0_25 = arith.constant 0 : index
    %c0_26 = arith.constant 0 : index
    %c0_27 = arith.constant 0 : index
    %64 = vector.load %arg4[%c2, %c0_25, %c0_26, %c0_27] : memref<27x1x8x1xf32, #tpu.memory_space<vmem>>, vector<1x1x8x1xf32>
    %65 = vector.shape_cast %64 : vector<1x1x8x1xf32> to vector<1x8x1xf32>
    %66 = vector.extract_strided_slice %63 {offsets = [0, 0, 0], sizes = [10, 1, 128], strides = [1, 1, 1]} : vector<12x1x128xf32> to vector<10x1x128xf32>
    %67 = vector.broadcast %65 : vector<1x8x1xf32> to vector<10x8x128xf32>
    %68 = vector.broadcast %66 : vector<10x1x128xf32> to vector<10x8x128xf32>
    %69 = arith.mulf %67, %68 : vector<10x8x128xf32>
    %70 = arith.addf %59, %69 : vector<10x8x128xf32>
    %c11 = arith.constant 11 : index
    %c0_28 = arith.constant 0 : index
    %c0_29 = arith.constant 0 : index
    %c0_30 = arith.constant 0 : index
    %71 = vector.load %arg4[%c11, %c0_28, %c0_29, %c0_30] : memref<27x1x8x1xf32, #tpu.memory_space<vmem>>, vector<1x1x8x1xf32>
    %72 = vector.shape_cast %71 : vector<1x1x8x1xf32> to vector<1x8x1xf32>
    %73 = vector.extract_strided_slice %63 {offsets = [1, 0, 0], sizes = [10, 1, 128], strides = [1, 1, 1]} : vector<12x1x128xf32> to vector<10x1x128xf32>
    %74 = vector.broadcast %72 : vector<1x8x1xf32> to vector<10x8x128xf32>
    %75 = vector.broadcast %73 : vector<10x1x128xf32> to vector<10x8x128xf32>
    %76 = arith.mulf %74, %75 : vector<10x8x128xf32>
    %77 = arith.addf %70, %76 : vector<10x8x128xf32>
    %c20 = arith.constant 20 : index
    %c0_31 = arith.constant 0 : index
    %c0_32 = arith.constant 0 : index
    %c0_33 = arith.constant 0 : index
    %78 = vector.load %arg4[%c20, %c0_31, %c0_32, %c0_33] : memref<27x1x8x1xf32, #tpu.memory_space<vmem>>, vector<1x1x8x1xf32>
    %79 = vector.shape_cast %78 : vector<1x1x8x1xf32> to vector<1x8x1xf32>
    %80 = vector.extract_strided_slice %63 {offsets = [2, 0, 0], sizes = [10, 1, 128], strides = [1, 1, 1]} : vector<12x1x128xf32> to vector<10x1x128xf32>
    %81 = vector.broadcast %79 : vector<1x8x1xf32> to vector<10x8x128xf32>
    %82 = vector.broadcast %80 : vector<10x1x128xf32> to vector<10x8x128xf32>
    %83 = arith.mulf %81, %82 : vector<10x8x128xf32>
    %84 = arith.addf %77, %83 : vector<10x8x128xf32>
    %85 = vector.extract_strided_slice %6 {offsets = [0, 127], sizes = [12, 1], strides = [1, 1]} : vector<12x128xf32> to vector<12x1xf32>
    %86 = vector.extract_strided_slice %6 {offsets = [0, 0], sizes = [12, 127], strides = [1, 1]} : vector<12x128xf32> to vector<12x127xf32>
    %87 = tpu.concatenate %85, %86 in 1 : vector<12x1xf32>, vector<12x127xf32> -> vector<12x128xf32>
    %88 = vector.shape_cast %87 : vector<12x128xf32> to vector<12x1x128xf32>
    %c3 = arith.constant 3 : index
    %c0_34 = arith.constant 0 : index
    %c0_35 = arith.constant 0 : index
    %c0_36 = arith.constant 0 : index
    %89 = vector.load %arg4[%c3, %c0_34, %c0_35, %c0_36] : memref<27x1x8x1xf32, #tpu.memory_space<vmem>>, vector<1x1x8x1xf32>
    %90 = vector.shape_cast %89 : vector<1x1x8x1xf32> to vector<1x8x1xf32>
    %91 = vector.extract_strided_slice %88 {offsets = [0, 0, 0], sizes = [10, 1, 128], strides = [1, 1, 1]} : vector<12x1x128xf32> to vector<10x1x128xf32>
    %92 = vector.broadcast %90 : vector<1x8x1xf32> to vector<10x8x128xf32>
    %93 = vector.broadcast %91 : vector<10x1x128xf32> to vector<10x8x128xf32>
    %94 = arith.mulf %92, %93 : vector<10x8x128xf32>
    %95 = arith.addf %84, %94 : vector<10x8x128xf32>
    %c12 = arith.constant 12 : index
    %c0_37 = arith.constant 0 : index
    %c0_38 = arith.constant 0 : index
    %c0_39 = arith.constant 0 : index
    %96 = vector.load %arg4[%c12, %c0_37, %c0_38, %c0_39] : memref<27x1x8x1xf32, #tpu.memory_space<vmem>>, vector<1x1x8x1xf32>
    %97 = vector.shape_cast %96 : vector<1x1x8x1xf32> to vector<1x8x1xf32>
    %98 = vector.extract_strided_slice %88 {offsets = [1, 0, 0], sizes = [10, 1, 128], strides = [1, 1, 1]} : vector<12x1x128xf32> to vector<10x1x128xf32>
    %99 = vector.broadcast %97 : vector<1x8x1xf32> to vector<10x8x128xf32>
    %100 = vector.broadcast %98 : vector<10x1x128xf32> to vector<10x8x128xf32>
    %101 = arith.mulf %99, %100 : vector<10x8x128xf32>
    %102 = arith.addf %95, %101 : vector<10x8x128xf32>
    %c21 = arith.constant 21 : index
    %c0_40 = arith.constant 0 : index
    %c0_41 = arith.constant 0 : index
    %c0_42 = arith.constant 0 : index
    %103 = vector.load %arg4[%c21, %c0_40, %c0_41, %c0_42] : memref<27x1x8x1xf32, #tpu.memory_space<vmem>>, vector<1x1x8x1xf32>
    %104 = vector.shape_cast %103 : vector<1x1x8x1xf32> to vector<1x8x1xf32>
    %105 = vector.extract_strided_slice %88 {offsets = [2, 0, 0], sizes = [10, 1, 128], strides = [1, 1, 1]} : vector<12x1x128xf32> to vector<10x1x128xf32>
    %106 = vector.broadcast %104 : vector<1x8x1xf32> to vector<10x8x128xf32>
    %107 = vector.broadcast %105 : vector<10x1x128xf32> to vector<10x8x128xf32>
    %108 = arith.mulf %106, %107 : vector<10x8x128xf32>
    %109 = arith.addf %102, %108 : vector<10x8x128xf32>
    %110 = vector.shape_cast %6 : vector<12x128xf32> to vector<12x1x128xf32>
    %c4 = arith.constant 4 : index
    %c0_43 = arith.constant 0 : index
    %c0_44 = arith.constant 0 : index
    %c0_45 = arith.constant 0 : index
    %111 = vector.load %arg4[%c4, %c0_43, %c0_44, %c0_45] : memref<27x1x8x1xf32, #tpu.memory_space<vmem>>, vector<1x1x8x1xf32>
    %112 = vector.shape_cast %111 : vector<1x1x8x1xf32> to vector<1x8x1xf32>
    %113 = vector.extract_strided_slice %110 {offsets = [0, 0, 0], sizes = [10, 1, 128], strides = [1, 1, 1]} : vector<12x1x128xf32> to vector<10x1x128xf32>
    %114 = vector.broadcast %112 : vector<1x8x1xf32> to vector<10x8x128xf32>
    %115 = vector.broadcast %113 : vector<10x1x128xf32> to vector<10x8x128xf32>
    %116 = arith.mulf %114, %115 : vector<10x8x128xf32>
    %117 = arith.addf %109, %116 : vector<10x8x128xf32>
    %c13 = arith.constant 13 : index
    %c0_46 = arith.constant 0 : index
    %c0_47 = arith.constant 0 : index
    %c0_48 = arith.constant 0 : index
    %118 = vector.load %arg4[%c13, %c0_46, %c0_47, %c0_48] : memref<27x1x8x1xf32, #tpu.memory_space<vmem>>, vector<1x1x8x1xf32>
    %119 = vector.shape_cast %118 : vector<1x1x8x1xf32> to vector<1x8x1xf32>
    %120 = vector.extract_strided_slice %110 {offsets = [1, 0, 0], sizes = [10, 1, 128], strides = [1, 1, 1]} : vector<12x1x128xf32> to vector<10x1x128xf32>
    %121 = vector.broadcast %119 : vector<1x8x1xf32> to vector<10x8x128xf32>
    %122 = vector.broadcast %120 : vector<10x1x128xf32> to vector<10x8x128xf32>
    %123 = arith.mulf %121, %122 : vector<10x8x128xf32>
    %124 = arith.addf %117, %123 : vector<10x8x128xf32>
    %c22 = arith.constant 22 : index
    %c0_49 = arith.constant 0 : index
    %c0_50 = arith.constant 0 : index
    %c0_51 = arith.constant 0 : index
    %125 = vector.load %arg4[%c22, %c0_49, %c0_50, %c0_51] : memref<27x1x8x1xf32, #tpu.memory_space<vmem>>, vector<1x1x8x1xf32>
    %126 = vector.shape_cast %125 : vector<1x1x8x1xf32> to vector<1x8x1xf32>
    %127 = vector.extract_strided_slice %110 {offsets = [2, 0, 0], sizes = [10, 1, 128], strides = [1, 1, 1]} : vector<12x1x128xf32> to vector<10x1x128xf32>
    %128 = vector.broadcast %126 : vector<1x8x1xf32> to vector<10x8x128xf32>
    %129 = vector.broadcast %127 : vector<10x1x128xf32> to vector<10x8x128xf32>
    %130 = arith.mulf %128, %129 : vector<10x8x128xf32>
    %131 = arith.addf %124, %130 : vector<10x8x128xf32>
    %132 = vector.extract_strided_slice %6 {offsets = [0, 1], sizes = [12, 127], strides = [1, 1]} : vector<12x128xf32> to vector<12x127xf32>
    %133 = vector.extract_strided_slice %6 {offsets = [0, 0], sizes = [12, 1], strides = [1, 1]} : vector<12x128xf32> to vector<12x1xf32>
    %134 = tpu.concatenate %132, %133 in 1 : vector<12x127xf32>, vector<12x1xf32> -> vector<12x128xf32>
    %135 = vector.shape_cast %134 : vector<12x128xf32> to vector<12x1x128xf32>
    %c5 = arith.constant 5 : index
    %c0_52 = arith.constant 0 : index
    %c0_53 = arith.constant 0 : index
    %c0_54 = arith.constant 0 : index
    %136 = vector.load %arg4[%c5, %c0_52, %c0_53, %c0_54] : memref<27x1x8x1xf32, #tpu.memory_space<vmem>>, vector<1x1x8x1xf32>
    %137 = vector.shape_cast %136 : vector<1x1x8x1xf32> to vector<1x8x1xf32>
    %138 = vector.extract_strided_slice %135 {offsets = [0, 0, 0], sizes = [10, 1, 128], strides = [1, 1, 1]} : vector<12x1x128xf32> to vector<10x1x128xf32>
    %139 = vector.broadcast %137 : vector<1x8x1xf32> to vector<10x8x128xf32>
    %140 = vector.broadcast %138 : vector<10x1x128xf32> to vector<10x8x128xf32>
    %141 = arith.mulf %139, %140 : vector<10x8x128xf32>
    %142 = arith.addf %131, %141 : vector<10x8x128xf32>
    %c14 = arith.constant 14 : index
    %c0_55 = arith.constant 0 : index
    %c0_56 = arith.constant 0 : index
    %c0_57 = arith.constant 0 : index
    %143 = vector.load %arg4[%c14, %c0_55, %c0_56, %c0_57] : memref<27x1x8x1xf32, #tpu.memory_space<vmem>>, vector<1x1x8x1xf32>
    %144 = vector.shape_cast %143 : vector<1x1x8x1xf32> to vector<1x8x1xf32>
    %145 = vector.extract_strided_slice %135 {offsets = [1, 0, 0], sizes = [10, 1, 128], strides = [1, 1, 1]} : vector<12x1x128xf32> to vector<10x1x128xf32>
    %146 = vector.broadcast %144 : vector<1x8x1xf32> to vector<10x8x128xf32>
    %147 = vector.broadcast %145 : vector<10x1x128xf32> to vector<10x8x128xf32>
    %148 = arith.mulf %146, %147 : vector<10x8x128xf32>
    %149 = arith.addf %142, %148 : vector<10x8x128xf32>
    %c23 = arith.constant 23 : index
    %c0_58 = arith.constant 0 : index
    %c0_59 = arith.constant 0 : index
    %c0_60 = arith.constant 0 : index
    %150 = vector.load %arg4[%c23, %c0_58, %c0_59, %c0_60] : memref<27x1x8x1xf32, #tpu.memory_space<vmem>>, vector<1x1x8x1xf32>
    %151 = vector.shape_cast %150 : vector<1x1x8x1xf32> to vector<1x8x1xf32>
    %152 = vector.extract_strided_slice %135 {offsets = [2, 0, 0], sizes = [10, 1, 128], strides = [1, 1, 1]} : vector<12x1x128xf32> to vector<10x1x128xf32>
    %153 = vector.broadcast %151 : vector<1x8x1xf32> to vector<10x8x128xf32>
    %154 = vector.broadcast %152 : vector<10x1x128xf32> to vector<10x8x128xf32>
    %155 = arith.mulf %153, %154 : vector<10x8x128xf32>
    %156 = arith.addf %149, %155 : vector<10x8x128xf32>
    %157 = vector.extract_strided_slice %6 {offsets = [0, 10], sizes = [12, 118], strides = [1, 1]} : vector<12x128xf32> to vector<12x118xf32>
    %158 = vector.extract_strided_slice %6 {offsets = [0, 0], sizes = [12, 10], strides = [1, 1]} : vector<12x128xf32> to vector<12x10xf32>
    %159 = tpu.concatenate %157, %158 in 1 : vector<12x118xf32>, vector<12x10xf32> -> vector<12x128xf32>
    %160 = vector.shape_cast %159 : vector<12x128xf32> to vector<12x1x128xf32>
    %c6 = arith.constant 6 : index
    %c0_61 = arith.constant 0 : index
    %c0_62 = arith.constant 0 : index
    %c0_63 = arith.constant 0 : index
    %161 = vector.load %arg4[%c6, %c0_61, %c0_62, %c0_63] : memref<27x1x8x1xf32, #tpu.memory_space<vmem>>, vector<1x1x8x1xf32>
    %162 = vector.shape_cast %161 : vector<1x1x8x1xf32> to vector<1x8x1xf32>
    %163 = vector.extract_strided_slice %160 {offsets = [0, 0, 0], sizes = [10, 1, 128], strides = [1, 1, 1]} : vector<12x1x128xf32> to vector<10x1x128xf32>
    %164 = vector.broadcast %162 : vector<1x8x1xf32> to vector<10x8x128xf32>
    %165 = vector.broadcast %163 : vector<10x1x128xf32> to vector<10x8x128xf32>
    %166 = arith.mulf %164, %165 : vector<10x8x128xf32>
    %167 = arith.addf %156, %166 : vector<10x8x128xf32>
    %c15 = arith.constant 15 : index
    %c0_64 = arith.constant 0 : index
    %c0_65 = arith.constant 0 : index
    %c0_66 = arith.constant 0 : index
    %168 = vector.load %arg4[%c15, %c0_64, %c0_65, %c0_66] : memref<27x1x8x1xf32, #tpu.memory_space<vmem>>, vector<1x1x8x1xf32>
    %169 = vector.shape_cast %168 : vector<1x1x8x1xf32> to vector<1x8x1xf32>
    %170 = vector.extract_strided_slice %160 {offsets = [1, 0, 0], sizes = [10, 1, 128], strides = [1, 1, 1]} : vector<12x1x128xf32> to vector<10x1x128xf32>
    %171 = vector.broadcast %169 : vector<1x8x1xf32> to vector<10x8x128xf32>
    %172 = vector.broadcast %170 : vector<10x1x128xf32> to vector<10x8x128xf32>
    %173 = arith.mulf %171, %172 : vector<10x8x128xf32>
    %174 = arith.addf %167, %173 : vector<10x8x128xf32>
    %c24 = arith.constant 24 : index
    %c0_67 = arith.constant 0 : index
    %c0_68 = arith.constant 0 : index
    %c0_69 = arith.constant 0 : index
    %175 = vector.load %arg4[%c24, %c0_67, %c0_68, %c0_69] : memref<27x1x8x1xf32, #tpu.memory_space<vmem>>, vector<1x1x8x1xf32>
    %176 = vector.shape_cast %175 : vector<1x1x8x1xf32> to vector<1x8x1xf32>
    %177 = vector.extract_strided_slice %160 {offsets = [2, 0, 0], sizes = [10, 1, 128], strides = [1, 1, 1]} : vector<12x1x128xf32> to vector<10x1x128xf32>
    %178 = vector.broadcast %176 : vector<1x8x1xf32> to vector<10x8x128xf32>
    %179 = vector.broadcast %177 : vector<10x1x128xf32> to vector<10x8x128xf32>
    %180 = arith.mulf %178, %179 : vector<10x8x128xf32>
    %181 = arith.addf %174, %180 : vector<10x8x128xf32>
    %182 = vector.extract_strided_slice %6 {offsets = [0, 11], sizes = [12, 117], strides = [1, 1]} : vector<12x128xf32> to vector<12x117xf32>
    %183 = vector.extract_strided_slice %6 {offsets = [0, 0], sizes = [12, 11], strides = [1, 1]} : vector<12x128xf32> to vector<12x11xf32>
    %184 = tpu.concatenate %182, %183 in 1 : vector<12x117xf32>, vector<12x11xf32> -> vector<12x128xf32>
    %185 = vector.shape_cast %184 : vector<12x128xf32> to vector<12x1x128xf32>
    %c7 = arith.constant 7 : index
    %c0_70 = arith.constant 0 : index
    %c0_71 = arith.constant 0 : index
    %c0_72 = arith.constant 0 : index
    %186 = vector.load %arg4[%c7, %c0_70, %c0_71, %c0_72] : memref<27x1x8x1xf32, #tpu.memory_space<vmem>>, vector<1x1x8x1xf32>
    %187 = vector.shape_cast %186 : vector<1x1x8x1xf32> to vector<1x8x1xf32>
    %188 = vector.extract_strided_slice %185 {offsets = [0, 0, 0], sizes = [10, 1, 128], strides = [1, 1, 1]} : vector<12x1x128xf32> to vector<10x1x128xf32>
    %189 = vector.broadcast %187 : vector<1x8x1xf32> to vector<10x8x128xf32>
    %190 = vector.broadcast %188 : vector<10x1x128xf32> to vector<10x8x128xf32>
    %191 = arith.mulf %189, %190 : vector<10x8x128xf32>
    %192 = arith.addf %181, %191 : vector<10x8x128xf32>
    %c16 = arith.constant 16 : index
    %c0_73 = arith.constant 0 : index
    %c0_74 = arith.constant 0 : index
    %c0_75 = arith.constant 0 : index
    %193 = vector.load %arg4[%c16, %c0_73, %c0_74, %c0_75] : memref<27x1x8x1xf32, #tpu.memory_space<vmem>>, vector<1x1x8x1xf32>
    %194 = vector.shape_cast %193 : vector<1x1x8x1xf32> to vector<1x8x1xf32>
    %195 = vector.extract_strided_slice %185 {offsets = [1, 0, 0], sizes = [10, 1, 128], strides = [1, 1, 1]} : vector<12x1x128xf32> to vector<10x1x128xf32>
    %196 = vector.broadcast %194 : vector<1x8x1xf32> to vector<10x8x128xf32>
    %197 = vector.broadcast %195 : vector<10x1x128xf32> to vector<10x8x128xf32>
    %198 = arith.mulf %196, %197 : vector<10x8x128xf32>
    %199 = arith.addf %192, %198 : vector<10x8x128xf32>
    %c25 = arith.constant 25 : index
    %c0_76 = arith.constant 0 : index
    %c0_77 = arith.constant 0 : index
    %c0_78 = arith.constant 0 : index
    %200 = vector.load %arg4[%c25, %c0_76, %c0_77, %c0_78] : memref<27x1x8x1xf32, #tpu.memory_space<vmem>>, vector<1x1x8x1xf32>
    %201 = vector.shape_cast %200 : vector<1x1x8x1xf32> to vector<1x8x1xf32>
    %202 = vector.extract_strided_slice %185 {offsets = [2, 0, 0], sizes = [10, 1, 128], strides = [1, 1, 1]} : vector<12x1x128xf32> to vector<10x1x128xf32>
    %203 = vector.broadcast %201 : vector<1x8x1xf32> to vector<10x8x128xf32>
    %204 = vector.broadcast %202 : vector<10x1x128xf32> to vector<10x8x128xf32>
    %205 = arith.mulf %203, %204 : vector<10x8x128xf32>
    %206 = arith.addf %199, %205 : vector<10x8x128xf32>
    %207 = vector.extract_strided_slice %6 {offsets = [0, 12], sizes = [12, 116], strides = [1, 1]} : vector<12x128xf32> to vector<12x116xf32>
    %208 = vector.extract_strided_slice %6 {offsets = [0, 0], sizes = [12, 12], strides = [1, 1]} : vector<12x128xf32> to vector<12x12xf32>
    %209 = tpu.concatenate %207, %208 in 1 : vector<12x116xf32>, vector<12x12xf32> -> vector<12x128xf32>
    %210 = vector.shape_cast %209 : vector<12x128xf32> to vector<12x1x128xf32>
    %c8 = arith.constant 8 : index
    %c0_79 = arith.constant 0 : index
    %c0_80 = arith.constant 0 : index
    %c0_81 = arith.constant 0 : index
    %211 = vector.load %arg4[%c8, %c0_79, %c0_80, %c0_81] : memref<27x1x8x1xf32, #tpu.memory_space<vmem>>, vector<1x1x8x1xf32>
    %212 = vector.shape_cast %211 : vector<1x1x8x1xf32> to vector<1x8x1xf32>
    %213 = vector.extract_strided_slice %210 {offsets = [0, 0, 0], sizes = [10, 1, 128], strides = [1, 1, 1]} : vector<12x1x128xf32> to vector<10x1x128xf32>
    %214 = vector.broadcast %212 : vector<1x8x1xf32> to vector<10x8x128xf32>
    %215 = vector.broadcast %213 : vector<10x1x128xf32> to vector<10x8x128xf32>
    %216 = arith.mulf %214, %215 : vector<10x8x128xf32>
    %217 = arith.addf %206, %216 : vector<10x8x128xf32>
    %c17 = arith.constant 17 : index
    %c0_82 = arith.constant 0 : index
    %c0_83 = arith.constant 0 : index
    %c0_84 = arith.constant 0 : index
    %218 = vector.load %arg4[%c17, %c0_82, %c0_83, %c0_84] : memref<27x1x8x1xf32, #tpu.memory_space<vmem>>, vector<1x1x8x1xf32>
    %219 = vector.shape_cast %218 : vector<1x1x8x1xf32> to vector<1x8x1xf32>
    %220 = vector.extract_strided_slice %210 {offsets = [1, 0, 0], sizes = [10, 1, 128], strides = [1, 1, 1]} : vector<12x1x128xf32> to vector<10x1x128xf32>
    %221 = vector.broadcast %219 : vector<1x8x1xf32> to vector<10x8x128xf32>
    %222 = vector.broadcast %220 : vector<10x1x128xf32> to vector<10x8x128xf32>
    %223 = arith.mulf %221, %222 : vector<10x8x128xf32>
    %224 = arith.addf %217, %223 : vector<10x8x128xf32>
    %c26 = arith.constant 26 : index
    %c0_85 = arith.constant 0 : index
    %c0_86 = arith.constant 0 : index
    %c0_87 = arith.constant 0 : index
    %225 = vector.load %arg4[%c26, %c0_85, %c0_86, %c0_87] : memref<27x1x8x1xf32, #tpu.memory_space<vmem>>, vector<1x1x8x1xf32>
    %226 = vector.shape_cast %225 : vector<1x1x8x1xf32> to vector<1x8x1xf32>
    %227 = vector.extract_strided_slice %210 {offsets = [2, 0, 0], sizes = [10, 1, 128], strides = [1, 1, 1]} : vector<12x1x128xf32> to vector<10x1x128xf32>
    %228 = vector.broadcast %226 : vector<1x8x1xf32> to vector<10x8x128xf32>
    %229 = vector.broadcast %227 : vector<10x1x128xf32> to vector<10x8x128xf32>
    %230 = arith.mulf %228, %229 : vector<10x8x128xf32>
    %231 = arith.addf %224, %230 : vector<10x8x128xf32>
    %c0_88 = arith.constant 0 : index
    %c0_89 = arith.constant 0 : index
    %c0_90 = arith.constant 0 : index
    %232 = vector.load %arg5[%c0_88, %c0_89, %c0_90] : memref<1x8x1xf32, #tpu.memory_space<vmem>>, vector<1x8x1xf32>
    %233 = vector.broadcast %232 : vector<1x8x1xf32> to vector<10x8x128xf32>
    %234 = arith.addf %231, %233 : vector<10x8x128xf32>
    %cst_91 = arith.constant 0.000000e+00 : f32
    %235 = vector.broadcast %cst_91 : f32 to vector<10x8x128xf32>
    %236 = arith.maximumf %234, %235 : vector<10x8x128xf32>
    %237 = vector.broadcast %8 : vector<10x1x128xf32> to vector<10x8x128xf32>
    %238 = arith.mulf %236, %237 : vector<10x8x128xf32>
    %239 = vector.shape_cast %238 : vector<10x8x128xf32> to vector<80x128xf32>
    %240 = vector.extract_strided_slice %239 {offsets = [0, 116], sizes = [80, 12], strides = [1, 1]} : vector<80x128xf32> to vector<80x12xf32>
    %241 = vector.extract_strided_slice %239 {offsets = [0, 0], sizes = [80, 116], strides = [1, 1]} : vector<80x128xf32> to vector<80x116xf32>
    %242 = tpu.concatenate %240, %241 in 1 : vector<80x12xf32>, vector<80x116xf32> -> vector<80x128xf32>
    %243 = vector.extract_strided_slice %239 {offsets = [0, 117], sizes = [80, 11], strides = [1, 1]} : vector<80x128xf32> to vector<80x11xf32>
    %244 = vector.extract_strided_slice %239 {offsets = [0, 0], sizes = [80, 117], strides = [1, 1]} : vector<80x128xf32> to vector<80x117xf32>
    %245 = tpu.concatenate %243, %244 in 1 : vector<80x11xf32>, vector<80x117xf32> -> vector<80x128xf32>
    %246 = vector.extract_strided_slice %239 {offsets = [0, 118], sizes = [80, 10], strides = [1, 1]} : vector<80x128xf32> to vector<80x10xf32>
    %247 = vector.extract_strided_slice %239 {offsets = [0, 0], sizes = [80, 118], strides = [1, 1]} : vector<80x128xf32> to vector<80x118xf32>
    %248 = tpu.concatenate %246, %247 in 1 : vector<80x10xf32>, vector<80x118xf32> -> vector<80x128xf32>
    %249 = vector.extract_strided_slice %239 {offsets = [0, 127], sizes = [80, 1], strides = [1, 1]} : vector<80x128xf32> to vector<80x1xf32>
    %250 = vector.extract_strided_slice %239 {offsets = [0, 0], sizes = [80, 127], strides = [1, 1]} : vector<80x128xf32> to vector<80x127xf32>
    %251 = tpu.concatenate %249, %250 in 1 : vector<80x1xf32>, vector<80x127xf32> -> vector<80x128xf32>
    %252 = vector.extract_strided_slice %239 {offsets = [0, 1], sizes = [80, 127], strides = [1, 1]} : vector<80x128xf32> to vector<80x127xf32>
    %253 = vector.extract_strided_slice %239 {offsets = [0, 0], sizes = [80, 1], strides = [1, 1]} : vector<80x128xf32> to vector<80x1xf32>
    %254 = tpu.concatenate %252, %253 in 1 : vector<80x127xf32>, vector<80x1xf32> -> vector<80x128xf32>
    %255 = vector.extract_strided_slice %239 {offsets = [0, 10], sizes = [80, 118], strides = [1, 1]} : vector<80x128xf32> to vector<80x118xf32>
    %256 = vector.extract_strided_slice %239 {offsets = [0, 0], sizes = [80, 10], strides = [1, 1]} : vector<80x128xf32> to vector<80x10xf32>
    %257 = tpu.concatenate %255, %256 in 1 : vector<80x118xf32>, vector<80x10xf32> -> vector<80x128xf32>
    %258 = vector.extract_strided_slice %239 {offsets = [0, 11], sizes = [80, 117], strides = [1, 1]} : vector<80x128xf32> to vector<80x117xf32>
    %259 = vector.extract_strided_slice %239 {offsets = [0, 0], sizes = [80, 11], strides = [1, 1]} : vector<80x128xf32> to vector<80x11xf32>
    %260 = tpu.concatenate %258, %259 in 1 : vector<80x117xf32>, vector<80x11xf32> -> vector<80x128xf32>
    %261 = vector.extract_strided_slice %239 {offsets = [0, 12], sizes = [80, 116], strides = [1, 1]} : vector<80x128xf32> to vector<80x116xf32>
    %262 = vector.extract_strided_slice %239 {offsets = [0, 0], sizes = [80, 12], strides = [1, 1]} : vector<80x128xf32> to vector<80x12xf32>
    %263 = tpu.concatenate %261, %262 in 1 : vector<80x116xf32>, vector<80x12xf32> -> vector<80x128xf32>
    %c0_92 = arith.constant 0 : index
    %c0_93 = arith.constant 0 : index
    %264 = vector.load %arg6[%c0_92, %c0_93] : memref<16x216xf32, #tpu.memory_space<vmem>>, vector<16x216xf32>
    %c0_94 = arith.constant 0 : index
    %c0_95 = arith.constant 0 : index
    %265 = vector.load %arg7[%c0_94, %c0_95] : memref<16x1xf32, #tpu.memory_space<vmem>>, vector<16x1xf32>
    %cst_96 = arith.constant 0.000000e+00 : f32
    %266 = vector.broadcast %cst_96 : f32 to vector<16x1xf32>
    %267 = vector.extract_strided_slice %242 {offsets = [0, 0], sizes = [8, 128], strides = [1, 1]} : vector<80x128xf32> to vector<8x128xf32>
    %268 = vector.extract_strided_slice %245 {offsets = [0, 0], sizes = [8, 128], strides = [1, 1]} : vector<80x128xf32> to vector<8x128xf32>
    %269 = vector.extract_strided_slice %248 {offsets = [0, 0], sizes = [8, 128], strides = [1, 1]} : vector<80x128xf32> to vector<8x128xf32>
    %270 = vector.extract_strided_slice %251 {offsets = [0, 0], sizes = [8, 128], strides = [1, 1]} : vector<80x128xf32> to vector<8x128xf32>
    %271 = vector.extract_strided_slice %239 {offsets = [0, 0], sizes = [8, 128], strides = [1, 1]} : vector<80x128xf32> to vector<8x128xf32>
    %272 = vector.extract_strided_slice %254 {offsets = [0, 0], sizes = [8, 128], strides = [1, 1]} : vector<80x128xf32> to vector<8x128xf32>
    %273 = vector.extract_strided_slice %257 {offsets = [0, 0], sizes = [8, 128], strides = [1, 1]} : vector<80x128xf32> to vector<8x128xf32>
    %274 = vector.extract_strided_slice %260 {offsets = [0, 0], sizes = [8, 128], strides = [1, 1]} : vector<80x128xf32> to vector<8x128xf32>
    %275 = vector.extract_strided_slice %263 {offsets = [0, 0], sizes = [8, 128], strides = [1, 1]} : vector<80x128xf32> to vector<8x128xf32>
    %276 = vector.extract_strided_slice %242 {offsets = [8, 0], sizes = [8, 128], strides = [1, 1]} : vector<80x128xf32> to vector<8x128xf32>
    %277 = vector.extract_strided_slice %245 {offsets = [8, 0], sizes = [8, 128], strides = [1, 1]} : vector<80x128xf32> to vector<8x128xf32>
    %278 = vector.extract_strided_slice %248 {offsets = [8, 0], sizes = [8, 128], strides = [1, 1]} : vector<80x128xf32> to vector<8x128xf32>
    %279 = vector.extract_strided_slice %251 {offsets = [8, 0], sizes = [8, 128], strides = [1, 1]} : vector<80x128xf32> to vector<8x128xf32>
    %280 = vector.extract_strided_slice %239 {offsets = [8, 0], sizes = [8, 128], strides = [1, 1]} : vector<80x128xf32> to vector<8x128xf32>
    %281 = vector.extract_strided_slice %254 {offsets = [8, 0], sizes = [8, 128], strides = [1, 1]} : vector<80x128xf32> to vector<8x128xf32>
    %282 = vector.extract_strided_slice %257 {offsets = [8, 0], sizes = [8, 128], strides = [1, 1]} : vector<80x128xf32> to vector<8x128xf32>
    %283 = vector.extract_strided_slice %260 {offsets = [8, 0], sizes = [8, 128], strides = [1, 1]} : vector<80x128xf32> to vector<8x128xf32>
    %284 = vector.extract_strided_slice %263 {offsets = [8, 0], sizes = [8, 128], strides = [1, 1]} : vector<80x128xf32> to vector<8x128xf32>
    %285 = vector.extract_strided_slice %242 {offsets = [16, 0], sizes = [8, 128], strides = [1, 1]} : vector<80x128xf32> to vector<8x128xf32>
    %286 = vector.extract_strided_slice %245 {offsets = [16, 0], sizes = [8, 128], strides = [1, 1]} : vector<80x128xf32> to vector<8x128xf32>
    %287 = vector.extract_strided_slice %248 {offsets = [16, 0], sizes = [8, 128], strides = [1, 1]} : vector<80x128xf32> to vector<8x128xf32>
    %288 = vector.extract_strided_slice %251 {offsets = [16, 0], sizes = [8, 128], strides = [1, 1]} : vector<80x128xf32> to vector<8x128xf32>
    %289 = vector.extract_strided_slice %239 {offsets = [16, 0], sizes = [8, 128], strides = [1, 1]} : vector<80x128xf32> to vector<8x128xf32>
    %290 = vector.extract_strided_slice %254 {offsets = [16, 0], sizes = [8, 128], strides = [1, 1]} : vector<80x128xf32> to vector<8x128xf32>
    %291 = vector.extract_strided_slice %257 {offsets = [16, 0], sizes = [8, 128], strides = [1, 1]} : vector<80x128xf32> to vector<8x128xf32>
    %292 = vector.extract_strided_slice %260 {offsets = [16, 0], sizes = [8, 128], strides = [1, 1]} : vector<80x128xf32> to vector<8x128xf32>
    %293 = vector.extract_strided_slice %263 {offsets = [16, 0], sizes = [8, 128], strides = [1, 1]} : vector<80x128xf32> to vector<8x128xf32>
    %294 = tpu.concatenate %267, %268, %269, %270, %271, %272, %273, %274, %275, %276, %277, %278, %279, %280, %281, %282 in 0 : vector<8x128xf32>, vector<8x128xf32>, vector<8x128xf32>, vector<8x128xf32>, vector<8x128xf32>, vector<8x128xf32>, vector<8x128xf32>, vector<8x128xf32>, vector<8x128xf32>, vector<8x128xf32>, vector<8x128xf32>, vector<8x128xf32>, vector<8x128xf32>, vector<8x128xf32>, vector<8x128xf32>, vector<8x128xf32> -> vector<128x128xf32>
    %295 = tpu.concatenate %283, %284, %285, %286, %287, %288, %289, %290, %291, %292, %293 in 0 : vector<8x128xf32>, vector<8x128xf32>, vector<8x128xf32>, vector<8x128xf32>, vector<8x128xf32>, vector<8x128xf32>, vector<8x128xf32>, vector<8x128xf32>, vector<8x128xf32>, vector<8x128xf32>, vector<8x128xf32> -> vector<88x128xf32>
    %296 = tpu.concatenate %294, %295 in 0 : vector<128x128xf32>, vector<88x128xf32> -> vector<216x128xf32>
    %cst_97 = arith.constant dense<0.000000e+00> : vector<16x128xf32>
    %297 = tpu.matmul %264, %296, %cst_97 {dimension_numbers = #tpu.dot_dimension_numbers<[1], [0], [0], [1], [0, 0, 1, 1], [], []>} : vector<16x216xf32>, vector<216x128xf32>, vector<16x128xf32> -> vector<16x128xf32>
    %298 = vector.broadcast %265 : vector<16x1xf32> to vector<16x128xf32>
    %299 = arith.addf %297, %298 : vector<16x128xf32>
    %cst_98 = arith.constant 0.000000e+00 : f32
    %300 = vector.broadcast %cst_98 : f32 to vector<16x128xf32>
    %301 = arith.maximumf %299, %300 : vector<16x128xf32>
    %302 = vector.extract_strided_slice %8 {offsets = [1, 0, 0], sizes = [1, 1, 128], strides = [1, 1, 1]} : vector<10x1x128xf32> to vector<1x1x128xf32>
    %303 = vector.shape_cast %302 : vector<1x1x128xf32> to vector<1x128xf32>
    %304 = vector.broadcast %303 : vector<1x128xf32> to vector<16x128xf32>
    %305 = arith.mulf %301, %304 : vector<16x128xf32>
    %cst_99 = arith.constant dense<0.000000e+00> : vector<16xf32>
    %306 = vector.multi_reduction <add>, %305, %cst_99 [1] : vector<16x128xf32> to vector<16xf32>
    %307 = vector.shape_cast %306 : vector<16xf32> to vector<16x1xf32>
    %308 = arith.addf %266, %307 : vector<16x1xf32>
    %309 = vector.extract_strided_slice %242 {offsets = [8, 0], sizes = [8, 128], strides = [1, 1]} : vector<80x128xf32> to vector<8x128xf32>
    %310 = vector.extract_strided_slice %245 {offsets = [8, 0], sizes = [8, 128], strides = [1, 1]} : vector<80x128xf32> to vector<8x128xf32>
    %311 = vector.extract_strided_slice %248 {offsets = [8, 0], sizes = [8, 128], strides = [1, 1]} : vector<80x128xf32> to vector<8x128xf32>
    %312 = vector.extract_strided_slice %251 {offsets = [8, 0], sizes = [8, 128], strides = [1, 1]} : vector<80x128xf32> to vector<8x128xf32>
    %313 = vector.extract_strided_slice %239 {offsets = [8, 0], sizes = [8, 128], strides = [1, 1]} : vector<80x128xf32> to vector<8x128xf32>
    %314 = vector.extract_strided_slice %254 {offsets = [8, 0], sizes = [8, 128], strides = [1, 1]} : vector<80x128xf32> to vector<8x128xf32>
    %315 = vector.extract_strided_slice %257 {offsets = [8, 0], sizes = [8, 128], strides = [1, 1]} : vector<80x128xf32> to vector<8x128xf32>
    %316 = vector.extract_strided_slice %260 {offsets = [8, 0], sizes = [8, 128], strides = [1, 1]} : vector<80x128xf32> to vector<8x128xf32>
    %317 = vector.extract_strided_slice %263 {offsets = [8, 0], sizes = [8, 128], strides = [1, 1]} : vector<80x128xf32> to vector<8x128xf32>
    %318 = vector.extract_strided_slice %242 {offsets = [16, 0], sizes = [8, 128], strides = [1, 1]} : vector<80x128xf32> to vector<8x128xf32>
    %319 = vector.extract_strided_slice %245 {offsets = [16, 0], sizes = [8, 128], strides = [1, 1]} : vector<80x128xf32> to vector<8x128xf32>
    %320 = vector.extract_strided_slice %248 {offsets = [16, 0], sizes = [8, 128], strides = [1, 1]} : vector<80x128xf32> to vector<8x128xf32>
    %321 = vector.extract_strided_slice %251 {offsets = [16, 0], sizes = [8, 128], strides = [1, 1]} : vector<80x128xf32> to vector<8x128xf32>
    %322 = vector.extract_strided_slice %239 {offsets = [16, 0], sizes = [8, 128], strides = [1, 1]} : vector<80x128xf32> to vector<8x128xf32>
    %323 = vector.extract_strided_slice %254 {offsets = [16, 0], sizes = [8, 128], strides = [1, 1]} : vector<80x128xf32> to vector<8x128xf32>
    %324 = vector.extract_strided_slice %257 {offsets = [16, 0], sizes = [8, 128], strides = [1, 1]} : vector<80x128xf32> to vector<8x128xf32>
    %325 = vector.extract_strided_slice %260 {offsets = [16, 0], sizes = [8, 128], strides = [1, 1]} : vector<80x128xf32> to vector<8x128xf32>
    %326 = vector.extract_strided_slice %263 {offsets = [16, 0], sizes = [8, 128], strides = [1, 1]} : vector<80x128xf32> to vector<8x128xf32>
    %327 = vector.extract_strided_slice %242 {offsets = [24, 0], sizes = [8, 128], strides = [1, 1]} : vector<80x128xf32> to vector<8x128xf32>
    %328 = vector.extract_strided_slice %245 {offsets = [24, 0], sizes = [8, 128], strides = [1, 1]} : vector<80x128xf32> to vector<8x128xf32>
    %329 = vector.extract_strided_slice %248 {offsets = [24, 0], sizes = [8, 128], strides = [1, 1]} : vector<80x128xf32> to vector<8x128xf32>
    %330 = vector.extract_strided_slice %251 {offsets = [24, 0], sizes = [8, 128], strides = [1, 1]} : vector<80x128xf32> to vector<8x128xf32>
    %331 = vector.extract_strided_slice %239 {offsets = [24, 0], sizes = [8, 128], strides = [1, 1]} : vector<80x128xf32> to vector<8x128xf32>
    %332 = vector.extract_strided_slice %254 {offsets = [24, 0], sizes = [8, 128], strides = [1, 1]} : vector<80x128xf32> to vector<8x128xf32>
    %333 = vector.extract_strided_slice %257 {offsets = [24, 0], sizes = [8, 128], strides = [1, 1]} : vector<80x128xf32> to vector<8x128xf32>
    %334 = vector.extract_strided_slice %260 {offsets = [24, 0], sizes = [8, 128], strides = [1, 1]} : vector<80x128xf32> to vector<8x128xf32>
    %335 = vector.extract_strided_slice %263 {offsets = [24, 0], sizes = [8, 128], strides = [1, 1]} : vector<80x128xf32> to vector<8x128xf32>
    %336 = tpu.concatenate %309, %310, %311, %312, %313, %314, %315, %316, %317, %318, %319, %320, %321, %322, %323, %324 in 0 : vector<8x128xf32>, vector<8x128xf32>, vector<8x128xf32>, vector<8x128xf32>, vector<8x128xf32>, vector<8x128xf32>, vector<8x128xf32>, vector<8x128xf32>, vector<8x128xf32>, vector<8x128xf32>, vector<8x128xf32>, vector<8x128xf32>, vector<8x128xf32>, vector<8x128xf32>, vector<8x128xf32>, vector<8x128xf32> -> vector<128x128xf32>
    %337 = tpu.concatenate %325, %326, %327, %328, %329, %330, %331, %332, %333, %334, %335 in 0 : vector<8x128xf32>, vector<8x128xf32>, vector<8x128xf32>, vector<8x128xf32>, vector<8x128xf32>, vector<8x128xf32>, vector<8x128xf32>, vector<8x128xf32>, vector<8x128xf32>, vector<8x128xf32>, vector<8x128xf32> -> vector<88x128xf32>
    %338 = tpu.concatenate %336, %337 in 0 : vector<128x128xf32>, vector<88x128xf32> -> vector<216x128xf32>
    %cst_100 = arith.constant dense<0.000000e+00> : vector<16x128xf32>
    %339 = tpu.matmul %264, %338, %cst_100 {dimension_numbers = #tpu.dot_dimension_numbers<[1], [0], [0], [1], [0, 0, 1, 1], [], []>} : vector<16x216xf32>, vector<216x128xf32>, vector<16x128xf32> -> vector<16x128xf32>
    %340 = vector.broadcast %265 : vector<16x1xf32> to vector<16x128xf32>
    %341 = arith.addf %339, %340 : vector<16x128xf32>
    %cst_101 = arith.constant 0.000000e+00 : f32
    %342 = vector.broadcast %cst_101 : f32 to vector<16x128xf32>
    %343 = arith.maximumf %341, %342 : vector<16x128xf32>
    %344 = vector.extract_strided_slice %8 {offsets = [2, 0, 0], sizes = [1, 1, 128], strides = [1, 1, 1]} : vector<10x1x128xf32> to vector<1x1x128xf32>
    %345 = vector.shape_cast %344 : vector<1x1x128xf32> to vector<1x128xf32>
    %346 = vector.broadcast %345 : vector<1x128xf32> to vector<16x128xf32>
    %347 = arith.mulf %343, %346 : vector<16x128xf32>
    %cst_102 = arith.constant dense<0.000000e+00> : vector<16xf32>
    %348 = vector.multi_reduction <add>, %347, %cst_102 [1] : vector<16x128xf32> to vector<16xf32>
    %349 = vector.shape_cast %348 : vector<16xf32> to vector<16x1xf32>
    %350 = arith.addf %308, %349 : vector<16x1xf32>
    %351 = vector.extract_strided_slice %242 {offsets = [16, 0], sizes = [8, 128], strides = [1, 1]} : vector<80x128xf32> to vector<8x128xf32>
    %352 = vector.extract_strided_slice %245 {offsets = [16, 0], sizes = [8, 128], strides = [1, 1]} : vector<80x128xf32> to vector<8x128xf32>
    %353 = vector.extract_strided_slice %248 {offsets = [16, 0], sizes = [8, 128], strides = [1, 1]} : vector<80x128xf32> to vector<8x128xf32>
    %354 = vector.extract_strided_slice %251 {offsets = [16, 0], sizes = [8, 128], strides = [1, 1]} : vector<80x128xf32> to vector<8x128xf32>
    %355 = vector.extract_strided_slice %239 {offsets = [16, 0], sizes = [8, 128], strides = [1, 1]} : vector<80x128xf32> to vector<8x128xf32>
    %356 = vector.extract_strided_slice %254 {offsets = [16, 0], sizes = [8, 128], strides = [1, 1]} : vector<80x128xf32> to vector<8x128xf32>
    %357 = vector.extract_strided_slice %257 {offsets = [16, 0], sizes = [8, 128], strides = [1, 1]} : vector<80x128xf32> to vector<8x128xf32>
    %358 = vector.extract_strided_slice %260 {offsets = [16, 0], sizes = [8, 128], strides = [1, 1]} : vector<80x128xf32> to vector<8x128xf32>
    %359 = vector.extract_strided_slice %263 {offsets = [16, 0], sizes = [8, 128], strides = [1, 1]} : vector<80x128xf32> to vector<8x128xf32>
    %360 = vector.extract_strided_slice %242 {offsets = [24, 0], sizes = [8, 128], strides = [1, 1]} : vector<80x128xf32> to vector<8x128xf32>
    %361 = vector.extract_strided_slice %245 {offsets = [24, 0], sizes = [8, 128], strides = [1, 1]} : vector<80x128xf32> to vector<8x128xf32>
    %362 = vector.extract_strided_slice %248 {offsets = [24, 0], sizes = [8, 128], strides = [1, 1]} : vector<80x128xf32> to vector<8x128xf32>
    %363 = vector.extract_strided_slice %251 {offsets = [24, 0], sizes = [8, 128], strides = [1, 1]} : vector<80x128xf32> to vector<8x128xf32>
    %364 = vector.extract_strided_slice %239 {offsets = [24, 0], sizes = [8, 128], strides = [1, 1]} : vector<80x128xf32> to vector<8x128xf32>
    %365 = vector.extract_strided_slice %254 {offsets = [24, 0], sizes = [8, 128], strides = [1, 1]} : vector<80x128xf32> to vector<8x128xf32>
    %366 = vector.extract_strided_slice %257 {offsets = [24, 0], sizes = [8, 128], strides = [1, 1]} : vector<80x128xf32> to vector<8x128xf32>
    %367 = vector.extract_strided_slice %260 {offsets = [24, 0], sizes = [8, 128], strides = [1, 1]} : vector<80x128xf32> to vector<8x128xf32>
    %368 = vector.extract_strided_slice %263 {offsets = [24, 0], sizes = [8, 128], strides = [1, 1]} : vector<80x128xf32> to vector<8x128xf32>
    %369 = vector.extract_strided_slice %242 {offsets = [32, 0], sizes = [8, 128], strides = [1, 1]} : vector<80x128xf32> to vector<8x128xf32>
    %370 = vector.extract_strided_slice %245 {offsets = [32, 0], sizes = [8, 128], strides = [1, 1]} : vector<80x128xf32> to vector<8x128xf32>
    %371 = vector.extract_strided_slice %248 {offsets = [32, 0], sizes = [8, 128], strides = [1, 1]} : vector<80x128xf32> to vector<8x128xf32>
    %372 = vector.extract_strided_slice %251 {offsets = [32, 0], sizes = [8, 128], strides = [1, 1]} : vector<80x128xf32> to vector<8x128xf32>
    %373 = vector.extract_strided_slice %239 {offsets = [32, 0], sizes = [8, 128], strides = [1, 1]} : vector<80x128xf32> to vector<8x128xf32>
    %374 = vector.extract_strided_slice %254 {offsets = [32, 0], sizes = [8, 128], strides = [1, 1]} : vector<80x128xf32> to vector<8x128xf32>
    %375 = vector.extract_strided_slice %257 {offsets = [32, 0], sizes = [8, 128], strides = [1, 1]} : vector<80x128xf32> to vector<8x128xf32>
    %376 = vector.extract_strided_slice %260 {offsets = [32, 0], sizes = [8, 128], strides = [1, 1]} : vector<80x128xf32> to vector<8x128xf32>
    %377 = vector.extract_strided_slice %263 {offsets = [32, 0], sizes = [8, 128], strides = [1, 1]} : vector<80x128xf32> to vector<8x128xf32>
    %378 = tpu.concatenate %351, %352, %353, %354, %355, %356, %357, %358, %359, %360, %361, %362, %363, %364, %365, %366 in 0 : vector<8x128xf32>, vector<8x128xf32>, vector<8x128xf32>, vector<8x128xf32>, vector<8x128xf32>, vector<8x128xf32>, vector<8x128xf32>, vector<8x128xf32>, vector<8x128xf32>, vector<8x128xf32>, vector<8x128xf32>, vector<8x128xf32>, vector<8x128xf32>, vector<8x128xf32>, vector<8x128xf32>, vector<8x128xf32> -> vector<128x128xf32>
    %379 = tpu.concatenate %367, %368, %369, %370, %371, %372, %373, %374, %375, %376, %377 in 0 : vector<8x128xf32>, vector<8x128xf32>, vector<8x128xf32>, vector<8x128xf32>, vector<8x128xf32>, vector<8x128xf32>, vector<8x128xf32>, vector<8x128xf32>, vector<8x128xf32>, vector<8x128xf32>, vector<8x128xf32> -> vector<88x128xf32>
    %380 = tpu.concatenate %378, %379 in 0 : vector<128x128xf32>, vector<88x128xf32> -> vector<216x128xf32>
    %cst_103 = arith.constant dense<0.000000e+00> : vector<16x128xf32>
    %381 = tpu.matmul %264, %380, %cst_103 {dimension_numbers = #tpu.dot_dimension_numbers<[1], [0], [0], [1], [0, 0, 1, 1], [], []>} : vector<16x216xf32>, vector<216x128xf32>, vector<16x128xf32> -> vector<16x128xf32>
    %382 = vector.broadcast %265 : vector<16x1xf32> to vector<16x128xf32>
    %383 = arith.addf %381, %382 : vector<16x128xf32>
    %cst_104 = arith.constant 0.000000e+00 : f32
    %384 = vector.broadcast %cst_104 : f32 to vector<16x128xf32>
    %385 = arith.maximumf %383, %384 : vector<16x128xf32>
    %386 = vector.extract_strided_slice %8 {offsets = [3, 0, 0], sizes = [1, 1, 128], strides = [1, 1, 1]} : vector<10x1x128xf32> to vector<1x1x128xf32>
    %387 = vector.shape_cast %386 : vector<1x1x128xf32> to vector<1x128xf32>
    %388 = vector.broadcast %387 : vector<1x128xf32> to vector<16x128xf32>
    %389 = arith.mulf %385, %388 : vector<16x128xf32>
    %cst_105 = arith.constant dense<0.000000e+00> : vector<16xf32>
    %390 = vector.multi_reduction <add>, %389, %cst_105 [1] : vector<16x128xf32> to vector<16xf32>
    %391 = vector.shape_cast %390 : vector<16xf32> to vector<16x1xf32>
    %392 = arith.addf %350, %391 : vector<16x1xf32>
    %393 = vector.extract_strided_slice %242 {offsets = [24, 0], sizes = [8, 128], strides = [1, 1]} : vector<80x128xf32> to vector<8x128xf32>
    %394 = vector.extract_strided_slice %245 {offsets = [24, 0], sizes = [8, 128], strides = [1, 1]} : vector<80x128xf32> to vector<8x128xf32>
    %395 = vector.extract_strided_slice %248 {offsets = [24, 0], sizes = [8, 128], strides = [1, 1]} : vector<80x128xf32> to vector<8x128xf32>
    %396 = vector.extract_strided_slice %251 {offsets = [24, 0], sizes = [8, 128], strides = [1, 1]} : vector<80x128xf32> to vector<8x128xf32>
    %397 = vector.extract_strided_slice %239 {offsets = [24, 0], sizes = [8, 128], strides = [1, 1]} : vector<80x128xf32> to vector<8x128xf32>
    %398 = vector.extract_strided_slice %254 {offsets = [24, 0], sizes = [8, 128], strides = [1, 1]} : vector<80x128xf32> to vector<8x128xf32>
    %399 = vector.extract_strided_slice %257 {offsets = [24, 0], sizes = [8, 128], strides = [1, 1]} : vector<80x128xf32> to vector<8x128xf32>
    %400 = vector.extract_strided_slice %260 {offsets = [24, 0], sizes = [8, 128], strides = [1, 1]} : vector<80x128xf32> to vector<8x128xf32>
    %401 = vector.extract_strided_slice %263 {offsets = [24, 0], sizes = [8, 128], strides = [1, 1]} : vector<80x128xf32> to vector<8x128xf32>
    %402 = vector.extract_strided_slice %242 {offsets = [32, 0], sizes = [8, 128], strides = [1, 1]} : vector<80x128xf32> to vector<8x128xf32>
    %403 = vector.extract_strided_slice %245 {offsets = [32, 0], sizes = [8, 128], strides = [1, 1]} : vector<80x128xf32> to vector<8x128xf32>
    %404 = vector.extract_strided_slice %248 {offsets = [32, 0], sizes = [8, 128], strides = [1, 1]} : vector<80x128xf32> to vector<8x128xf32>
    %405 = vector.extract_strided_slice %251 {offsets = [32, 0], sizes = [8, 128], strides = [1, 1]} : vector<80x128xf32> to vector<8x128xf32>
    %406 = vector.extract_strided_slice %239 {offsets = [32, 0], sizes = [8, 128], strides = [1, 1]} : vector<80x128xf32> to vector<8x128xf32>
    %407 = vector.extract_strided_slice %254 {offsets = [32, 0], sizes = [8, 128], strides = [1, 1]} : vector<80x128xf32> to vector<8x128xf32>
    %408 = vector.extract_strided_slice %257 {offsets = [32, 0], sizes = [8, 128], strides = [1, 1]} : vector<80x128xf32> to vector<8x128xf32>
    %409 = vector.extract_strided_slice %260 {offsets = [32, 0], sizes = [8, 128], strides = [1, 1]} : vector<80x128xf32> to vector<8x128xf32>
    %410 = vector.extract_strided_slice %263 {offsets = [32, 0], sizes = [8, 128], strides = [1, 1]} : vector<80x128xf32> to vector<8x128xf32>
    %411 = vector.extract_strided_slice %242 {offsets = [40, 0], sizes = [8, 128], strides = [1, 1]} : vector<80x128xf32> to vector<8x128xf32>
    %412 = vector.extract_strided_slice %245 {offsets = [40, 0], sizes = [8, 128], strides = [1, 1]} : vector<80x128xf32> to vector<8x128xf32>
    %413 = vector.extract_strided_slice %248 {offsets = [40, 0], sizes = [8, 128], strides = [1, 1]} : vector<80x128xf32> to vector<8x128xf32>
    %414 = vector.extract_strided_slice %251 {offsets = [40, 0], sizes = [8, 128], strides = [1, 1]} : vector<80x128xf32> to vector<8x128xf32>
    %415 = vector.extract_strided_slice %239 {offsets = [40, 0], sizes = [8, 128], strides = [1, 1]} : vector<80x128xf32> to vector<8x128xf32>
    %416 = vector.extract_strided_slice %254 {offsets = [40, 0], sizes = [8, 128], strides = [1, 1]} : vector<80x128xf32> to vector<8x128xf32>
    %417 = vector.extract_strided_slice %257 {offsets = [40, 0], sizes = [8, 128], strides = [1, 1]} : vector<80x128xf32> to vector<8x128xf32>
    %418 = vector.extract_strided_slice %260 {offsets = [40, 0], sizes = [8, 128], strides = [1, 1]} : vector<80x128xf32> to vector<8x128xf32>
    %419 = vector.extract_strided_slice %263 {offsets = [40, 0], sizes = [8, 128], strides = [1, 1]} : vector<80x128xf32> to vector<8x128xf32>
    %420 = tpu.concatenate %393, %394, %395, %396, %397, %398, %399, %400, %401, %402, %403, %404, %405, %406, %407, %408 in 0 : vector<8x128xf32>, vector<8x128xf32>, vector<8x128xf32>, vector<8x128xf32>, vector<8x128xf32>, vector<8x128xf32>, vector<8x128xf32>, vector<8x128xf32>, vector<8x128xf32>, vector<8x128xf32>, vector<8x128xf32>, vector<8x128xf32>, vector<8x128xf32>, vector<8x128xf32>, vector<8x128xf32>, vector<8x128xf32> -> vector<128x128xf32>
    %421 = tpu.concatenate %409, %410, %411, %412, %413, %414, %415, %416, %417, %418, %419 in 0 : vector<8x128xf32>, vector<8x128xf32>, vector<8x128xf32>, vector<8x128xf32>, vector<8x128xf32>, vector<8x128xf32>, vector<8x128xf32>, vector<8x128xf32>, vector<8x128xf32>, vector<8x128xf32>, vector<8x128xf32> -> vector<88x128xf32>
    %422 = tpu.concatenate %420, %421 in 0 : vector<128x128xf32>, vector<88x128xf32> -> vector<216x128xf32>
    %cst_106 = arith.constant dense<0.000000e+00> : vector<16x128xf32>
    %423 = tpu.matmul %264, %422, %cst_106 {dimension_numbers = #tpu.dot_dimension_numbers<[1], [0], [0], [1], [0, 0, 1, 1], [], []>} : vector<16x216xf32>, vector<216x128xf32>, vector<16x128xf32> -> vector<16x128xf32>
    %424 = vector.broadcast %265 : vector<16x1xf32> to vector<16x128xf32>
    %425 = arith.addf %423, %424 : vector<16x128xf32>
    %cst_107 = arith.constant 0.000000e+00 : f32
    %426 = vector.broadcast %cst_107 : f32 to vector<16x128xf32>
    %427 = arith.maximumf %425, %426 : vector<16x128xf32>
    %428 = vector.extract_strided_slice %8 {offsets = [4, 0, 0], sizes = [1, 1, 128], strides = [1, 1, 1]} : vector<10x1x128xf32> to vector<1x1x128xf32>
    %429 = vector.shape_cast %428 : vector<1x1x128xf32> to vector<1x128xf32>
    %430 = vector.broadcast %429 : vector<1x128xf32> to vector<16x128xf32>
    %431 = arith.mulf %427, %430 : vector<16x128xf32>
    %cst_108 = arith.constant dense<0.000000e+00> : vector<16xf32>
    %432 = vector.multi_reduction <add>, %431, %cst_108 [1] : vector<16x128xf32> to vector<16xf32>
    %433 = vector.shape_cast %432 : vector<16xf32> to vector<16x1xf32>
    %434 = arith.addf %392, %433 : vector<16x1xf32>
    %435 = vector.extract_strided_slice %242 {offsets = [32, 0], sizes = [8, 128], strides = [1, 1]} : vector<80x128xf32> to vector<8x128xf32>
    %436 = vector.extract_strided_slice %245 {offsets = [32, 0], sizes = [8, 128], strides = [1, 1]} : vector<80x128xf32> to vector<8x128xf32>
    %437 = vector.extract_strided_slice %248 {offsets = [32, 0], sizes = [8, 128], strides = [1, 1]} : vector<80x128xf32> to vector<8x128xf32>
    %438 = vector.extract_strided_slice %251 {offsets = [32, 0], sizes = [8, 128], strides = [1, 1]} : vector<80x128xf32> to vector<8x128xf32>
    %439 = vector.extract_strided_slice %239 {offsets = [32, 0], sizes = [8, 128], strides = [1, 1]} : vector<80x128xf32> to vector<8x128xf32>
    %440 = vector.extract_strided_slice %254 {offsets = [32, 0], sizes = [8, 128], strides = [1, 1]} : vector<80x128xf32> to vector<8x128xf32>
    %441 = vector.extract_strided_slice %257 {offsets = [32, 0], sizes = [8, 128], strides = [1, 1]} : vector<80x128xf32> to vector<8x128xf32>
    %442 = vector.extract_strided_slice %260 {offsets = [32, 0], sizes = [8, 128], strides = [1, 1]} : vector<80x128xf32> to vector<8x128xf32>
    %443 = vector.extract_strided_slice %263 {offsets = [32, 0], sizes = [8, 128], strides = [1, 1]} : vector<80x128xf32> to vector<8x128xf32>
    %444 = vector.extract_strided_slice %242 {offsets = [40, 0], sizes = [8, 128], strides = [1, 1]} : vector<80x128xf32> to vector<8x128xf32>
    %445 = vector.extract_strided_slice %245 {offsets = [40, 0], sizes = [8, 128], strides = [1, 1]} : vector<80x128xf32> to vector<8x128xf32>
    %446 = vector.extract_strided_slice %248 {offsets = [40, 0], sizes = [8, 128], strides = [1, 1]} : vector<80x128xf32> to vector<8x128xf32>
    %447 = vector.extract_strided_slice %251 {offsets = [40, 0], sizes = [8, 128], strides = [1, 1]} : vector<80x128xf32> to vector<8x128xf32>
    %448 = vector.extract_strided_slice %239 {offsets = [40, 0], sizes = [8, 128], strides = [1, 1]} : vector<80x128xf32> to vector<8x128xf32>
    %449 = vector.extract_strided_slice %254 {offsets = [40, 0], sizes = [8, 128], strides = [1, 1]} : vector<80x128xf32> to vector<8x128xf32>
    %450 = vector.extract_strided_slice %257 {offsets = [40, 0], sizes = [8, 128], strides = [1, 1]} : vector<80x128xf32> to vector<8x128xf32>
    %451 = vector.extract_strided_slice %260 {offsets = [40, 0], sizes = [8, 128], strides = [1, 1]} : vector<80x128xf32> to vector<8x128xf32>
    %452 = vector.extract_strided_slice %263 {offsets = [40, 0], sizes = [8, 128], strides = [1, 1]} : vector<80x128xf32> to vector<8x128xf32>
    %453 = vector.extract_strided_slice %242 {offsets = [48, 0], sizes = [8, 128], strides = [1, 1]} : vector<80x128xf32> to vector<8x128xf32>
    %454 = vector.extract_strided_slice %245 {offsets = [48, 0], sizes = [8, 128], strides = [1, 1]} : vector<80x128xf32> to vector<8x128xf32>
    %455 = vector.extract_strided_slice %248 {offsets = [48, 0], sizes = [8, 128], strides = [1, 1]} : vector<80x128xf32> to vector<8x128xf32>
    %456 = vector.extract_strided_slice %251 {offsets = [48, 0], sizes = [8, 128], strides = [1, 1]} : vector<80x128xf32> to vector<8x128xf32>
    %457 = vector.extract_strided_slice %239 {offsets = [48, 0], sizes = [8, 128], strides = [1, 1]} : vector<80x128xf32> to vector<8x128xf32>
    %458 = vector.extract_strided_slice %254 {offsets = [48, 0], sizes = [8, 128], strides = [1, 1]} : vector<80x128xf32> to vector<8x128xf32>
    %459 = vector.extract_strided_slice %257 {offsets = [48, 0], sizes = [8, 128], strides = [1, 1]} : vector<80x128xf32> to vector<8x128xf32>
    %460 = vector.extract_strided_slice %260 {offsets = [48, 0], sizes = [8, 128], strides = [1, 1]} : vector<80x128xf32> to vector<8x128xf32>
    %461 = vector.extract_strided_slice %263 {offsets = [48, 0], sizes = [8, 128], strides = [1, 1]} : vector<80x128xf32> to vector<8x128xf32>
    %462 = tpu.concatenate %435, %436, %437, %438, %439, %440, %441, %442, %443, %444, %445, %446, %447, %448, %449, %450 in 0 : vector<8x128xf32>, vector<8x128xf32>, vector<8x128xf32>, vector<8x128xf32>, vector<8x128xf32>, vector<8x128xf32>, vector<8x128xf32>, vector<8x128xf32>, vector<8x128xf32>, vector<8x128xf32>, vector<8x128xf32>, vector<8x128xf32>, vector<8x128xf32>, vector<8x128xf32>, vector<8x128xf32>, vector<8x128xf32> -> vector<128x128xf32>
    %463 = tpu.concatenate %451, %452, %453, %454, %455, %456, %457, %458, %459, %460, %461 in 0 : vector<8x128xf32>, vector<8x128xf32>, vector<8x128xf32>, vector<8x128xf32>, vector<8x128xf32>, vector<8x128xf32>, vector<8x128xf32>, vector<8x128xf32>, vector<8x128xf32>, vector<8x128xf32>, vector<8x128xf32> -> vector<88x128xf32>
    %464 = tpu.concatenate %462, %463 in 0 : vector<128x128xf32>, vector<88x128xf32> -> vector<216x128xf32>
    %cst_109 = arith.constant dense<0.000000e+00> : vector<16x128xf32>
    %465 = tpu.matmul %264, %464, %cst_109 {dimension_numbers = #tpu.dot_dimension_numbers<[1], [0], [0], [1], [0, 0, 1, 1], [], []>} : vector<16x216xf32>, vector<216x128xf32>, vector<16x128xf32> -> vector<16x128xf32>
    %466 = vector.broadcast %265 : vector<16x1xf32> to vector<16x128xf32>
    %467 = arith.addf %465, %466 : vector<16x128xf32>
    %cst_110 = arith.constant 0.000000e+00 : f32
    %468 = vector.broadcast %cst_110 : f32 to vector<16x128xf32>
    %469 = arith.maximumf %467, %468 : vector<16x128xf32>
    %470 = vector.extract_strided_slice %8 {offsets = [5, 0, 0], sizes = [1, 1, 128], strides = [1, 1, 1]} : vector<10x1x128xf32> to vector<1x1x128xf32>
    %471 = vector.shape_cast %470 : vector<1x1x128xf32> to vector<1x128xf32>
    %472 = vector.broadcast %471 : vector<1x128xf32> to vector<16x128xf32>
    %473 = arith.mulf %469, %472 : vector<16x128xf32>
    %cst_111 = arith.constant dense<0.000000e+00> : vector<16xf32>
    %474 = vector.multi_reduction <add>, %473, %cst_111 [1] : vector<16x128xf32> to vector<16xf32>
    %475 = vector.shape_cast %474 : vector<16xf32> to vector<16x1xf32>
    %476 = arith.addf %434, %475 : vector<16x1xf32>
    %477 = vector.extract_strided_slice %242 {offsets = [40, 0], sizes = [8, 128], strides = [1, 1]} : vector<80x128xf32> to vector<8x128xf32>
    %478 = vector.extract_strided_slice %245 {offsets = [40, 0], sizes = [8, 128], strides = [1, 1]} : vector<80x128xf32> to vector<8x128xf32>
    %479 = vector.extract_strided_slice %248 {offsets = [40, 0], sizes = [8, 128], strides = [1, 1]} : vector<80x128xf32> to vector<8x128xf32>
    %480 = vector.extract_strided_slice %251 {offsets = [40, 0], sizes = [8, 128], strides = [1, 1]} : vector<80x128xf32> to vector<8x128xf32>
    %481 = vector.extract_strided_slice %239 {offsets = [40, 0], sizes = [8, 128], strides = [1, 1]} : vector<80x128xf32> to vector<8x128xf32>
    %482 = vector.extract_strided_slice %254 {offsets = [40, 0], sizes = [8, 128], strides = [1, 1]} : vector<80x128xf32> to vector<8x128xf32>
    %483 = vector.extract_strided_slice %257 {offsets = [40, 0], sizes = [8, 128], strides = [1, 1]} : vector<80x128xf32> to vector<8x128xf32>
    %484 = vector.extract_strided_slice %260 {offsets = [40, 0], sizes = [8, 128], strides = [1, 1]} : vector<80x128xf32> to vector<8x128xf32>
    %485 = vector.extract_strided_slice %263 {offsets = [40, 0], sizes = [8, 128], strides = [1, 1]} : vector<80x128xf32> to vector<8x128xf32>
    %486 = vector.extract_strided_slice %242 {offsets = [48, 0], sizes = [8, 128], strides = [1, 1]} : vector<80x128xf32> to vector<8x128xf32>
    %487 = vector.extract_strided_slice %245 {offsets = [48, 0], sizes = [8, 128], strides = [1, 1]} : vector<80x128xf32> to vector<8x128xf32>
    %488 = vector.extract_strided_slice %248 {offsets = [48, 0], sizes = [8, 128], strides = [1, 1]} : vector<80x128xf32> to vector<8x128xf32>
    %489 = vector.extract_strided_slice %251 {offsets = [48, 0], sizes = [8, 128], strides = [1, 1]} : vector<80x128xf32> to vector<8x128xf32>
    %490 = vector.extract_strided_slice %239 {offsets = [48, 0], sizes = [8, 128], strides = [1, 1]} : vector<80x128xf32> to vector<8x128xf32>
    %491 = vector.extract_strided_slice %254 {offsets = [48, 0], sizes = [8, 128], strides = [1, 1]} : vector<80x128xf32> to vector<8x128xf32>
    %492 = vector.extract_strided_slice %257 {offsets = [48, 0], sizes = [8, 128], strides = [1, 1]} : vector<80x128xf32> to vector<8x128xf32>
    %493 = vector.extract_strided_slice %260 {offsets = [48, 0], sizes = [8, 128], strides = [1, 1]} : vector<80x128xf32> to vector<8x128xf32>
    %494 = vector.extract_strided_slice %263 {offsets = [48, 0], sizes = [8, 128], strides = [1, 1]} : vector<80x128xf32> to vector<8x128xf32>
    %495 = vector.extract_strided_slice %242 {offsets = [56, 0], sizes = [8, 128], strides = [1, 1]} : vector<80x128xf32> to vector<8x128xf32>
    %496 = vector.extract_strided_slice %245 {offsets = [56, 0], sizes = [8, 128], strides = [1, 1]} : vector<80x128xf32> to vector<8x128xf32>
    %497 = vector.extract_strided_slice %248 {offsets = [56, 0], sizes = [8, 128], strides = [1, 1]} : vector<80x128xf32> to vector<8x128xf32>
    %498 = vector.extract_strided_slice %251 {offsets = [56, 0], sizes = [8, 128], strides = [1, 1]} : vector<80x128xf32> to vector<8x128xf32>
    %499 = vector.extract_strided_slice %239 {offsets = [56, 0], sizes = [8, 128], strides = [1, 1]} : vector<80x128xf32> to vector<8x128xf32>
    %500 = vector.extract_strided_slice %254 {offsets = [56, 0], sizes = [8, 128], strides = [1, 1]} : vector<80x128xf32> to vector<8x128xf32>
    %501 = vector.extract_strided_slice %257 {offsets = [56, 0], sizes = [8, 128], strides = [1, 1]} : vector<80x128xf32> to vector<8x128xf32>
    %502 = vector.extract_strided_slice %260 {offsets = [56, 0], sizes = [8, 128], strides = [1, 1]} : vector<80x128xf32> to vector<8x128xf32>
    %503 = vector.extract_strided_slice %263 {offsets = [56, 0], sizes = [8, 128], strides = [1, 1]} : vector<80x128xf32> to vector<8x128xf32>
    %504 = tpu.concatenate %477, %478, %479, %480, %481, %482, %483, %484, %485, %486, %487, %488, %489, %490, %491, %492 in 0 : vector<8x128xf32>, vector<8x128xf32>, vector<8x128xf32>, vector<8x128xf32>, vector<8x128xf32>, vector<8x128xf32>, vector<8x128xf32>, vector<8x128xf32>, vector<8x128xf32>, vector<8x128xf32>, vector<8x128xf32>, vector<8x128xf32>, vector<8x128xf32>, vector<8x128xf32>, vector<8x128xf32>, vector<8x128xf32> -> vector<128x128xf32>
    %505 = tpu.concatenate %493, %494, %495, %496, %497, %498, %499, %500, %501, %502, %503 in 0 : vector<8x128xf32>, vector<8x128xf32>, vector<8x128xf32>, vector<8x128xf32>, vector<8x128xf32>, vector<8x128xf32>, vector<8x128xf32>, vector<8x128xf32>, vector<8x128xf32>, vector<8x128xf32>, vector<8x128xf32> -> vector<88x128xf32>
    %506 = tpu.concatenate %504, %505 in 0 : vector<128x128xf32>, vector<88x128xf32> -> vector<216x128xf32>
    %cst_112 = arith.constant dense<0.000000e+00> : vector<16x128xf32>
    %507 = tpu.matmul %264, %506, %cst_112 {dimension_numbers = #tpu.dot_dimension_numbers<[1], [0], [0], [1], [0, 0, 1, 1], [], []>} : vector<16x216xf32>, vector<216x128xf32>, vector<16x128xf32> -> vector<16x128xf32>
    %508 = vector.broadcast %265 : vector<16x1xf32> to vector<16x128xf32>
    %509 = arith.addf %507, %508 : vector<16x128xf32>
    %cst_113 = arith.constant 0.000000e+00 : f32
    %510 = vector.broadcast %cst_113 : f32 to vector<16x128xf32>
    %511 = arith.maximumf %509, %510 : vector<16x128xf32>
    %512 = vector.extract_strided_slice %8 {offsets = [6, 0, 0], sizes = [1, 1, 128], strides = [1, 1, 1]} : vector<10x1x128xf32> to vector<1x1x128xf32>
    %513 = vector.shape_cast %512 : vector<1x1x128xf32> to vector<1x128xf32>
    %514 = vector.broadcast %513 : vector<1x128xf32> to vector<16x128xf32>
    %515 = arith.mulf %511, %514 : vector<16x128xf32>
    %cst_114 = arith.constant dense<0.000000e+00> : vector<16xf32>
    %516 = vector.multi_reduction <add>, %515, %cst_114 [1] : vector<16x128xf32> to vector<16xf32>
    %517 = vector.shape_cast %516 : vector<16xf32> to vector<16x1xf32>
    %518 = arith.addf %476, %517 : vector<16x1xf32>
    %519 = vector.extract_strided_slice %242 {offsets = [48, 0], sizes = [8, 128], strides = [1, 1]} : vector<80x128xf32> to vector<8x128xf32>
    %520 = vector.extract_strided_slice %245 {offsets = [48, 0], sizes = [8, 128], strides = [1, 1]} : vector<80x128xf32> to vector<8x128xf32>
    %521 = vector.extract_strided_slice %248 {offsets = [48, 0], sizes = [8, 128], strides = [1, 1]} : vector<80x128xf32> to vector<8x128xf32>
    %522 = vector.extract_strided_slice %251 {offsets = [48, 0], sizes = [8, 128], strides = [1, 1]} : vector<80x128xf32> to vector<8x128xf32>
    %523 = vector.extract_strided_slice %239 {offsets = [48, 0], sizes = [8, 128], strides = [1, 1]} : vector<80x128xf32> to vector<8x128xf32>
    %524 = vector.extract_strided_slice %254 {offsets = [48, 0], sizes = [8, 128], strides = [1, 1]} : vector<80x128xf32> to vector<8x128xf32>
    %525 = vector.extract_strided_slice %257 {offsets = [48, 0], sizes = [8, 128], strides = [1, 1]} : vector<80x128xf32> to vector<8x128xf32>
    %526 = vector.extract_strided_slice %260 {offsets = [48, 0], sizes = [8, 128], strides = [1, 1]} : vector<80x128xf32> to vector<8x128xf32>
    %527 = vector.extract_strided_slice %263 {offsets = [48, 0], sizes = [8, 128], strides = [1, 1]} : vector<80x128xf32> to vector<8x128xf32>
    %528 = vector.extract_strided_slice %242 {offsets = [56, 0], sizes = [8, 128], strides = [1, 1]} : vector<80x128xf32> to vector<8x128xf32>
    %529 = vector.extract_strided_slice %245 {offsets = [56, 0], sizes = [8, 128], strides = [1, 1]} : vector<80x128xf32> to vector<8x128xf32>
    %530 = vector.extract_strided_slice %248 {offsets = [56, 0], sizes = [8, 128], strides = [1, 1]} : vector<80x128xf32> to vector<8x128xf32>
    %531 = vector.extract_strided_slice %251 {offsets = [56, 0], sizes = [8, 128], strides = [1, 1]} : vector<80x128xf32> to vector<8x128xf32>
    %532 = vector.extract_strided_slice %239 {offsets = [56, 0], sizes = [8, 128], strides = [1, 1]} : vector<80x128xf32> to vector<8x128xf32>
    %533 = vector.extract_strided_slice %254 {offsets = [56, 0], sizes = [8, 128], strides = [1, 1]} : vector<80x128xf32> to vector<8x128xf32>
    %534 = vector.extract_strided_slice %257 {offsets = [56, 0], sizes = [8, 128], strides = [1, 1]} : vector<80x128xf32> to vector<8x128xf32>
    %535 = vector.extract_strided_slice %260 {offsets = [56, 0], sizes = [8, 128], strides = [1, 1]} : vector<80x128xf32> to vector<8x128xf32>
    %536 = vector.extract_strided_slice %263 {offsets = [56, 0], sizes = [8, 128], strides = [1, 1]} : vector<80x128xf32> to vector<8x128xf32>
    %537 = vector.extract_strided_slice %242 {offsets = [64, 0], sizes = [8, 128], strides = [1, 1]} : vector<80x128xf32> to vector<8x128xf32>
    %538 = vector.extract_strided_slice %245 {offsets = [64, 0], sizes = [8, 128], strides = [1, 1]} : vector<80x128xf32> to vector<8x128xf32>
    %539 = vector.extract_strided_slice %248 {offsets = [64, 0], sizes = [8, 128], strides = [1, 1]} : vector<80x128xf32> to vector<8x128xf32>
    %540 = vector.extract_strided_slice %251 {offsets = [64, 0], sizes = [8, 128], strides = [1, 1]} : vector<80x128xf32> to vector<8x128xf32>
    %541 = vector.extract_strided_slice %239 {offsets = [64, 0], sizes = [8, 128], strides = [1, 1]} : vector<80x128xf32> to vector<8x128xf32>
    %542 = vector.extract_strided_slice %254 {offsets = [64, 0], sizes = [8, 128], strides = [1, 1]} : vector<80x128xf32> to vector<8x128xf32>
    %543 = vector.extract_strided_slice %257 {offsets = [64, 0], sizes = [8, 128], strides = [1, 1]} : vector<80x128xf32> to vector<8x128xf32>
    %544 = vector.extract_strided_slice %260 {offsets = [64, 0], sizes = [8, 128], strides = [1, 1]} : vector<80x128xf32> to vector<8x128xf32>
    %545 = vector.extract_strided_slice %263 {offsets = [64, 0], sizes = [8, 128], strides = [1, 1]} : vector<80x128xf32> to vector<8x128xf32>
    %546 = tpu.concatenate %519, %520, %521, %522, %523, %524, %525, %526, %527, %528, %529, %530, %531, %532, %533, %534 in 0 : vector<8x128xf32>, vector<8x128xf32>, vector<8x128xf32>, vector<8x128xf32>, vector<8x128xf32>, vector<8x128xf32>, vector<8x128xf32>, vector<8x128xf32>, vector<8x128xf32>, vector<8x128xf32>, vector<8x128xf32>, vector<8x128xf32>, vector<8x128xf32>, vector<8x128xf32>, vector<8x128xf32>, vector<8x128xf32> -> vector<128x128xf32>
    %547 = tpu.concatenate %535, %536, %537, %538, %539, %540, %541, %542, %543, %544, %545 in 0 : vector<8x128xf32>, vector<8x128xf32>, vector<8x128xf32>, vector<8x128xf32>, vector<8x128xf32>, vector<8x128xf32>, vector<8x128xf32>, vector<8x128xf32>, vector<8x128xf32>, vector<8x128xf32>, vector<8x128xf32> -> vector<88x128xf32>
    %548 = tpu.concatenate %546, %547 in 0 : vector<128x128xf32>, vector<88x128xf32> -> vector<216x128xf32>
    %cst_115 = arith.constant dense<0.000000e+00> : vector<16x128xf32>
    %549 = tpu.matmul %264, %548, %cst_115 {dimension_numbers = #tpu.dot_dimension_numbers<[1], [0], [0], [1], [0, 0, 1, 1], [], []>} : vector<16x216xf32>, vector<216x128xf32>, vector<16x128xf32> -> vector<16x128xf32>
    %550 = vector.broadcast %265 : vector<16x1xf32> to vector<16x128xf32>
    %551 = arith.addf %549, %550 : vector<16x128xf32>
    %cst_116 = arith.constant 0.000000e+00 : f32
    %552 = vector.broadcast %cst_116 : f32 to vector<16x128xf32>
    %553 = arith.maximumf %551, %552 : vector<16x128xf32>
    %554 = vector.extract_strided_slice %8 {offsets = [7, 0, 0], sizes = [1, 1, 128], strides = [1, 1, 1]} : vector<10x1x128xf32> to vector<1x1x128xf32>
    %555 = vector.shape_cast %554 : vector<1x1x128xf32> to vector<1x128xf32>
    %556 = vector.broadcast %555 : vector<1x128xf32> to vector<16x128xf32>
    %557 = arith.mulf %553, %556 : vector<16x128xf32>
    %cst_117 = arith.constant dense<0.000000e+00> : vector<16xf32>
    %558 = vector.multi_reduction <add>, %557, %cst_117 [1] : vector<16x128xf32> to vector<16xf32>
    %559 = vector.shape_cast %558 : vector<16xf32> to vector<16x1xf32>
    %560 = arith.addf %518, %559 : vector<16x1xf32>
    %561 = vector.extract_strided_slice %242 {offsets = [56, 0], sizes = [8, 128], strides = [1, 1]} : vector<80x128xf32> to vector<8x128xf32>
    %562 = vector.extract_strided_slice %245 {offsets = [56, 0], sizes = [8, 128], strides = [1, 1]} : vector<80x128xf32> to vector<8x128xf32>
    %563 = vector.extract_strided_slice %248 {offsets = [56, 0], sizes = [8, 128], strides = [1, 1]} : vector<80x128xf32> to vector<8x128xf32>
    %564 = vector.extract_strided_slice %251 {offsets = [56, 0], sizes = [8, 128], strides = [1, 1]} : vector<80x128xf32> to vector<8x128xf32>
    %565 = vector.extract_strided_slice %239 {offsets = [56, 0], sizes = [8, 128], strides = [1, 1]} : vector<80x128xf32> to vector<8x128xf32>
    %566 = vector.extract_strided_slice %254 {offsets = [56, 0], sizes = [8, 128], strides = [1, 1]} : vector<80x128xf32> to vector<8x128xf32>
    %567 = vector.extract_strided_slice %257 {offsets = [56, 0], sizes = [8, 128], strides = [1, 1]} : vector<80x128xf32> to vector<8x128xf32>
    %568 = vector.extract_strided_slice %260 {offsets = [56, 0], sizes = [8, 128], strides = [1, 1]} : vector<80x128xf32> to vector<8x128xf32>
    %569 = vector.extract_strided_slice %263 {offsets = [56, 0], sizes = [8, 128], strides = [1, 1]} : vector<80x128xf32> to vector<8x128xf32>
    %570 = vector.extract_strided_slice %242 {offsets = [64, 0], sizes = [8, 128], strides = [1, 1]} : vector<80x128xf32> to vector<8x128xf32>
    %571 = vector.extract_strided_slice %245 {offsets = [64, 0], sizes = [8, 128], strides = [1, 1]} : vector<80x128xf32> to vector<8x128xf32>
    %572 = vector.extract_strided_slice %248 {offsets = [64, 0], sizes = [8, 128], strides = [1, 1]} : vector<80x128xf32> to vector<8x128xf32>
    %573 = vector.extract_strided_slice %251 {offsets = [64, 0], sizes = [8, 128], strides = [1, 1]} : vector<80x128xf32> to vector<8x128xf32>
    %574 = vector.extract_strided_slice %239 {offsets = [64, 0], sizes = [8, 128], strides = [1, 1]} : vector<80x128xf32> to vector<8x128xf32>
    %575 = vector.extract_strided_slice %254 {offsets = [64, 0], sizes = [8, 128], strides = [1, 1]} : vector<80x128xf32> to vector<8x128xf32>
    %576 = vector.extract_strided_slice %257 {offsets = [64, 0], sizes = [8, 128], strides = [1, 1]} : vector<80x128xf32> to vector<8x128xf32>
    %577 = vector.extract_strided_slice %260 {offsets = [64, 0], sizes = [8, 128], strides = [1, 1]} : vector<80x128xf32> to vector<8x128xf32>
    %578 = vector.extract_strided_slice %263 {offsets = [64, 0], sizes = [8, 128], strides = [1, 1]} : vector<80x128xf32> to vector<8x128xf32>
    %579 = vector.extract_strided_slice %242 {offsets = [72, 0], sizes = [8, 128], strides = [1, 1]} : vector<80x128xf32> to vector<8x128xf32>
    %580 = vector.extract_strided_slice %245 {offsets = [72, 0], sizes = [8, 128], strides = [1, 1]} : vector<80x128xf32> to vector<8x128xf32>
    %581 = vector.extract_strided_slice %248 {offsets = [72, 0], sizes = [8, 128], strides = [1, 1]} : vector<80x128xf32> to vector<8x128xf32>
    %582 = vector.extract_strided_slice %251 {offsets = [72, 0], sizes = [8, 128], strides = [1, 1]} : vector<80x128xf32> to vector<8x128xf32>
    %583 = vector.extract_strided_slice %239 {offsets = [72, 0], sizes = [8, 128], strides = [1, 1]} : vector<80x128xf32> to vector<8x128xf32>
    %584 = vector.extract_strided_slice %254 {offsets = [72, 0], sizes = [8, 128], strides = [1, 1]} : vector<80x128xf32> to vector<8x128xf32>
    %585 = vector.extract_strided_slice %257 {offsets = [72, 0], sizes = [8, 128], strides = [1, 1]} : vector<80x128xf32> to vector<8x128xf32>
    %586 = vector.extract_strided_slice %260 {offsets = [72, 0], sizes = [8, 128], strides = [1, 1]} : vector<80x128xf32> to vector<8x128xf32>
    %587 = vector.extract_strided_slice %263 {offsets = [72, 0], sizes = [8, 128], strides = [1, 1]} : vector<80x128xf32> to vector<8x128xf32>
    %588 = tpu.concatenate %561, %562, %563, %564, %565, %566, %567, %568, %569, %570, %571, %572, %573, %574, %575, %576 in 0 : vector<8x128xf32>, vector<8x128xf32>, vector<8x128xf32>, vector<8x128xf32>, vector<8x128xf32>, vector<8x128xf32>, vector<8x128xf32>, vector<8x128xf32>, vector<8x128xf32>, vector<8x128xf32>, vector<8x128xf32>, vector<8x128xf32>, vector<8x128xf32>, vector<8x128xf32>, vector<8x128xf32>, vector<8x128xf32> -> vector<128x128xf32>
    %589 = tpu.concatenate %577, %578, %579, %580, %581, %582, %583, %584, %585, %586, %587 in 0 : vector<8x128xf32>, vector<8x128xf32>, vector<8x128xf32>, vector<8x128xf32>, vector<8x128xf32>, vector<8x128xf32>, vector<8x128xf32>, vector<8x128xf32>, vector<8x128xf32>, vector<8x128xf32>, vector<8x128xf32> -> vector<88x128xf32>
    %590 = tpu.concatenate %588, %589 in 0 : vector<128x128xf32>, vector<88x128xf32> -> vector<216x128xf32>
    %cst_118 = arith.constant dense<0.000000e+00> : vector<16x128xf32>
    %591 = tpu.matmul %264, %590, %cst_118 {dimension_numbers = #tpu.dot_dimension_numbers<[1], [0], [0], [1], [0, 0, 1, 1], [], []>} : vector<16x216xf32>, vector<216x128xf32>, vector<16x128xf32> -> vector<16x128xf32>
    %592 = vector.broadcast %265 : vector<16x1xf32> to vector<16x128xf32>
    %593 = arith.addf %591, %592 : vector<16x128xf32>
    %cst_119 = arith.constant 0.000000e+00 : f32
    %594 = vector.broadcast %cst_119 : f32 to vector<16x128xf32>
    %595 = arith.maximumf %593, %594 : vector<16x128xf32>
    %596 = vector.extract_strided_slice %8 {offsets = [8, 0, 0], sizes = [1, 1, 128], strides = [1, 1, 1]} : vector<10x1x128xf32> to vector<1x1x128xf32>
    %597 = vector.shape_cast %596 : vector<1x1x128xf32> to vector<1x128xf32>
    %598 = vector.broadcast %597 : vector<1x128xf32> to vector<16x128xf32>
    %599 = arith.mulf %595, %598 : vector<16x128xf32>
    %cst_120 = arith.constant dense<0.000000e+00> : vector<16xf32>
    %600 = vector.multi_reduction <add>, %599, %cst_120 [1] : vector<16x128xf32> to vector<16xf32>
    %601 = vector.shape_cast %600 : vector<16xf32> to vector<16x1xf32>
    %602 = arith.addf %560, %601 : vector<16x1xf32>
    %c0_121 = arith.constant 0 : index
    %c0_122 = arith.constant 0 : index
    %c0_123 = arith.constant 0 : index
    %c0_124 = arith.constant 0 : index
    %603 = vector.load %arg8[%c0_121, %c0_122, %c0_123, %c0_124] : memref<1x1x16x1xf32, #tpu.memory_space<vmem>>, vector<1x1x16x1xf32>
    %604 = vector.shape_cast %603 : vector<1x1x16x1xf32> to vector<16x1xf32>
    %605 = vector.shape_cast %602 : vector<16x1xf32> to vector<1x1x16x1xf32>
    tpu.vector_store %arg8[%c0_121, %c0_122, %c0_123, %c0_124], %605 {strides = array<i32>} : memref<1x1x16x1xf32, #tpu.memory_space<vmem>>, vector<1x1x16x1xf32>,
    return
  }
  func.func @transform_1(%arg0: i32, %arg1: i32) -> (i32, i32, i32, i32) {
    %c0_i32 = arith.constant 0 : i32
    %c0_i32_0 = arith.constant 0 : i32
    %c0_i32_1 = arith.constant 0 : i32
    %c0_i32_2 = arith.constant 0 : i32
    return %arg1, %c0_i32, %c0_i32_0, %c0_i32_1 : i32, i32, i32, i32
  }
  func.func @transform_2(%arg0: i32, %arg1: i32) -> (i32, i32, i32, i32) {
    %c0_i32 = arith.constant 0 : i32
    %c0_i32_0 = arith.constant 0 : i32
    %c0_i32_1 = arith.constant 0 : i32
    %c0_i32_2 = arith.constant 0 : i32
    %c0_i32_3 = arith.constant 0 : i32
    return %c0_i32, %c0_i32_0, %c0_i32_1, %c0_i32_2 : i32, i32, i32, i32
  }
  func.func @transform_3(%arg0: i32, %arg1: i32) -> (i32, i32, i32) {
    %c0_i32 = arith.constant 0 : i32
    %c0_i32_0 = arith.constant 0 : i32
    %c0_i32_1 = arith.constant 0 : i32
    %c0_i32_2 = arith.constant 0 : i32
    return %c0_i32, %c0_i32_0, %c0_i32_1 : i32, i32, i32
  }
  func.func @transform_4(%arg0: i32, %arg1: i32) -> (i32, i32) {
    %c0_i32 = arith.constant 0 : i32
    %c0_i32_0 = arith.constant 0 : i32
    %c0_i32_1 = arith.constant 0 : i32
    return %c0_i32, %c0_i32_0 : i32, i32
  }
  func.func @transform_5(%arg0: i32, %arg1: i32) -> (i32, i32) {
    %c0_i32 = arith.constant 0 : i32
    %c0_i32_0 = arith.constant 0 : i32
    %c0_i32_1 = arith.constant 0 : i32
    return %c0_i32, %c0_i32_0 : i32, i32
  }
  func.func @transform_6(%arg0: i32, %arg1: i32) -> (i32, i32, i32, i32) {
    %c0_i32 = arith.constant 0 : i32
    %c0_i32_0 = arith.constant 0 : i32
    %c0_i32_1 = arith.constant 0 : i32
    return %arg0, %arg1, %c0_i32, %c0_i32_0 : i32, i32, i32, i32
  }
}

</mosaic_0001>

<llo_original>
// kernel: shallow_3dcnn_forward.1
$region0: #{shallow_3dcnn_forward.1}
  #allocation0 [shape = 'u32[]', space=smem, size = 0x4, offset = 0x4, fixed_abs, tag = 'smem constant byte address 0x4 - core index']
  #allocation1 [shape = 'u32[144,128]{1,0:T(1,128)}', space=vmem, size = 0x12000, scoped, tag = 'internal scratch']
  #allocation2 [shape = 'f32[12,128]{1,0:T(8,128)}', space=vmem, size = 0x2000, scoped, tag = 'scratch operand']
  #allocation3 [shape = 's32[1]{0}', space=sflag, size = 0x4, scoped, tag = 'scratch operand']
  #allocation4 [shape = 's32[]', space=sflag, size = 0x4, offset = 0, fixed_abs, tag = 'sflag constant byte address 0x0 - dummy sync flag']
  %s0 = inlined_call_operand.vmem [shape: f32[2,20,128], index: 0, kind: input, shape index: {}]
  %s1 = inlined_call_operand.vmem [shape: f32[2,10,1,128], index: 1, kind: input, shape index: {}]
  %s2 = inlined_call_operand.vmem [shape: f32[27,1,8,1], index: 2, kind: input, shape index: {}]
  %s3 = inlined_call_operand.vmem [shape: f32[1,8,1], index: 3, kind: input, shape index: {}]
  %s4 = inlined_call_operand.vmem [shape: f32[16,216], index: 4, kind: input, shape index: {}]
  %s5 = inlined_call_operand.vmem [shape: f32[16,1], index: 5, kind: input, shape index: {}]
  %s6 = inlined_call_operand.vmem [shape: f32[2,2,16,1], index: 6, kind: output, shape index: {}]
  %s7 = sld [smem:[#allocation0]]
  $region90: #{shallow_3dcnn_forward.1} parent=0
    _
  %s9 = ssub.s32 1, %s7
  %s10 = scalar_select 0, %s9, %s7
  loop: start=0, step=1, limit=6
  $region2: #{shallow_3dcnn_forward.1} parent=0 // loop_pre_header
    _
  $region3: #{shallow_3dcnn_forward.1} parent=0 // loop_header
    %s12 = sphi 0, %s16
    %p13 = scmp.ge.s32.totalorder %s12, 6
    %s19 = sphi 0, %s31
    %s20 = sphi 0, %s27
    %s21 = sphi 0, %s19
    %s22 = sphi 0, %s20
    %s23 = sphi 0, %s21
    %s24 = sphi 0, %s22
    %s34 = sphi 0, %s36
    %s37 = sphi 0, %s34
    %s38 = sphi 0, %s37
    %s54 = sphi 0, %s38
    %s58 = sphi 0, %s58
    %s60 = sphi 0, %s58
    %s61 = sphi 0, %s60
    %s75 = sphi 0, %s61
    %s79 = sphi 0, %s79
    %s81 = sphi 0, %s79
    %s82 = sphi 0, %s81
    %s96 = sphi 0, %s82
    %s100 = sphi 0, %s100
    %s102 = sphi 0, %s100
    %s103 = sphi 0, %s102
    %s117 = sphi 0, %s103
    %s121 = sphi 0, %s121
    %s123 = sphi 0, %s121
    %s124 = sphi 0, %s123
    %s138 = sphi 0, %s124
    %s146 = sphi 0, %s148
    %s149 = sphi 0, %s146
    %s150 = sphi 0, %s149
    %s166 = sphi 0, %s150
  $region4: #{shallow_3dcnn_forward.1} parent=0 // loop_header_branch
    %15 = sbr.rel (%p13) target = $region8
  $region5: #{shallow_3dcnn_forward.1} parent=0 // loop_body
    %s17 = ssub.s32 %s12, 1
    %s18 = ssub.s32 %s12, 2
    %s25 = sadd.s32 1, %s20
    %p26 = scmp.ge.s32.totalorder %s25, 2
    %s27 = scalar_select %p26, 0, %s25
    %s28 = sadd.s32 1, %s19
    %s29 = scalar_select %p26, %s28, %s19
    %p30 = scmp.ge.s32.totalorder %s29, 2
    %s31 = scalar_select %p30, 0, %s29
    %s32 = ssub.s32 %s20, %s27
    %p33 = scmp.eq.s32.totalorder %s32, 0
    %s35 = sadd.s32 %s34, 1
    %s36 = scalar_select %p33, %s34, %s35
    %p39 = pneg %p33
    %p40 = scmp.eq.s32.totalorder %s12, 3
    %p41 = por %p39, %p40
    %p42 = scmp.ne.s32.totalorder %s34, %s37
    %p43 = scmp.eq.s32.totalorder %s12, 0
    %p44 = por %p42, %p43
    %p45 = scmp.ne.s32.totalorder %s34, %s37
    %p46 = scmp.eq.s32.totalorder %s17, 3
    %p47 = por %p45, %p46
    %p48 = scmp.ne.s32.totalorder %s37, %s38
    %p49 = scmp.eq.s32.totalorder %s17, 0
    %p50 = por %p48, %p49
    %p51 = scmp.ne.s32.totalorder %s37, %s38
    %p52 = scmp.eq.s32.totalorder %s18, 3
    %p53 = por %p51, %p52
    %p55 = scmp.ne.s32.totalorder %s38, %s54
    %p56 = scmp.eq.s32.totalorder %s18, 0
    %p57 = por %p55, %p56
    %s59 = sadd.s32 %s58, 1
    %p62 = scmp.eq.s32.totalorder %s12, 3
    %p63 = scmp.ne.s32.totalorder %s58, %s60
    %p64 = scmp.eq.s32.totalorder %s12, 0
    %p65 = por %p63, %p64
    %p66 = scmp.ne.s32.totalorder %s58, %s60
    %p67 = scmp.eq.s32.totalorder %s17, 3
    %p68 = por %p66, %p67
    %p69 = scmp.ne.s32.totalorder %s60, %s61
    %p70 = scmp.eq.s32.totalorder %s17, 0
    %p71 = por %p69, %p70
    %p72 = scmp.ne.s32.totalorder %s60, %s61
    %p73 = scmp.eq.s32.totalorder %s18, 3
    %p74 = por %p72, %p73
    %p76 = scmp.ne.s32.totalorder %s61, %s75
    %p77 = scmp.eq.s32.totalorder %s18, 0
    %p78 = por %p76, %p77
    %s80 = sadd.s32 %s79, 1
    %p83 = scmp.eq.s32.totalorder %s12, 3
    %p84 = scmp.ne.s32.totalorder %s79, %s81
    %p85 = scmp.eq.s32.totalorder %s12, 0
    %p86 = por %p84, %p85
    %p87 = scmp.ne.s32.totalorder %s79, %s81
    %p88 = scmp.eq.s32.totalorder %s17, 3
    %p89 = por %p87, %p88
    %p90 = scmp.ne.s32.totalorder %s81, %s82
    %p91 = scmp.eq.s32.totalorder %s17, 0
    %p92 = por %p90, %p91
    %p93 = scmp.ne.s32.totalorder %s81, %s82
    %p94 = scmp.eq.s32.totalorder %s18, 3
    %p95 = por %p93, %p94
    %p97 = scmp.ne.s32.totalorder %s82, %s96
    %p98 = scmp.eq.s32.totalorder %s18, 0
    %p99 = por %p97, %p98
    %s101 = sadd.s32 %s100, 1
    %p104 = scmp.eq.s32.totalorder %s12, 3
    %p105 = scmp.ne.s32.totalorder %s100, %s102
    %p106 = scmp.eq.s32.totalorder %s12, 0
    %p107 = por %p105, %p106
    %p108 = scmp.ne.s32.totalorder %s100, %s102
    %p109 = scmp.eq.s32.totalorder %s17, 3
    %p110 = por %p108, %p109
    %p111 = scmp.ne.s32.totalorder %s102, %s103
    %p112 = scmp.eq.s32.totalorder %s17, 0
    %p113 = por %p111, %p112
    %p114 = scmp.ne.s32.totalorder %s102, %s103
    %p115 = scmp.eq.s32.totalorder %s18, 3
    %p116 = por %p114, %p115
    %p118 = scmp.ne.s32.totalorder %s103, %s117
    %p119 = scmp.eq.s32.totalorder %s18, 0
    %p120 = por %p118, %p119
    %s122 = sadd.s32 %s121, 1
    %p125 = scmp.eq.s32.totalorder %s12, 3
    %p126 = scmp.ne.s32.totalorder %s121, %s123
    %p127 = scmp.eq.s32.totalorder %s12, 0
    %p128 = por %p126, %p127
    %p129 = scmp.ne.s32.totalorder %s121, %s123
    %p130 = scmp.eq.s32.totalorder %s17, 3
    %p131 = por %p129, %p130
    %p132 = scmp.ne.s32.totalorder %s123, %s124
    %p133 = scmp.eq.s32.totalorder %s17, 0
    %p134 = por %p132, %p133
    %p135 = scmp.ne.s32.totalorder %s123, %s124
    %p136 = scmp.eq.s32.totalorder %s18, 3
    %p137 = por %p135, %p136
    %p139 = scmp.ne.s32.totalorder %s124, %s138
    %p140 = scmp.eq.s32.totalorder %s18, 0
    %p141 = por %p139, %p140
    %s142 = ssub.s32 %s19, %s31
    %s143 = ssub.s32 %s20, %s27
    %s144 = sor.u32 %s142, %s143
    %p145 = scmp.eq.s32.totalorder %s144, 0
    %s147 = sadd.s32 %s146, 1
    %s148 = scalar_select %p145, %s146, %s147
    %p151 = pneg %p145
    %p152 = scmp.eq.s32.totalorder %s12, 3
    %p153 = por %p151, %p152
    %p154 = scmp.ne.s32.totalorder %s146, %s149
    %p155 = scmp.eq.s32.totalorder %s12, 0
    %p156 = por %p154, %p155
    %p157 = scmp.ne.s32.totalorder %s146, %s149
    %p158 = scmp.eq.s32.totalorder %s17, 3
    %p159 = por %p157, %p158
    %p160 = scmp.ne.s32.totalorder %s149, %s150
    %p161 = scmp.eq.s32.totalorder %s17, 0
    %p162 = por %p160, %p161
    %p163 = scmp.ne.s32.totalorder %s149, %s150
    %p164 = scmp.eq.s32.totalorder %s18, 3
    %p165 = por %p163, %p164
    %p167 = scmp.ne.s32.totalorder %s150, %s166
    %p168 = scmp.eq.s32.totalorder %s18, 0
    %p169 = por %p167, %p168
    %p170 = scmp.le.s32.totalorder 1, %s12
    %p171 = scmp.lt.s32.totalorder %s12, 5
    %p172 = pnand %p170, %p171
    %p173 = pneg %p172
    // Predicated region
    $region9: #{shallow_3dcnn_forward.1} parent=5 // pred_check
      _
    $region10: #{shallow_3dcnn_forward.1} parent=5 // pred_check_branch
      %175 = sbr.rel (%p172) target = $region12
    $region11: #{shallow_3dcnn_forward.1} parent=5 // pred_region
      %s176 = ssub.s32 %s12, 1
      // Predicated region
      $region13: #{shallow_3dcnn_forward.1} parent=11 // pred_check
        %p177 = pneg %p71
      $region14: #{shallow_3dcnn_forward.1} parent=11 // pred_check_branch
        %179 = sbr.rel (%p177) target = $region16
      $region15: #{shallow_3dcnn_forward.1} parent=11 // pred_region
        _
      $region16: #{shallow_3dcnn_forward.1} parent=11 // pred_fallthru
        _
      // Predicated region
      $region17: #{shallow_3dcnn_forward.1} parent=11 // pred_check
        %p180 = pneg %p92
      $region18: #{shallow_3dcnn_forward.1} parent=11 // pred_check_branch
        %182 = sbr.rel (%p180) target = $region20
      $region19: #{shallow_3dcnn_forward.1} parent=11 // pred_region
        _
      $region20: #{shallow_3dcnn_forward.1} parent=11 // pred_fallthru
        _
      // Predicated region
      $region21: #{shallow_3dcnn_forward.1} parent=11 // pred_check
        %p183 = pneg %p113
      $region22: #{shallow_3dcnn_forward.1} parent=11 // pred_check_branch
        %185 = sbr.rel (%p183) target = $region24
      $region23: #{shallow_3dcnn_forward.1} parent=11 // pred_region
        _
      $region24: #{shallow_3dcnn_forward.1} parent=11 // pred_fallthru
        _
      // Predicated region
      $region25: #{shallow_3dcnn_forward.1} parent=11 // pred_check
        %p186 = pneg %p134
      $region26: #{shallow_3dcnn_forward.1} parent=11 // pred_check_branch
        %188 = sbr.rel (%p186) target = $region28
      $region27: #{shallow_3dcnn_forward.1} parent=11 // pred_region
        _
      $region28: #{shallow_3dcnn_forward.1} parent=11 // pred_fallthru
        _
    $region12: #{shallow_3dcnn_forward.1} parent=5 // pred_fallthru
      _
    %p189 = scmp.lt.s32.totalorder %s12, 4
    // Predicated region
    $region29: #{shallow_3dcnn_forward.1} parent=5 // pred_check
      %p190 = pneg %p189
    $region30: #{shallow_3dcnn_forward.1} parent=5 // pred_check_branch
      %192 = sbr.rel (%p190) target = $region32
    $region31: #{shallow_3dcnn_forward.1} parent=5 // pred_region
      // Predicated region
      $region33: #{shallow_3dcnn_forward.1} parent=31 // pred_check
        %p193 = pneg %p44
      $region34: #{shallow_3dcnn_forward.1} parent=31 // pred_check_branch
        %195 = sbr.rel (%p193) target = $region36
      $region35: #{shallow_3dcnn_forward.1} parent=31 // pred_region
        %p196 = scmp.lt.s32.totalorder %s20, 1
        %s197 = scalar_select %p196, %s20, 1
        %s198 = smul.addr %s197, 10
        %s199 = scalar_lea.vmem %s1, %s198
      $region36: #{shallow_3dcnn_forward.1} parent=31 // pred_fallthru
        _
    $region32: #{shallow_3dcnn_forward.1} parent=5 // pred_fallthru
      _
    %p200 = scmp.le.s32.totalorder 1, %s12
    %p201 = scmp.lt.s32.totalorder %s12, 5
    %p202 = pnand %p200, %p201
    %p203 = pneg %p202
    // Predicated region
    $region37: #{shallow_3dcnn_forward.1} parent=5 // pred_check
      _
    $region38: #{shallow_3dcnn_forward.1} parent=5 // pred_check_branch
      %205 = sbr.rel (%p202) target = $region40
    $region39: #{shallow_3dcnn_forward.1} parent=5 // pred_region
      %s206 = ssub.s32 %s12, 1
      %p207 = scmp.lt.s32.totalorder %s22, 1
      %s208 = scalar_select %p207, %s22, 1
      %s209 = smul.addr %s208, 10
      %s210 = scalar_lea.vmem %s1, %s209
      %p211 = pneg %p50
      %p212 = pneg %p47
      %p213 = pneg %p71
      %p214 = pneg %p68
      %p215 = pneg %p92
      %p216 = pneg %p89
      %p217 = pneg %p113
      %p218 = pneg %p110
      %p219 = pneg %p134
      %p220 = pneg %p131
      %p221 = pneg %p162
      %p222 = pneg %p159
      %p223 = scmp.lt.s32.totalorder %s21, 1
      %s224 = scalar_select %p223, %s21, 1
      %p225 = scmp.lt.s32.totalorder %s22, 1
      %s226 = scalar_select %p225, %s22, 1
      %s227 = smul.addr %s226, 2
      %s228 = smul.addr %s224, 4
      %s229 = sadd.s32 %s227, %s228
      %s230 = smul.addr %s229, 8
      %s231 = scalar_lea.vmem %s6, %s230
      %p232 = scmp.lt.s32.totalorder %s22, 1
      %s233 = scalar_select %p232, %s22, 1
      %s234 = smul.addr %s233, 10
      %s235 = scalar_lea.vmem %s1, %s234
      %p236 = scmp.lt.s32.totalorder %s21, 1
      %s237 = scalar_select %p236, %s21, 1
      %p238 = scmp.lt.s32.totalorder %s22, 1
      %s239 = scalar_select %p238, %s22, 1
      %s240 = smul.addr %s239, 2
      %s241 = smul.addr %s237, 4
      %s242 = sadd.s32 %s240, %s241
      %s243 = smul.addr %s242, 8
      %s244 = scalar_lea.vmem %s6, %s243
      %s245 = smul.u32 %s22, 8
      %s246 = smul.u32 %s21, 24
      %s247 = sadd.s32 %s245, %s246
      %s248 = scalar_lea.vmem %s0, %s247
      %p250 = scmp.lt.u32.totalorder 12, 8
      %p251 = pneg %p250
      // Predicated region
      $region41: #{shallow_3dcnn_forward.1} parent=39 // pred_check
        _
      $region42: #{shallow_3dcnn_forward.1} parent=39 // pred_check_branch
        %253 = sbr.rel (%p250) target = $region44
      $region43: #{shallow_3dcnn_forward.1} parent=39 // pred_region
        %s269 = sand.u32 12, 7
        %p270 = scmp.eq.s32.totalorder %s269, 0
        %p271 = pneg %p270
        // Predicated region
        $region56: #{shallow_3dcnn_forward.1} parent=43 // pred_check
          _
        $region57: #{shallow_3dcnn_forward.1} parent=43 // pred_check_branch
          %273 = sbr.rel (%p270) target = $region59
        $region58: #{shallow_3dcnn_forward.1} parent=43 // pred_region
          %s274 = sand.u32 12, 7
          %s275 = ssub.s32 12, %s274
          %s276 = scalar_lea.vmem %s248, %s275
          %s277 = ssub.s32 12, %s274
          %s278 = scalar_lea.vmem [#allocation2], %s277
          loop: start=0, step=1, limit=1
          $region60: #{shallow_3dcnn_forward.1} parent=58 // loop_pre_header
            _
          $region61: #{shallow_3dcnn_forward.1} parent=58 // loop_header
            %s280 = sphi 0, %s284
            %p281 = scmp.ge.s32.totalorder %s280, 1
            %s285 = sphi %s248, %s248
            %s286 = sphi [#allocation2], [#allocation2]
          $region62: #{shallow_3dcnn_forward.1} parent=58 // loop_header_branch
            %283 = sbr.rel (%p281) target = $region66
          $region63: #{shallow_3dcnn_forward.1} parent=58 // loop_body
            %v287 = vld [vmem:[%s285] sm:$0xff]
            %288 = vst [vmem:[%s286] sm:$0xff] %v287
          $region64: #{shallow_3dcnn_forward.1} parent=58 // loop_footer
            %s284 = sadd.s32 1, %s280
          $region65: #{shallow_3dcnn_forward.1} parent=58 // loop_footer_branch
            %279 = sbr.rel target = $region61
          $region66: #{shallow_3dcnn_forward.1} parent=58 // loop_exit
            _
          %s289 = sshll.u32 1, %s274
          %s290 = ssub.s32 %s289, 1
          loop: start=0, step=1, limit=1
          $region67: #{shallow_3dcnn_forward.1} parent=58 // loop_pre_header
            _
          $region68: #{shallow_3dcnn_forward.1} parent=58 // loop_header
            %s292 = sphi 0, %s296
            %p293 = scmp.ge.s32.totalorder %s292, 1
            %s297 = sphi %s276, %s276
            %s298 = sphi %s278, %s278
          $region69: #{shallow_3dcnn_forward.1} parent=58 // loop_header_branch
            %295 = sbr.rel (%p293) target = $region73
          $region70: #{shallow_3dcnn_forward.1} parent=58 // loop_body
            %v299 = vld [vmem:[%s297] sm:%s290]
            %300 = vst [vmem:[%s298] sm:%s290] %v299
          $region71: #{shallow_3dcnn_forward.1} parent=58 // loop_footer
            %s296 = sadd.s32 1, %s292
          $region72: #{shallow_3dcnn_forward.1} parent=58 // loop_footer_branch
            %291 = sbr.rel target = $region68
          $region73: #{shallow_3dcnn_forward.1} parent=58 // loop_exit
            _
        $region59: #{shallow_3dcnn_forward.1} parent=43 // pred_fallthru
          _
      $region44: #{shallow_3dcnn_forward.1} parent=39 // pred_fallthru
        _
      // Predicated region
      $region45: #{shallow_3dcnn_forward.1} parent=39 // pred_check
        %p254 = pneg %p250
      $region46: #{shallow_3dcnn_forward.1} parent=39 // pred_check_branch
        %256 = sbr.rel (%p254) target = $region48
      $region47: #{shallow_3dcnn_forward.1} parent=39 // pred_region
        %s257 = sshll.u32 1, 12
        %s258 = ssub.s32 %s257, 1
        loop: start=0, step=1, limit=1
        $region49: #{shallow_3dcnn_forward.1} parent=47 // loop_pre_header
          _
        $region50: #{shallow_3dcnn_forward.1} parent=47 // loop_header
          %s260 = sphi 0, %s264
          %p261 = scmp.ge.s32.totalorder %s260, 1
          %s265 = sphi %s248, %s248
          %s266 = sphi [#allocation2], [#allocation2]
        $region51: #{shallow_3dcnn_forward.1} parent=47 // loop_header_branch
          %263 = sbr.rel (%p261) target = $region55
        $region52: #{shallow_3dcnn_forward.1} parent=47 // loop_body
          %v267 = vld [vmem:[%s265] sm:%s258]
          %268 = vst [vmem:[%s266] sm:%s258] %v267
        $region53: #{shallow_3dcnn_forward.1} parent=47 // loop_footer
          %s264 = sadd.s32 1, %s260
        $region54: #{shallow_3dcnn_forward.1} parent=47 // loop_footer_branch
          %259 = sbr.rel target = $region50
        $region55: #{shallow_3dcnn_forward.1} parent=47 // loop_exit
          _
      $region48: #{shallow_3dcnn_forward.1} parent=39 // pred_fallthru
        _
      // Predicated region
      $region74: #{shallow_3dcnn_forward.1} parent=39 // pred_check
        _
      $region75: #{shallow_3dcnn_forward.1} parent=39 // pred_check_branch
        %303 = sbr.rel (0) target = $region77
      $region76: #{shallow_3dcnn_forward.1} parent=39 // pred_region
        %304 = vsyncadd [#allocation3], 192
      $region77: #{shallow_3dcnn_forward.1} parent=39 // pred_fallthru
        _
      %s305 = smul.u32 12, 1
      %s306 = sshll.u32 %s305, 4
      %307 = dma.done [#allocation3], %s306
      %v308 = vld [vmem:[#allocation2] sm:$0xff]
      %v309 = vld [vmem:[#allocation2 + $0x8] sm:$0xf]
      %v310 = vld [vmem:[%s235] sm:$0x1]
      %v311 = vld [vmem:[%s235 + $0x1] sm:$0x1]
      %v312 = vld [vmem:[%s235 + $0x2] sm:$0x1]
      %v313 = vld [vmem:[%s235 + $0x3] sm:$0x1]
      %v314 = vld [vmem:[%s235 + $0x4] sm:$0x1]
      %v315 = vld [vmem:[%s235 + $0x5] sm:$0x1]
      %v316 = vld [vmem:[%s235 + $0x6] sm:$0x1]
      %v317 = vld [vmem:[%s235 + $0x7] sm:$0x1]
      %v318 = vld [vmem:[%s235 + $0x8] sm:$0x1]
      %v319 = vld [vmem:[%s235 + $0x9] sm:$0x1]
      %322 = vrot.lane.b32.xlu0 %v308, 12
      %v323 = vpop.permute.xlu0 %322
      %324 = vrot.lane.b32.xlu0 %v309, 12
      %v325 = vpop.permute.xlu0 %324
      %v330 = vcombine.high %v323, %v323
      %v332 = vunpack.c.l.s4 1966171168
      %v333 = vunpack.c.0.s8 %v332
      %v334 = vlaneseq
      %v335 = vshrl.u32 %v334, 7
      %v336 = vsub.s32 %v333, %v335
      %v337 = vrot.slane %v323, %v336
      %v339 = vunpack.c.l.s4 1966171168
      %v340 = vunpack.c.0.s8 %v339
      %v341 = vlaneseq
      %v342 = vshrl.u32 %v341, 7
      %v343 = vsub.s32 %v340, %v342
      %v344 = vrot.slane %v330, %v343
      %v345 = vcombine.high %v337, %v337
      %v346 = vcombine.high %v344, %v344
      %v348 = vunpack.c.l.s4 1966171168
      %v349 = vunpack.c.0.s8 %v348
      %v350 = vlaneseq
      %v351 = vshrl.u32 %v350, 7
      %v352 = vsub.s32 %v349, %v351
      %v353 = vrot.slane %v337, %v352
      %v355 = vunpack.c.l.s4 1966171168
      %v356 = vunpack.c.0.s8 %v355
      %v357 = vlaneseq
      %v358 = vshrl.u32 %v357, 7
      %v359 = vsub.s32 %v356, %v358
      %v360 = vrot.slane %v344, %v359
      %v362 = vunpack.c.l.s4 1966171168
      %v363 = vunpack.c.0.s8 %v362
      %v364 = vlaneseq
      %v365 = vshrl.u32 %v364, 7
      %v366 = vsub.s32 %v363, %v365
      %v367 = vrot.slane %v345, %v366
      %v369 = vunpack.c.l.s4 1966171168
      %v370 = vunpack.c.0.s8 %v369
      %v371 = vlaneseq
      %v372 = vshrl.u32 %v371, 7
      %v373 = vsub.s32 %v370, %v372
      %v374 = vrot.slane %v346, %v373
      %v375 = vcombine.high %v353, %v353
      %v376 = vcombine.high %v360, %v360
      %v377 = vcombine.high %v367, %v367
      %v378 = vcombine.high %v374, %v374
      %v380 = vunpack.c.l.s4 1966171168
      %v381 = vunpack.c.0.s8 %v380
      %v382 = vlaneseq
      %v383 = vshrl.u32 %v382, 7
      %v384 = vsub.s32 %v381, %v383
      %v385 = vrot.slane %v325, %v384
      %v386 = vcombine.high %v385, %v385
      %v388 = vunpack.c.l.s4 1966171168
      %v389 = vunpack.c.0.s8 %v388
      %v390 = vlaneseq
      %v391 = vshrl.u32 %v390, 7
      %v392 = vsub.s32 %v389, %v391
      %v393 = vrot.slane %v385, %v392
      %v395 = vunpack.c.l.s4 1966171168
      %v396 = vunpack.c.0.s8 %v395
      %v397 = vlaneseq
      %v398 = vshrl.u32 %v397, 7
      %v399 = vsub.s32 %v396, %v398
      %v400 = vrot.slane %v386, %v399
      %v401 = vcombine.high %v393, %v393
      %v402 = vcombine.high %v400, %v400
      %v403 = vld [vmem:[%s2] sm:$0xff]
      %405 = vset.pattern.permute.xlu0 0
      %406 = vperm.xlu0 %405, %v403
      %v407 = vpop.permute.xlu0 %406
      %v409 = vlaneseq
      %v410 = vshrl.u32 %v409, 7
      %v411 = vsub.s32 0, %v410
      %v412 = vrot.slane %v353, %v411
      %v413 = vlaneseq
      %v414 = vshrl.u32 %v413, 7
      %v415 = vsub.s32 0, %v414
      %v416 = vrot.slane %v367, %v415
      %v417 = vlaneseq
      %v418 = vshrl.u32 %v417, 7
      %v419 = vsub.s32 0, %v418
      %v420 = vrot.slane %v375, %v419
      %v421 = vlaneseq
      %v422 = vshrl.u32 %v421, 7
      %v423 = vsub.s32 0, %v422
      %v424 = vrot.slane %v377, %v423
      %v425 = vlaneseq
      %v426 = vshrl.u32 %v425, 7
      %v427 = vsub.s32 0, %v426
      %v428 = vrot.slane %v360, %v427
      %v429 = vlaneseq
      %v430 = vshrl.u32 %v429, 7
      %v431 = vsub.s32 0, %v430
      %v432 = vrot.slane %v374, %v431
      %v433 = vlaneseq
      %v434 = vshrl.u32 %v433, 7
      %v435 = vsub.s32 0, %v434
      %v436 = vrot.slane %v376, %v435
      %v437 = vlaneseq
      %v438 = vshrl.u32 %v437, 7
      %v439 = vsub.s32 0, %v438
      %v440 = vrot.slane %v378, %v439
      %v441 = vlaneseq
      %v442 = vshrl.u32 %v441, 7
      %v443 = vsub.s32 0, %v442
      %v444 = vrot.slane %v393, %v443
      %v445 = vlaneseq
      %v446 = vshrl.u32 %v445, 7
      %v447 = vsub.s32 0, %v446
      %v448 = vrot.slane %v400, %v447
      %v459 = vmul.f32 %v407, %v412
      %v460 = vmul.f32 %v407, %v416
      %v461 = vmul.f32 %v407, %v420
      %v462 = vmul.f32 %v407, %v424
      %v463 = vmul.f32 %v407, %v428
      %v464 = vmul.f32 %v407, %v432
      %v465 = vmul.f32 %v407, %v436
      %v466 = vmul.f32 %v407, %v440
      %v467 = vmul.f32 %v407, %v444
      %v468 = vmul.f32 %v407, %v448
      %v469 = vadd.f32 %v459, 0.0
      %v470 = vadd.f32 %v460, 0.0
      %v471 = vadd.f32 %v461, 0.0
      %v472 = vadd.f32 %v462, 0.0
      %v473 = vadd.f32 %v463, 0.0
      %v474 = vadd.f32 %v464, 0.0
      %v475 = vadd.f32 %v465, 0.0
      %v476 = vadd.f32 %v466, 0.0
      %v477 = vadd.f32 %v467, 0.0
      %v478 = vadd.f32 %v468, 0.0
      %s479 = scalar_lea.vmem %s2, 72
      %v480 = vld [vmem:[%s479] sm:$0xff]
      %482 = vset.pattern.permute.xlu0 0
      %483 = vperm.xlu0 %482, %v480
      %v484 = vpop.permute.xlu0 %483
      %v486 = vlaneseq
      %v487 = vshrl.u32 %v486, 7
      %v488 = vsub.s32 0, %v487
      %v489 = vrot.slane %v401, %v488
      %v491 = vmul.f32 %v484, %v416
      %v492 = vmul.f32 %v484, %v420
      %v493 = vmul.f32 %v484, %v424
      %v494 = vmul.f32 %v484, %v428
      %v495 = vmul.f32 %v484, %v432
      %v496 = vmul.f32 %v484, %v436
      %v497 = vmul.f32 %v484, %v440
      %v498 = vmul.f32 %v484, %v444
      %v499 = vmul.f32 %v484, %v448
      %v500 = vmul.f32 %v484, %v489
      %v501 = vadd.f32 %v469, %v491
      %v502 = vadd.f32 %v470, %v492
      %v503 = vadd.f32 %v471, %v493
      %v504 = vadd.f32 %v472, %v494
      %v505 = vadd.f32 %v473, %v495
      %v506 = vadd.f32 %v474, %v496
      %v507 = vadd.f32 %v475, %v497
      %v508 = vadd.f32 %v476, %v498
      %v509 = vadd.f32 %v477, %v499
      %v510 = vadd.f32 %v478, %v500
      %s511 = scalar_lea.vmem %s2, 144
      %v512 = vld [vmem:[%s511] sm:$0xff]
      %514 = vset.pattern.permute.xlu0 0
      %515 = vperm.xlu0 %514, %v512
      %v516 = vpop.permute.xlu0 %515
      %v518 = vlaneseq
      %v519 = vshrl.u32 %v518, 7
      %v520 = vsub.s32 0, %v519
      %v521 = vrot.slane %v402, %v520
      %v523 = vmul.f32 %v516, %v420
      %v524 = vmul.f32 %v516, %v424
      %v525 = vmul.f32 %v516, %v428
      %v526 = vmul.f32 %v516, %v432
      %v527 = vmul.f32 %v516, %v436
      %v528 = vmul.f32 %v516, %v440
      %v529 = vmul.f32 %v516, %v444
      %v530 = vmul.f32 %v516, %v448
      %v531 = vmul.f32 %v516, %v489
      %v532 = vmul.f32 %v516, %v521
      %v533 = vadd.f32 %v501, %v523
      %v534 = vadd.f32 %v502, %v524
      %v535 = vadd.f32 %v503, %v525
      %v536 = vadd.f32 %v504, %v526
      %v537 = vadd.f32 %v505, %v527
      %v538 = vadd.f32 %v506, %v528
      %v539 = vadd.f32 %v507, %v529
      %v540 = vadd.f32 %v508, %v530
      %v541 = vadd.f32 %v509, %v531
      %v542 = vadd.f32 %v510, %v532
      %543 = vrot.lane.b32.xlu0 %v308, 11
      %v544 = vpop.permute.xlu0 %543
      %545 = vrot.lane.b32.xlu0 %v309, 11
      %v546 = vpop.permute.xlu0 %545
      %v551 = vcombine.high %v544, %v544
      %v553 = vunpack.c.l.s4 1966171168
      %v554 = vunpack.c.0.s8 %v553
      %v555 = vlaneseq
      %v556 = vshrl.u32 %v555, 7
      %v557 = vsub.s32 %v554, %v556
      %v558 = vrot.slane %v544, %v557
      %v560 = vunpack.c.l.s4 1966171168
      %v561 = vunpack.c.0.s8 %v560
      %v562 = vlaneseq
      %v563 = vshrl.u32 %v562, 7
      %v564 = vsub.s32 %v561, %v563
      %v565 = vrot.slane %v551, %v564
      %v566 = vcombine.high %v558, %v558
      %v567 = vcombine.high %v565, %v565
      %v569 = vunpack.c.l.s4 1966171168
      %v570 = vunpack.c.0.s8 %v569
      %v571 = vlaneseq
      %v572 = vshrl.u32 %v571, 7
      %v573 = vsub.s32 %v570, %v572
      %v574 = vrot.slane %v558, %v573
      %v576 = vunpack.c.l.s4 1966171168
      %v577 = vunpack.c.0.s8 %v576
      %v578 = vlaneseq
      %v579 = vshrl.u32 %v578, 7
      %v580 = vsub.s32 %v577, %v579
      %v581 = vrot.slane %v565, %v580
      %v583 = vunpack.c.l.s4 1966171168
      %v584 = vunpack.c.0.s8 %v583
      %v585 = vlaneseq
      %v586 = vshrl.u32 %v585, 7
      %v587 = vsub.s32 %v584, %v586
      %v588 = vrot.slane %v566, %v587
      %v590 = vunpack.c.l.s4 1966171168
      %v591 = vunpack.c.0.s8 %v590
      %v592 = vlaneseq
      %v593 = vshrl.u32 %v592, 7
      %v594 = vsub.s32 %v591, %v593
      %v595 = vrot.slane %v567, %v594
      %v596 = vcombine.high %v574, %v574
      %v597 = vcombine.high %v581, %v581
      %v598 = vcombine.high %v588, %v588
      %v599 = vcombine.high %v595, %v595
      %v601 = vunpack.c.l.s4 1966171168
      %v602 = vunpack.c.0.s8 %v601
      %v603 = vlaneseq
      %v604 = vshrl.u32 %v603, 7
      %v605 = vsub.s32 %v602, %v604
      %v606 = vrot.slane %v546, %v605
      %v607 = vcombine.high %v606, %v606
      %v609 = vunpack.c.l.s4 1966171168
      %v610 = vunpack.c.0.s8 %v609
      %v611 = vlaneseq
      %v612 = vshrl.u32 %v611, 7
      %v613 = vsub.s32 %v610, %v612
      %v614 = vrot.slane %v606, %v613
      %v616 = vunpack.c.l.s4 1966171168
      %v617 = vunpack.c.0.s8 %v616
      %v618 = vlaneseq
      %v619 = vshrl.u32 %v618, 7
      %v620 = vsub.s32 %v617, %v619
      %v621 = vrot.slane %v607, %v620
      %v622 = vcombine.high %v614, %v614
      %v623 = vcombine.high %v621, %v621
      %s624 = scalar_lea.vmem %s2, 8
      %v625 = vld [vmem:[%s624] sm:$0xff]
      %627 = vset.pattern.permute.xlu0 0
      %628 = vperm.xlu0 %627, %v625
      %v629 = vpop.permute.xlu0 %628
      %v631 = vlaneseq
      %v632 = vshrl.u32 %v631, 7
      %v633 = vsub.s32 0, %v632
      %v634 = vrot.slane %v574, %v633
      %v635 = vlaneseq
      %v636 = vshrl.u32 %v635, 7
      %v637 = vsub.s32 0, %v636
      %v638 = vrot.slane %v588, %v637
      %v639 = vlaneseq
      %v640 = vshrl.u32 %v639, 7
      %v641 = vsub.s32 0, %v640
      %v642 = vrot.slane %v596, %v641
      %v643 = vlaneseq
      %v644 = vshrl.u32 %v643, 7
      %v645 = vsub.s32 0, %v644
      %v646 = vrot.slane %v598, %v645
      %v647 = vlaneseq
      %v648 = vshrl.u32 %v647, 7
      %v649 = vsub.s32 0, %v648
      %v650 = vrot.slane %v581, %v649
      %v651 = vlaneseq
      %v652 = vshrl.u32 %v651, 7
      %v653 = vsub.s32 0, %v652
      %v654 = vrot.slane %v595, %v653
      %v655 = vlaneseq
      %v656 = vshrl.u32 %v655, 7
      %v657 = vsub.s32 0, %v656
      %v658 = vrot.slane %v597, %v657
      %v659 = vlaneseq
      %v660 = vshrl.u32 %v659, 7
      %v661 = vsub.s32 0, %v660
      %v662 = vrot.slane %v599, %v661
      %v663 = vlaneseq
      %v664 = vshrl.u32 %v663, 7
      %v665 = vsub.s32 0, %v664
      %v666 = vrot.slane %v614, %v665
      %v667 = vlaneseq
      %v668 = vshrl.u32 %v667, 7
      %v669 = vsub.s32 0, %v668
      %v670 = vrot.slane %v621, %v669
      %v681 = vmul.f32 %v629, %v634
      %v682 = vmul.f32 %v629, %v638
      %v683 = vmul.f32 %v629, %v642
      %v684 = vmul.f32 %v629, %v646
      %v685 = vmul.f32 %v629, %v650
      %v686 = vmul.f32 %v629, %v654
      %v687 = vmul.f32 %v629, %v658
      %v688 = vmul.f32 %v629, %v662
      %v689 = vmul.f32 %v629, %v666
      %v690 = vmul.f32 %v629, %v670
      %v691 = vadd.f32 %v533, %v681
      %v692 = vadd.f32 %v534, %v682
      %v693 = vadd.f32 %v535, %v683
      %v694 = vadd.f32 %v536, %v684
      %v695 = vadd.f32 %v537, %v685
      %v696 = vadd.f32 %v538, %v686
      %v697 = vadd.f32 %v539, %v687
      %v698 = vadd.f32 %v540, %v688
      %v699 = vadd.f32 %v541, %v689
      %v700 = vadd.f32 %v542, %v690
      %s701 = scalar_lea.vmem %s2, 80
      %v702 = vld [vmem:[%s701] sm:$0xff]
      %704 = vset.pattern.permute.xlu0 0
      %705 = vperm.xlu0 %704, %v702
      %v706 = vpop.permute.xlu0 %705
      %v708 = vlaneseq
      %v709 = vshrl.u32 %v708, 7
      %v710 = vsub.s32 0, %v709
      %v711 = vrot.slane %v622, %v710
      %v713 = vmul.f32 %v706, %v638
      %v714 = vmul.f32 %v706, %v642
      %v715 = vmul.f32 %v706, %v646
      %v716 = vmul.f32 %v706, %v650
      %v717 = vmul.f32 %v706, %v654
      %v718 = vmul.f32 %v706, %v658
      %v719 = vmul.f32 %v706, %v662
      %v720 = vmul.f32 %v706, %v666
      %v721 = vmul.f32 %v706, %v670
      %v722 = vmul.f32 %v706, %v711
      %v723 = vadd.f32 %v691, %v713
      %v724 = vadd.f32 %v692, %v714
      %v725 = vadd.f32 %v693, %v715
      %v726 = vadd.f32 %v694, %v716
      %v727 = vadd.f32 %v695, %v717
      %v728 = vadd.f32 %v696, %v718
      %v729 = vadd.f32 %v697, %v719
      %v730 = vadd.f32 %v698, %v720
      %v731 = vadd.f32 %v699, %v721
      %v732 = vadd.f32 %v700, %v722
      %s733 = scalar_lea.vmem %s2, 152
      %v734 = vld [vmem:[%s733] sm:$0xff]
      %736 = vset.pattern.permute.xlu0 0
      %737 = vperm.xlu0 %736, %v734
      %v738 = vpop.permute.xlu0 %737
      %v740 = vlaneseq
      %v741 = vshrl.u32 %v740, 7
      %v742 = vsub.s32 0, %v741
      %v743 = vrot.slane %v623, %v742
      %v745 = vmul.f32 %v738, %v642
      %v746 = vmul.f32 %v738, %v646
      %v747 = vmul.f32 %v738, %v650
      %v748 = vmul.f32 %v738, %v654
      %v749 = vmul.f32 %v738, %v658
      %v750 = vmul.f32 %v738, %v662
      %v751 = vmul.f32 %v738, %v666
      %v752 = vmul.f32 %v738, %v670
      %v753 = vmul.f32 %v738, %v711
      %v754 = vmul.f32 %v738, %v743
      %v755 = vadd.f32 %v723, %v745
      %v756 = vadd.f32 %v724, %v746
      %v757 = vadd.f32 %v725, %v747
      %v758 = vadd.f32 %v726, %v748
      %v759 = vadd.f32 %v727, %v749
      %v760 = vadd.f32 %v728, %v750
      %v761 = vadd.f32 %v729, %v751
      %v762 = vadd.f32 %v730, %v752
      %v763 = vadd.f32 %v731, %v753
      %v764 = vadd.f32 %v732, %v754
      %765 = vrot.lane.b32.xlu0 %v308, 10
      %v766 = vpop.permute.xlu0 %765
      %767 = vrot.lane.b32.xlu0 %v309, 10
      %v768 = vpop.permute.xlu0 %767
      %v773 = vcombine.high %v766, %v766
      %v775 = vunpack.c.l.s4 1966171168
      %v776 = vunpack.c.0.s8 %v775
      %v777 = vlaneseq
      %v778 = vshrl.u32 %v777, 7
      %v779 = vsub.s32 %v776, %v778
      %v780 = vrot.slane %v766, %v779
      %v782 = vunpack.c.l.s4 1966171168
      %v783 = vunpack.c.0.s8 %v782
      %v784 = vlaneseq
      %v785 = vshrl.u32 %v784, 7
      %v786 = vsub.s32 %v783, %v785
      %v787 = vrot.slane %v773, %v786
      %v788 = vcombine.high %v780, %v780
      %v789 = vcombine.high %v787, %v787
      %v791 = vunpack.c.l.s4 1966171168
      %v792 = vunpack.c.0.s8 %v791
      %v793 = vlaneseq
      %v794 = vshrl.u32 %v793, 7
      %v795 = vsub.s32 %v792, %v794
      %v796 = vrot.slane %v780, %v795
      %v798 = vunpack.c.l.s4 1966171168
      %v799 = vunpack.c.0.s8 %v798
      %v800 = vlaneseq
      %v801 = vshrl.u32 %v800, 7
      %v802 = vsub.s32 %v799, %v801
      %v803 = vrot.slane %v787, %v802
      %v805 = vunpack.c.l.s4 1966171168
      %v806 = vunpack.c.0.s8 %v805
      %v807 = vlaneseq
      %v808 = vshrl.u32 %v807, 7
      %v809 = vsub.s32 %v806, %v808
      %v810 = vrot.slane %v788, %v809
      %v812 = vunpack.c.l.s4 1966171168
      %v813 = vunpack.c.0.s8 %v812
      %v814 = vlaneseq
      %v815 = vshrl.u32 %v814, 7
      %v816 = vsub.s32 %v813, %v815
      %v817 = vrot.slane %v789, %v816
      %v818 = vcombine.high %v796, %v796
      %v819 = vcombine.high %v803, %v803
      %v820 = vcombine.high %v810, %v810
      %v821 = vcombine.high %v817, %v817
      %v823 = vunpack.c.l.s4 1966171168
      %v824 = vunpack.c.0.s8 %v823
      %v825 = vlaneseq
      %v826 = vshrl.u32 %v825, 7
      %v827 = vsub.s32 %v824, %v826
      %v828 = vrot.slane %v768, %v827
      %v829 = vcombine.high %v828, %v828
      %v831 = vunpack.c.l.s4 1966171168
      %v832 = vunpack.c.0.s8 %v831
      %v833 = vlaneseq
      %v834 = vshrl.u32 %v833, 7
      %v835 = vsub.s32 %v832, %v834
      %v836 = vrot.slane %v828, %v835
      %v838 = vunpack.c.l.s4 1966171168
      %v839 = vunpack.c.0.s8 %v838
      %v840 = vlaneseq
      %v841 = vshrl.u32 %v840, 7
      %v842 = vsub.s32 %v839, %v841
      %v843 = vrot.slane %v829, %v842
      %v844 = vcombine.high %v836, %v836
      %v845 = vcombine.high %v843, %v843
      %s846 = scalar_lea.vmem %s2, 16
      %v847 = vld [vmem:[%s846] sm:$0xff]
      %849 = vset.pattern.permute.xlu0 0
      %850 = vperm.xlu0 %849, %v847
      %v851 = vpop.permute.xlu0 %850
      %v853 = vlaneseq
      %v854 = vshrl.u32 %v853, 7
      %v855 = vsub.s32 0, %v854
      %v856 = vrot.slane %v796, %v855
      %v857 = vlaneseq
      %v858 = vshrl.u32 %v857, 7
      %v859 = vsub.s32 0, %v858
      %v860 = vrot.slane %v810, %v859
      %v861 = vlaneseq
      %v862 = vshrl.u32 %v861, 7
      %v863 = vsub.s32 0, %v862
      %v864 = vrot.slane %v818, %v863
      %v865 = vlaneseq
      %v866 = vshrl.u32 %v865, 7
      %v867 = vsub.s32 0, %v866
      %v868 = vrot.slane %v820, %v867
      %v869 = vlaneseq
      %v870 = vshrl.u32 %v869, 7
      %v871 = vsub.s32 0, %v870
      %v872 = vrot.slane %v803, %v871
      %v873 = vlaneseq
      %v874 = vshrl.u32 %v873, 7
      %v875 = vsub.s32 0, %v874
      %v876 = vrot.slane %v817, %v875
      %v877 = vlaneseq
      %v878 = vshrl.u32 %v877, 7
      %v879 = vsub.s32 0, %v878
      %v880 = vrot.slane %v819, %v879
      %v881 = vlaneseq
      %v882 = vshrl.u32 %v881, 7
      %v883 = vsub.s32 0, %v882
      %v884 = vrot.slane %v821, %v883
      %v885 = vlaneseq
      %v886 = vshrl.u32 %v885, 7
      %v887 = vsub.s32 0, %v886
      %v888 = vrot.slane %v836, %v887
      %v889 = vlaneseq
      %v890 = vshrl.u32 %v889, 7
      %v891 = vsub.s32 0, %v890
      %v892 = vrot.slane %v843, %v891
      %v903 = vmul.f32 %v851, %v856
      %v904 = vmul.f32 %v851, %v860
      %v905 = vmul.f32 %v851, %v864
      %v906 = vmul.f32 %v851, %v868
      %v907 = vmul.f32 %v851, %v872
      %v908 = vmul.f32 %v851, %v876
      %v909 = vmul.f32 %v851, %v880
      %v910 = vmul.f32 %v851, %v884
      %v911 = vmul.f32 %v851, %v888
      %v912 = vmul.f32 %v851, %v892
      %v913 = vadd.f32 %v755, %v903
      %v914 = vadd.f32 %v756, %v904
      %v915 = vadd.f32 %v757, %v905
      %v916 = vadd.f32 %v758, %v906
      %v917 = vadd.f32 %v759, %v907
      %v918 = vadd.f32 %v760, %v908
      %v919 = vadd.f32 %v761, %v909
      %v920 = vadd.f32 %v762, %v910
      %v921 = vadd.f32 %v763, %v911
      %v922 = vadd.f32 %v764, %v912
      %s923 = scalar_lea.vmem %s2, 88
      %v924 = vld [vmem:[%s923] sm:$0xff]
      %926 = vset.pattern.permute.xlu0 0
      %927 = vperm.xlu0 %926, %v924
      %v928 = vpop.permute.xlu0 %927
      %v930 = vlaneseq
      %v931 = vshrl.u32 %v930, 7
      %v932 = vsub.s32 0, %v931
      %v933 = vrot.slane %v844, %v932
      %v935 = vmul.f32 %v928, %v860
      %v936 = vmul.f32 %v928, %v864
      %v937 = vmul.f32 %v928, %v868
      %v938 = vmul.f32 %v928, %v872
      %v939 = vmul.f32 %v928, %v876
      %v940 = vmul.f32 %v928, %v880
      %v941 = vmul.f32 %v928, %v884
      %v942 = vmul.f32 %v928, %v888
      %v943 = vmul.f32 %v928, %v892
      %v944 = vmul.f32 %v928, %v933
      %v945 = vadd.f32 %v913, %v935
      %v946 = vadd.f32 %v914, %v936
      %v947 = vadd.f32 %v915, %v937
      %v948 = vadd.f32 %v916, %v938
      %v949 = vadd.f32 %v917, %v939
      %v950 = vadd.f32 %v918, %v940
      %v951 = vadd.f32 %v919, %v941
      %v952 = vadd.f32 %v920, %v942
      %v953 = vadd.f32 %v921, %v943
      %v954 = vadd.f32 %v922, %v944
      %s955 = scalar_lea.vmem %s2, 160
      %v956 = vld [vmem:[%s955] sm:$0xff]
      %958 = vset.pattern.permute.xlu0 0
      %959 = vperm.xlu0 %958, %v956
      %v960 = vpop.permute.xlu0 %959
      %v962 = vlaneseq
      %v963 = vshrl.u32 %v962, 7
      %v964 = vsub.s32 0, %v963
      %v965 = vrot.slane %v845, %v964
      %v967 = vmul.f32 %v960, %v864
      %v968 = vmul.f32 %v960, %v868
      %v969 = vmul.f32 %v960, %v872
      %v970 = vmul.f32 %v960, %v876
      %v971 = vmul.f32 %v960, %v880
      %v972 = vmul.f32 %v960, %v884
      %v973 = vmul.f32 %v960, %v888
      %v974 = vmul.f32 %v960, %v892
      %v975 = vmul.f32 %v960, %v933
      %v976 = vmul.f32 %v960, %v965
      %v977 = vadd.f32 %v945, %v967
      %v978 = vadd.f32 %v946, %v968
      %v979 = vadd.f32 %v947, %v969
      %v980 = vadd.f32 %v948, %v970
      %v981 = vadd.f32 %v949, %v971
      %v982 = vadd.f32 %v950, %v972
      %v983 = vadd.f32 %v951, %v973
      %v984 = vadd.f32 %v952, %v974
      %v985 = vadd.f32 %v953, %v975
      %v986 = vadd.f32 %v954, %v976
      %987 = vrot.lane.b32.xlu0 %v308, 1
      %v988 = vpop.permute.xlu0 %987
      %989 = vrot.lane.b32.xlu0 %v309, 1
      %v990 = vpop.permute.xlu0 %989
      %vm993 = vcmask 7168
      %v996 = vcombine.high %v988, %v988
      %v998 = vunpack.c.l.s4 1966171168
      %v999 = vunpack.c.0.s8 %v998
      %v1000 = vlaneseq
      %v1001 = vshrl.u32 %v1000, 7
      %v1002 = vsub.s32 %v999, %v1001
      %v1003 = vrot.slane %v988, %v1002
      %v1005 = vunpack.c.l.s4 1966171168
      %v1006 = vunpack.c.0.s8 %v1005
      %v1007 = vlaneseq
      %v1008 = vshrl.u32 %v1007, 7
      %v1009 = vsub.s32 %v1006, %v1008
      %v1010 = vrot.slane %v996, %v1009
      %v1011 = vcombine.high %v1003, %v1003
      %v1012 = vcombine.high %v1010, %v1010
      %v1014 = vunpack.c.l.s4 1966171168
      %v1015 = vunpack.c.0.s8 %v1014
      %v1016 = vlaneseq
      %v1017 = vshrl.u32 %v1016, 7
      %v1018 = vsub.s32 %v1015, %v1017
      %v1019 = vrot.slane %v1003, %v1018
      %v1021 = vunpack.c.l.s4 1966171168
      %v1022 = vunpack.c.0.s8 %v1021
      %v1023 = vlaneseq
      %v1024 = vshrl.u32 %v1023, 7
      %v1025 = vsub.s32 %v1022, %v1024
      %v1026 = vrot.slane %v1010, %v1025
      %v1028 = vunpack.c.l.s4 1966171168
      %v1029 = vunpack.c.0.s8 %v1028
      %v1030 = vlaneseq
      %v1031 = vshrl.u32 %v1030, 7
      %v1032 = vsub.s32 %v1029, %v1031
      %v1033 = vrot.slane %v1011, %v1032
      %v1035 = vunpack.c.l.s4 1966171168
      %v1036 = vunpack.c.0.s8 %v1035
      %v1037 = vlaneseq
      %v1038 = vshrl.u32 %v1037, 7
      %v1039 = vsub.s32 %v1036, %v1038
      %v1040 = vrot.slane %v1012, %v1039
      %v1041 = vcombine.high %v1019, %v1019
      %v1042 = vcombine.high %v1026, %v1026
      %v1043 = vcombine.high %v1033, %v1033
      %v1044 = vcombine.high %v1040, %v1040
      %v1046 = vunpack.c.l.s4 1966171168
      %v1047 = vunpack.c.0.s8 %v1046
      %v1048 = vlaneseq
      %v1049 = vshrl.u32 %v1048, 7
      %v1050 = vsub.s32 %v1047, %v1049
      %v1051 = vrot.slane %v990, %v1050
      %v1052 = vcombine.high %v1051, %v1051
      %v1054 = vunpack.c.l.s4 1966171168
      %v1055 = vunpack.c.0.s8 %v1054
      %v1056 = vlaneseq
      %v1057 = vshrl.u32 %v1056, 7
      %v1058 = vsub.s32 %v1055, %v1057
      %v1059 = vrot.slane %v1051, %v1058
      %v1061 = vunpack.c.l.s4 1966171168
      %v1062 = vunpack.c.0.s8 %v1061
      %v1063 = vlaneseq
      %v1064 = vshrl.u32 %v1063, 7
      %v1065 = vsub.s32 %v1062, %v1064
      %v1066 = vrot.slane %v1052, %v1065
      %v1067 = vcombine.high %v1059, %v1059
      %v1068 = vcombine.high %v1066, %v1066
      %s1069 = scalar_lea.vmem %s2, 24
      %v1070 = vld [vmem:[%s1069] sm:$0xff]
      %1072 = vset.pattern.permute.xlu0 0
      %1073 = vperm.xlu0 %1072, %v1070
      %v1074 = vpop.permute.xlu0 %1073
      %v1076 = vlaneseq
      %v1077 = vshrl.u32 %v1076, 7
      %v1078 = vsub.s32 0, %v1077
      %v1079 = vrot.slane %v1019, %v1078
      %v1080 = vlaneseq
      %v1081 = vshrl.u32 %v1080, 7
      %v1082 = vsub.s32 0, %v1081
      %v1083 = vrot.slane %v1033, %v1082
      %v1084 = vlaneseq
      %v1085 = vshrl.u32 %v1084, 7
      %v1086 = vsub.s32 0, %v1085
      %v1087 = vrot.slane %v1041, %v1086
      %v1088 = vlaneseq
      %v1089 = vshrl.u32 %v1088, 7
      %v1090 = vsub.s32 0, %v1089
      %v1091 = vrot.slane %v1043, %v1090
      %v1092 = vlaneseq
      %v1093 = vshrl.u32 %v1092, 7
      %v1094 = vsub.s32 0, %v1093
      %v1095 = vrot.slane %v1026, %v1094
      %v1096 = vlaneseq
      %v1097 = vshrl.u32 %v1096, 7
      %v1098 = vsub.s32 0, %v1097
      %v1099 = vrot.slane %v1040, %v1098
      %v1100 = vlaneseq
      %v1101 = vshrl.u32 %v1100, 7
      %v1102 = vsub.s32 0, %v1101
      %v1103 = vrot.slane %v1042, %v1102
      %v1104 = vlaneseq
      %v1105 = vshrl.u32 %v1104, 7
      %v1106 = vsub.s32 0, %v1105
      %v1107 = vrot.slane %v1044, %v1106
      %v1108 = vlaneseq
      %v1109 = vshrl.u32 %v1108, 7
      %v1110 = vsub.s32 0, %v1109
      %v1111 = vrot.slane %v1059, %v1110
      %v1112 = vlaneseq
      %v1113 = vshrl.u32 %v1112, 7
      %v1114 = vsub.s32 0, %v1113
      %v1115 = vrot.slane %v1066, %v1114
      %v1126 = vmul.f32 %v1074, %v1079
      %v1127 = vmul.f32 %v1074, %v1083
      %v1128 = vmul.f32 %v1074, %v1087
      %v1129 = vmul.f32 %v1074, %v1091
      %v1130 = vmul.f32 %v1074, %v1095
      %v1131 = vmul.f32 %v1074, %v1099
      %v1132 = vmul.f32 %v1074, %v1103
      %v1133 = vmul.f32 %v1074, %v1107
      %v1134 = vmul.f32 %v1074, %v1111
      %v1135 = vmul.f32 %v1074, %v1115
      %v1136 = vadd.f32 %v977, %v1126
      %v1137 = vadd.f32 %v978, %v1127
      %v1138 = vadd.f32 %v979, %v1128
      %v1139 = vadd.f32 %v980, %v1129
      %v1140 = vadd.f32 %v981, %v1130
      %v1141 = vadd.f32 %v982, %v1131
      %v1142 = vadd.f32 %v983, %v1132
      %v1143 = vadd.f32 %v984, %v1133
      %v1144 = vadd.f32 %v985, %v1134
      %v1145 = vadd.f32 %v986, %v1135
      %s1146 = scalar_lea.vmem %s2, 96
      %v1147 = vld [vmem:[%s1146] sm:$0xff]
      %1149 = vset.pattern.permute.xlu0 0
      %1150 = vperm.xlu0 %1149, %v1147
      %v1151 = vpop.permute.xlu0 %1150
      %v1153 = vlaneseq
      %v1154 = vshrl.u32 %v1153, 7
      %v1155 = vsub.s32 0, %v1154
      %v1156 = vrot.slane %v1067, %v1155
      %v1158 = vmul.f32 %v1151, %v1083
      %v1159 = vmul.f32 %v1151, %v1087
      %v1160 = vmul.f32 %v1151, %v1091
      %v1161 = vmul.f32 %v1151, %v1095
      %v1162 = vmul.f32 %v1151, %v1099
      %v1163 = vmul.f32 %v1151, %v1103
      %v1164 = vmul.f32 %v1151, %v1107
      %v1165 = vmul.f32 %v1151, %v1111
      %v1166 = vmul.f32 %v1151, %v1115
      %v1167 = vmul.f32 %v1151, %v1156
      %v1168 = vadd.f32 %v1136, %v1158
      %v1169 = vadd.f32 %v1137, %v1159
      %v1170 = vadd.f32 %v1138, %v1160
      %v1171 = vadd.f32 %v1139, %v1161
      %v1172 = vadd.f32 %v1140, %v1162
      %v1173 = vadd.f32 %v1141, %v1163
      %v1174 = vadd.f32 %v1142, %v1164
      %v1175 = vadd.f32 %v1143, %v1165
      %v1176 = vadd.f32 %v1144, %v1166
      %v1177 = vadd.f32 %v1145, %v1167
      %s1178 = scalar_lea.vmem %s2, 168
      %v1179 = vld [vmem:[%s1178] sm:$0xff]
      %1181 = vset.pattern.permute.xlu0 0
      %1182 = vperm.xlu0 %1181, %v1179
      %v1183 = vpop.permute.xlu0 %1182
      %v1185 = vlaneseq
      %v1186 = vshrl.u32 %v1185, 7
      %v1187 = vsub.s32 0, %v1186
      %v1188 = vrot.slane %v1068, %v1187
      %v1190 = vmul.f32 %v1183, %v1087
      %v1191 = vmul.f32 %v1183, %v1091
      %v1192 = vmul.f32 %v1183, %v1095
      %v1193 = vmul.f32 %v1183, %v1099
      %v1194 = vmul.f32 %v1183, %v1103
      %v1195 = vmul.f32 %v1183, %v1107
      %v1196 = vmul.f32 %v1183, %v1111
      %v1197 = vmul.f32 %v1183, %v1115
      %v1198 = vmul.f32 %v1183, %v1156
      %v1199 = vmul.f32 %v1183, %v1188
      %v1200 = vadd.f32 %v1168, %v1190
      %v1201 = vadd.f32 %v1169, %v1191
      %v1202 = vadd.f32 %v1170, %v1192
      %v1203 = vadd.f32 %v1171, %v1193
      %v1204 = vadd.f32 %v1172, %v1194
      %v1205 = vadd.f32 %v1173, %v1195
      %v1206 = vadd.f32 %v1174, %v1196
      %v1207 = vadd.f32 %v1175, %v1197
      %v1208 = vadd.f32 %v1176, %v1198
      %v1209 = vadd.f32 %v1177, %v1199
      %v1210 = vcombine.high %v308, %v308
      %v1212 = vunpack.c.l.s4 1966171168
      %v1213 = vunpack.c.0.s8 %v1212
      %v1214 = vlaneseq
      %v1215 = vshrl.u32 %v1214, 7
      %v1216 = vsub.s32 %v1213, %v1215
      %v1217 = vrot.slane %v308, %v1216
      %v1219 = vunpack.c.l.s4 1966171168
      %v1220 = vunpack.c.0.s8 %v1219
      %v1221 = vlaneseq
      %v1222 = vshrl.u32 %v1221, 7
      %v1223 = vsub.s32 %v1220, %v1222
      %v1224 = vrot.slane %v1210, %v1223
      %v1225 = vcombine.high %v1217, %v1217
      %v1226 = vcombine.high %v1224, %v1224
      %v1228 = vunpack.c.l.s4 1966171168
      %v1229 = vunpack.c.0.s8 %v1228
      %v1230 = vlaneseq
      %v1231 = vshrl.u32 %v1230, 7
      %v1232 = vsub.s32 %v1229, %v1231
      %v1233 = vrot.slane %v1217, %v1232
      %v1235 = vunpack.c.l.s4 1966171168
      %v1236 = vunpack.c.0.s8 %v1235
      %v1237 = vlaneseq
      %v1238 = vshrl.u32 %v1237, 7
      %v1239 = vsub.s32 %v1236, %v1238
      %v1240 = vrot.slane %v1224, %v1239
      %v1242 = vunpack.c.l.s4 1966171168
      %v1243 = vunpack.c.0.s8 %v1242
      %v1244 = vlaneseq
      %v1245 = vshrl.u32 %v1244, 7
      %v1246 = vsub.s32 %v1243, %v1245
      %v1247 = vrot.slane %v1225, %v1246
      %v1249 = vunpack.c.l.s4 1966171168
      %v1250 = vunpack.c.0.s8 %v1249
      %v1251 = vlaneseq
      %v1252 = vshrl.u32 %v1251, 7
      %v1253 = vsub.s32 %v1250, %v1252
      %v1254 = vrot.slane %v1226, %v1253
      %v1255 = vcombine.high %v1233, %v1233
      %v1256 = vcombine.high %v1240, %v1240
      %v1257 = vcombine.high %v1247, %v1247
      %v1258 = vcombine.high %v1254, %v1254
      %v1260 = vunpack.c.l.s4 1966171168
      %v1261 = vunpack.c.0.s8 %v1260
      %v1262 = vlaneseq
      %v1263 = vshrl.u32 %v1262, 7
      %v1264 = vsub.s32 %v1261, %v1263
      %v1265 = vrot.slane %v309, %v1264
      %v1266 = vcombine.high %v1265, %v1265
      %v1268 = vunpack.c.l.s4 1966171168
      %v1269 = vunpack.c.0.s8 %v1268
      %v1270 = vlaneseq
      %v1271 = vshrl.u32 %v1270, 7
      %v1272 = vsub.s32 %v1269, %v1271
      %v1273 = vrot.slane %v1265, %v1272
      %v1275 = vunpack.c.l.s4 1966171168
      %v1276 = vunpack.c.0.s8 %v1275
      %v1277 = vlaneseq
      %v1278 = vshrl.u32 %v1277, 7
      %v1279 = vsub.s32 %v1276, %v1278
      %v1280 = vrot.slane %v1266, %v1279
      %v1281 = vcombine.high %v1273, %v1273
      %v1282 = vcombine.high %v1280, %v1280
      %s1283 = scalar_lea.vmem %s2, 32
      %v1284 = vld [vmem:[%s1283] sm:$0xff]
      %1286 = vset.pattern.permute.xlu0 0
      %1287 = vperm.xlu0 %1286, %v1284
      %v1288 = vpop.permute.xlu0 %1287
      %v1290 = vlaneseq
      %v1291 = vshrl.u32 %v1290, 7
      %v1292 = vsub.s32 0, %v1291
      %v1293 = vrot.slane %v1233, %v1292
      %v1294 = vlaneseq
      %v1295 = vshrl.u32 %v1294, 7
      %v1296 = vsub.s32 0, %v1295
      %v1297 = vrot.slane %v1247, %v1296
      %v1298 = vlaneseq
      %v1299 = vshrl.u32 %v1298, 7
      %v1300 = vsub.s32 0, %v1299
      %v1301 = vrot.slane %v1255, %v1300
      %v1302 = vlaneseq
      %v1303 = vshrl.u32 %v1302, 7
      %v1304 = vsub.s32 0, %v1303
      %v1305 = vrot.slane %v1257, %v1304
      %v1306 = vlaneseq
      %v1307 = vshrl.u32 %v1306, 7
      %v1308 = vsub.s32 0, %v1307
      %v1309 = vrot.slane %v1240, %v1308
      %v1310 = vlaneseq
      %v1311 = vshrl.u32 %v1310, 7
      %v1312 = vsub.s32 0, %v1311
      %v1313 = vrot.slane %v1254, %v1312
      %v1314 = vlaneseq
      %v1315 = vshrl.u32 %v1314, 7
      %v1316 = vsub.s32 0, %v1315
      %v1317 = vrot.slane %v1256, %v1316
      %v1318 = vlaneseq
      %v1319 = vshrl.u32 %v1318, 7
      %v1320 = vsub.s32 0, %v1319
      %v1321 = vrot.slane %v1258, %v1320
      %v1322 = vlaneseq
      %v1323 = vshrl.u32 %v1322, 7
      %v1324 = vsub.s32 0, %v1323
      %v1325 = vrot.slane %v1273, %v1324
      %v1326 = vlaneseq
      %v1327 = vshrl.u32 %v1326, 7
      %v1328 = vsub.s32 0, %v1327
      %v1329 = vrot.slane %v1280, %v1328
      %v1340 = vmul.f32 %v1288, %v1293
      %v1341 = vmul.f32 %v1288, %v1297
      %v1342 = vmul.f32 %v1288, %v1301
      %v1343 = vmul.f32 %v1288, %v1305
      %v1344 = vmul.f32 %v1288, %v1309
      %v1345 = vmul.f32 %v1288, %v1313
      %v1346 = vmul.f32 %v1288, %v1317
      %v1347 = vmul.f32 %v1288, %v1321
      %v1348 = vmul.f32 %v1288, %v1325
      %v1349 = vmul.f32 %v1288, %v1329
      %v1350 = vadd.f32 %v1200, %v1340
      %v1351 = vadd.f32 %v1201, %v1341
      %v1352 = vadd.f32 %v1202, %v1342
      %v1353 = vadd.f32 %v1203, %v1343
      %v1354 = vadd.f32 %v1204, %v1344
      %v1355 = vadd.f32 %v1205, %v1345
      %v1356 = vadd.f32 %v1206, %v1346
      %v1357 = vadd.f32 %v1207, %v1347
      %v1358 = vadd.f32 %v1208, %v1348
      %v1359 = vadd.f32 %v1209, %v1349
      %s1360 = scalar_lea.vmem %s2, 104
      %v1361 = vld [vmem:[%s1360] sm:$0xff]
      %1363 = vset.pattern.permute.xlu0 0
      %1364 = vperm.xlu0 %1363, %v1361
      %v1365 = vpop.permute.xlu0 %1364
      %v1367 = vlaneseq
      %v1368 = vshrl.u32 %v1367, 7
      %v1369 = vsub.s32 0, %v1368
      %v1370 = vrot.slane %v1281, %v1369
      %v1372 = vmul.f32 %v1365, %v1297
      %v1373 = vmul.f32 %v1365, %v1301
      %v1374 = vmul.f32 %v1365, %v1305
      %v1375 = vmul.f32 %v1365, %v1309
      %v1376 = vmul.f32 %v1365, %v1313
      %v1377 = vmul.f32 %v1365, %v1317
      %v1378 = vmul.f32 %v1365, %v1321
      %v1379 = vmul.f32 %v1365, %v1325
      %v1380 = vmul.f32 %v1365, %v1329
      %v1381 = vmul.f32 %v1365, %v1370
      %v1382 = vadd.f32 %v1350, %v1372
      %v1383 = vadd.f32 %v1351, %v1373
      %v1384 = vadd.f32 %v1352, %v1374
      %v1385 = vadd.f32 %v1353, %v1375
      %v1386 = vadd.f32 %v1354, %v1376
      %v1387 = vadd.f32 %v1355, %v1377
      %v1388 = vadd.f32 %v1356, %v1378
      %v1389 = vadd.f32 %v1357, %v1379
      %v1390 = vadd.f32 %v1358, %v1380
      %v1391 = vadd.f32 %v1359, %v1381
      %s1392 = scalar_lea.vmem %s2, 176
      %v1393 = vld [vmem:[%s1392] sm:$0xff]
      %1395 = vset.pattern.permute.xlu0 0
      %1396 = vperm.xlu0 %1395, %v1393
      %v1397 = vpop.permute.xlu0 %1396
      %v1399 = vlaneseq
      %v1400 = vshrl.u32 %v1399, 7
      %v1401 = vsub.s32 0, %v1400
      %v1402 = vrot.slane %v1282, %v1401
      %v1404 = vmul.f32 %v1397, %v1301
      %v1405 = vmul.f32 %v1397, %v1305
      %v1406 = vmul.f32 %v1397, %v1309
      %v1407 = vmul.f32 %v1397, %v1313
      %v1408 = vmul.f32 %v1397, %v1317
      %v1409 = vmul.f32 %v1397, %v1321
      %v1410 = vmul.f32 %v1397, %v1325
      %v1411 = vmul.f32 %v1397, %v1329
      %v1412 = vmul.f32 %v1397, %v1370
      %v1413 = vmul.f32 %v1397, %v1402
      %v1414 = vadd.f32 %v1382, %v1404
      %v1415 = vadd.f32 %v1383, %v1405
      %v1416 = vadd.f32 %v1384, %v1406
      %v1417 = vadd.f32 %v1385, %v1407
      %v1418 = vadd.f32 %v1386, %v1408
      %v1419 = vadd.f32 %v1387, %v1409
      %v1420 = vadd.f32 %v1388, %v1410
      %v1421 = vadd.f32 %v1389, %v1411
      %v1422 = vadd.f32 %v1390, %v1412
      %v1423 = vadd.f32 %v1391, %v1413
      %1424 = vrot.lane.b32.xlu0 %v308, 127
      %v1425 = vpop.permute.xlu0 %1424
      %1426 = vrot.lane.b32.xlu0 %v309, 127
      %v1427 = vpop.permute.xlu0 %1426
      %v1432 = vcombine.high %v1425, %v1425
      %v1434 = vunpack.c.l.s4 1966171168
      %v1435 = vunpack.c.0.s8 %v1434
      %v1436 = vlaneseq
      %v1437 = vshrl.u32 %v1436, 7
      %v1438 = vsub.s32 %v1435, %v1437
      %v1439 = vrot.slane %v1425, %v1438
      %v1441 = vunpack.c.l.s4 1966171168
      %v1442 = vunpack.c.0.s8 %v1441
      %v1443 = vlaneseq
      %v1444 = vshrl.u32 %v1443, 7
      %v1445 = vsub.s32 %v1442, %v1444
      %v1446 = vrot.slane %v1432, %v1445
      %v1447 = vcombine.high %v1439, %v1439
      %v1448 = vcombine.high %v1446, %v1446
      %v1450 = vunpack.c.l.s4 1966171168
      %v1451 = vunpack.c.0.s8 %v1450
      %v1452 = vlaneseq
      %v1453 = vshrl.u32 %v1452, 7
      %v1454 = vsub.s32 %v1451, %v1453
      %v1455 = vrot.slane %v1439, %v1454
      %v1457 = vunpack.c.l.s4 1966171168
      %v1458 = vunpack.c.0.s8 %v1457
      %v1459 = vlaneseq
      %v1460 = vshrl.u32 %v1459, 7
      %v1461 = vsub.s32 %v1458, %v1460
      %v1462 = vrot.slane %v1446, %v1461
      %v1464 = vunpack.c.l.s4 1966171168
      %v1465 = vunpack.c.0.s8 %v1464
      %v1466 = vlaneseq
      %v1467 = vshrl.u32 %v1466, 7
      %v1468 = vsub.s32 %v1465, %v1467
      %v1469 = vrot.slane %v1447, %v1468
      %v1471 = vunpack.c.l.s4 1966171168
      %v1472 = vunpack.c.0.s8 %v1471
      %v1473 = vlaneseq
      %v1474 = vshrl.u32 %v1473, 7
      %v1475 = vsub.s32 %v1472, %v1474
      %v1476 = vrot.slane %v1448, %v1475
      %v1477 = vcombine.high %v1455, %v1455
      %v1478 = vcombine.high %v1462, %v1462
      %v1479 = vcombine.high %v1469, %v1469
      %v1480 = vcombine.high %v1476, %v1476
      %v1482 = vunpack.c.l.s4 1966171168
      %v1483 = vunpack.c.0.s8 %v1482
      %v1484 = vlaneseq
      %v1485 = vshrl.u32 %v1484, 7
      %v1486 = vsub.s32 %v1483, %v1485
      %v1487 = vrot.slane %v1427, %v1486
      %v1488 = vcombine.high %v1487, %v1487
      %v1490 = vunpack.c.l.s4 1966171168
      %v1491 = vunpack.c.0.s8 %v1490
      %v1492 = vlaneseq
      %v1493 = vshrl.u32 %v1492, 7
      %v1494 = vsub.s32 %v1491, %v1493
      %v1495 = vrot.slane %v1487, %v1494
      %v1497 = vunpack.c.l.s4 1966171168
      %v1498 = vunpack.c.0.s8 %v1497
      %v1499 = vlaneseq
      %v1500 = vshrl.u32 %v1499, 7
      %v1501 = vsub.s32 %v1498, %v1500
      %v1502 = vrot.slane %v1488, %v1501
      %v1503 = vcombine.high %v1495, %v1495
      %v1504 = vcombine.high %v1502, %v1502
      %s1505 = scalar_lea.vmem %s2, 40
      %v1506 = vld [vmem:[%s1505] sm:$0xff]
      %1508 = vset.pattern.permute.xlu0 0
      %1509 = vperm.xlu0 %1508, %v1506
      %v1510 = vpop.permute.xlu0 %1509
      %v1512 = vlaneseq
      %v1513 = vshrl.u32 %v1512, 7
      %v1514 = vsub.s32 0, %v1513
      %v1515 = vrot.slane %v1455, %v1514
      %v1516 = vlaneseq
      %v1517 = vshrl.u32 %v1516, 7
      %v1518 = vsub.s32 0, %v1517
      %v1519 = vrot.slane %v1469, %v1518
      %v1520 = vlaneseq
      %v1521 = vshrl.u32 %v1520, 7
      %v1522 = vsub.s32 0, %v1521
      %v1523 = vrot.slane %v1477, %v1522
      %v1524 = vlaneseq
      %v1525 = vshrl.u32 %v1524, 7
      %v1526 = vsub.s32 0, %v1525
      %v1527 = vrot.slane %v1479, %v1526
      %v1528 = vlaneseq
      %v1529 = vshrl.u32 %v1528, 7
      %v1530 = vsub.s32 0, %v1529
      %v1531 = vrot.slane %v1462, %v1530
      %v1532 = vlaneseq
      %v1533 = vshrl.u32 %v1532, 7
      %v1534 = vsub.s32 0, %v1533
      %v1535 = vrot.slane %v1476, %v1534
      %v1536 = vlaneseq
      %v1537 = vshrl.u32 %v1536, 7
      %v1538 = vsub.s32 0, %v1537
      %v1539 = vrot.slane %v1478, %v1538
      %v1540 = vlaneseq
      %v1541 = vshrl.u32 %v1540, 7
      %v1542 = vsub.s32 0, %v1541
      %v1543 = vrot.slane %v1480, %v1542
      %v1544 = vlaneseq
      %v1545 = vshrl.u32 %v1544, 7
      %v1546 = vsub.s32 0, %v1545
      %v1547 = vrot.slane %v1495, %v1546
      %v1548 = vlaneseq
      %v1549 = vshrl.u32 %v1548, 7
      %v1550 = vsub.s32 0, %v1549
      %v1551 = vrot.slane %v1502, %v1550
      %v1562 = vmul.f32 %v1510, %v1515
      %v1563 = vmul.f32 %v1510, %v1519
      %v1564 = vmul.f32 %v1510, %v1523
      %v1565 = vmul.f32 %v1510, %v1527
      %v1566 = vmul.f32 %v1510, %v1531
      %v1567 = vmul.f32 %v1510, %v1535
      %v1568 = vmul.f32 %v1510, %v1539
      %v1569 = vmul.f32 %v1510, %v1543
      %v1570 = vmul.f32 %v1510, %v1547
      %v1571 = vmul.f32 %v1510, %v1551
      %v1572 = vadd.f32 %v1414, %v1562
      %v1573 = vadd.f32 %v1415, %v1563
      %v1574 = vadd.f32 %v1416, %v1564
      %v1575 = vadd.f32 %v1417, %v1565
      %v1576 = vadd.f32 %v1418, %v1566
      %v1577 = vadd.f32 %v1419, %v1567
      %v1578 = vadd.f32 %v1420, %v1568
      %v1579 = vadd.f32 %v1421, %v1569
      %v1580 = vadd.f32 %v1422, %v1570
      %v1581 = vadd.f32 %v1423, %v1571
      %s1582 = scalar_lea.vmem %s2, 112
      %v1583 = vld [vmem:[%s1582] sm:$0xff]
      %1585 = vset.pattern.permute.xlu0 0
      %1586 = vperm.xlu0 %1585, %v1583
      %v1587 = vpop.permute.xlu0 %1586
      %v1589 = vlaneseq
      %v1590 = vshrl.u32 %v1589, 7
      %v1591 = vsub.s32 0, %v1590
      %v1592 = vrot.slane %v1503, %v1591
      %v1594 = vmul.f32 %v1587, %v1519
      %v1595 = vmul.f32 %v1587, %v1523
      %v1596 = vmul.f32 %v1587, %v1527
      %v1597 = vmul.f32 %v1587, %v1531
      %v1598 = vmul.f32 %v1587, %v1535
      %v1599 = vmul.f32 %v1587, %v1539
      %v1600 = vmul.f32 %v1587, %v1543
      %v1601 = vmul.f32 %v1587, %v1547
      %v1602 = vmul.f32 %v1587, %v1551
      %v1603 = vmul.f32 %v1587, %v1592
      %v1604 = vadd.f32 %v1572, %v1594
      %v1605 = vadd.f32 %v1573, %v1595
      %v1606 = vadd.f32 %v1574, %v1596
      %v1607 = vadd.f32 %v1575, %v1597
      %v1608 = vadd.f32 %v1576, %v1598
      %v1609 = vadd.f32 %v1577, %v1599
      %v1610 = vadd.f32 %v1578, %v1600
      %v1611 = vadd.f32 %v1579, %v1601
      %v1612 = vadd.f32 %v1580, %v1602
      %v1613 = vadd.f32 %v1581, %v1603
      %s1614 = scalar_lea.vmem %s2, 184
      %v1615 = vld [vmem:[%s1614] sm:$0xff]
      %1617 = vset.pattern.permute.xlu0 0
      %1618 = vperm.xlu0 %1617, %v1615
      %v1619 = vpop.permute.xlu0 %1618
      %v1621 = vlaneseq
      %v1622 = vshrl.u32 %v1621, 7
      %v1623 = vsub.s32 0, %v1622
      %v1624 = vrot.slane %v1504, %v1623
      %v1626 = vmul.f32 %v1619, %v1523
      %v1627 = vmul.f32 %v1619, %v1527
      %v1628 = vmul.f32 %v1619, %v1531
      %v1629 = vmul.f32 %v1619, %v1535
      %v1630 = vmul.f32 %v1619, %v1539
      %v1631 = vmul.f32 %v1619, %v1543
      %v1632 = vmul.f32 %v1619, %v1547
      %v1633 = vmul.f32 %v1619, %v1551
      %v1634 = vmul.f32 %v1619, %v1592
      %v1635 = vmul.f32 %v1619, %v1624
      %v1636 = vadd.f32 %v1604, %v1626
      %v1637 = vadd.f32 %v1605, %v1627
      %v1638 = vadd.f32 %v1606, %v1628
      %v1639 = vadd.f32 %v1607, %v1629
      %v1640 = vadd.f32 %v1608, %v1630
      %v1641 = vadd.f32 %v1609, %v1631
      %v1642 = vadd.f32 %v1610, %v1632
      %v1643 = vadd.f32 %v1611, %v1633
      %v1644 = vadd.f32 %v1612, %v1634
      %v1645 = vadd.f32 %v1613, %v1635
      %1646 = vrot.lane.b32.xlu0 %v308, 118
      %v1647 = vpop.permute.xlu0 %1646
      %1648 = vrot.lane.b32.xlu0 %v309, 118
      %v1649 = vpop.permute.xlu0 %1648
      %v1654 = vcombine.high %v1647, %v1647
      %v1656 = vunpack.c.l.s4 1966171168
      %v1657 = vunpack.c.0.s8 %v1656
      %v1658 = vlaneseq
      %v1659 = vshrl.u32 %v1658, 7
      %v1660 = vsub.s32 %v1657, %v1659
      %v1661 = vrot.slane %v1647, %v1660
      %v1663 = vunpack.c.l.s4 1966171168
      %v1664 = vunpack.c.0.s8 %v1663
      %v1665 = vlaneseq
      %v1666 = vshrl.u32 %v1665, 7
      %v1667 = vsub.s32 %v1664, %v1666
      %v1668 = vrot.slane %v1654, %v1667
      %v1669 = vcombine.high %v1661, %v1661
      %v1670 = vcombine.high %v1668, %v1668
      %v1672 = vunpack.c.l.s4 1966171168
      %v1673 = vunpack.c.0.s8 %v1672
      %v1674 = vlaneseq
      %v1675 = vshrl.u32 %v1674, 7
      %v1676 = vsub.s32 %v1673, %v1675
      %v1677 = vrot.slane %v1661, %v1676
      %v1679 = vunpack.c.l.s4 1966171168
      %v1680 = vunpack.c.0.s8 %v1679
      %v1681 = vlaneseq
      %v1682 = vshrl.u32 %v1681, 7
      %v1683 = vsub.s32 %v1680, %v1682
      %v1684 = vrot.slane %v1668, %v1683
      %v1686 = vunpack.c.l.s4 1966171168
      %v1687 = vunpack.c.0.s8 %v1686
      %v1688 = vlaneseq
      %v1689 = vshrl.u32 %v1688, 7
      %v1690 = vsub.s32 %v1687, %v1689
      %v1691 = vrot.slane %v1669, %v1690
      %v1693 = vunpack.c.l.s4 1966171168
      %v1694 = vunpack.c.0.s8 %v1693
      %v1695 = vlaneseq
      %v1696 = vshrl.u32 %v1695, 7
      %v1697 = vsub.s32 %v1694, %v1696
      %v1698 = vrot.slane %v1670, %v1697
      %v1699 = vcombine.high %v1677, %v1677
      %v1700 = vcombine.high %v1684, %v1684
      %v1701 = vcombine.high %v1691, %v1691
      %v1702 = vcombine.high %v1698, %v1698
      %v1704 = vunpack.c.l.s4 1966171168
      %v1705 = vunpack.c.0.s8 %v1704
      %v1706 = vlaneseq
      %v1707 = vshrl.u32 %v1706, 7
      %v1708 = vsub.s32 %v1705, %v1707
      %v1709 = vrot.slane %v1649, %v1708
      %v1710 = vcombine.high %v1709, %v1709
      %v1712 = vunpack.c.l.s4 1966171168
      %v1713 = vunpack.c.0.s8 %v1712
      %v1714 = vlaneseq
      %v1715 = vshrl.u32 %v1714, 7
      %v1716 = vsub.s32 %v1713, %v1715
      %v1717 = vrot.slane %v1709, %v1716
      %v1719 = vunpack.c.l.s4 1966171168
      %v1720 = vunpack.c.0.s8 %v1719
      %v1721 = vlaneseq
      %v1722 = vshrl.u32 %v1721, 7
      %v1723 = vsub.s32 %v1720, %v1722
      %v1724 = vrot.slane %v1710, %v1723
      %v1725 = vcombine.high %v1717, %v1717
      %v1726 = vcombine.high %v1724, %v1724
      %s1727 = scalar_lea.vmem %s2, 48
      %v1728 = vld [vmem:[%s1727] sm:$0xff]
      %1730 = vset.pattern.permute.xlu0 0
      %1731 = vperm.xlu0 %1730, %v1728
      %v1732 = vpop.permute.xlu0 %1731
      %v1734 = vlaneseq
      %v1735 = vshrl.u32 %v1734, 7
      %v1736 = vsub.s32 0, %v1735
      %v1737 = vrot.slane %v1677, %v1736
      %v1738 = vlaneseq
      %v1739 = vshrl.u32 %v1738, 7
      %v1740 = vsub.s32 0, %v1739
      %v1741 = vrot.slane %v1691, %v1740
      %v1742 = vlaneseq
      %v1743 = vshrl.u32 %v1742, 7
      %v1744 = vsub.s32 0, %v1743
      %v1745 = vrot.slane %v1699, %v1744
      %v1746 = vlaneseq
      %v1747 = vshrl.u32 %v1746, 7
      %v1748 = vsub.s32 0, %v1747
      %v1749 = vrot.slane %v1701, %v1748
      %v1750 = vlaneseq
      %v1751 = vshrl.u32 %v1750, 7
      %v1752 = vsub.s32 0, %v1751
      %v1753 = vrot.slane %v1684, %v1752
      %v1754 = vlaneseq
      %v1755 = vshrl.u32 %v1754, 7
      %v1756 = vsub.s32 0, %v1755
      %v1757 = vrot.slane %v1698, %v1756
      %v1758 = vlaneseq
      %v1759 = vshrl.u32 %v1758, 7
      %v1760 = vsub.s32 0, %v1759
      %v1761 = vrot.slane %v1700, %v1760
      %v1762 = vlaneseq
      %v1763 = vshrl.u32 %v1762, 7
      %v1764 = vsub.s32 0, %v1763
      %v1765 = vrot.slane %v1702, %v1764
      %v1766 = vlaneseq
      %v1767 = vshrl.u32 %v1766, 7
      %v1768 = vsub.s32 0, %v1767
      %v1769 = vrot.slane %v1717, %v1768
      %v1770 = vlaneseq
      %v1771 = vshrl.u32 %v1770, 7
      %v1772 = vsub.s32 0, %v1771
      %v1773 = vrot.slane %v1724, %v1772
      %v1784 = vmul.f32 %v1732, %v1737
      %v1785 = vmul.f32 %v1732, %v1741
      %v1786 = vmul.f32 %v1732, %v1745
      %v1787 = vmul.f32 %v1732, %v1749
      %v1788 = vmul.f32 %v1732, %v1753
      %v1789 = vmul.f32 %v1732, %v1757
      %v1790 = vmul.f32 %v1732, %v1761
      %v1791 = vmul.f32 %v1732, %v1765
      %v1792 = vmul.f32 %v1732, %v1769
      %v1793 = vmul.f32 %v1732, %v1773
      %v1794 = vadd.f32 %v1636, %v1784
      %v1795 = vadd.f32 %v1637, %v1785
      %v1796 = vadd.f32 %v1638, %v1786
      %v1797 = vadd.f32 %v1639, %v1787
      %v1798 = vadd.f32 %v1640, %v1788
      %v1799 = vadd.f32 %v1641, %v1789
      %v1800 = vadd.f32 %v1642, %v1790
      %v1801 = vadd.f32 %v1643, %v1791
      %v1802 = vadd.f32 %v1644, %v1792
      %v1803 = vadd.f32 %v1645, %v1793
      %s1804 = scalar_lea.vmem %s2, 120
      %v1805 = vld [vmem:[%s1804] sm:$0xff]
      %1807 = vset.pattern.permute.xlu0 0
      %1808 = vperm.xlu0 %1807, %v1805
      %v1809 = vpop.permute.xlu0 %1808
      %v1811 = vlaneseq
      %v1812 = vshrl.u32 %v1811, 7
      %v1813 = vsub.s32 0, %v1812
      %v1814 = vrot.slane %v1725, %v1813
      %v1816 = vmul.f32 %v1809, %v1741
      %v1817 = vmul.f32 %v1809, %v1745
      %v1818 = vmul.f32 %v1809, %v1749
      %v1819 = vmul.f32 %v1809, %v1753
      %v1820 = vmul.f32 %v1809, %v1757
      %v1821 = vmul.f32 %v1809, %v1761
      %v1822 = vmul.f32 %v1809, %v1765
      %v1823 = vmul.f32 %v1809, %v1769
      %v1824 = vmul.f32 %v1809, %v1773
      %v1825 = vmul.f32 %v1809, %v1814
      %v1826 = vadd.f32 %v1794, %v1816
      %v1827 = vadd.f32 %v1795, %v1817
      %v1828 = vadd.f32 %v1796, %v1818
      %v1829 = vadd.f32 %v1797, %v1819
      %v1830 = vadd.f32 %v1798, %v1820
      %v1831 = vadd.f32 %v1799, %v1821
      %v1832 = vadd.f32 %v1800, %v1822
      %v1833 = vadd.f32 %v1801, %v1823
      %v1834 = vadd.f32 %v1802, %v1824
      %v1835 = vadd.f32 %v1803, %v1825
      %s1836 = scalar_lea.vmem %s2, 192
      %v1837 = vld [vmem:[%s1836] sm:$0xff]
      %1839 = vset.pattern.permute.xlu0 0
      %1840 = vperm.xlu0 %1839, %v1837
      %v1841 = vpop.permute.xlu0 %1840
      %v1843 = vlaneseq
      %v1844 = vshrl.u32 %v1843, 7
      %v1845 = vsub.s32 0, %v1844
      %v1846 = vrot.slane %v1726, %v1845
      %v1848 = vmul.f32 %v1841, %v1745
      %v1849 = vmul.f32 %v1841, %v1749
      %v1850 = vmul.f32 %v1841, %v1753
      %v1851 = vmul.f32 %v1841, %v1757
      %v1852 = vmul.f32 %v1841, %v1761
      %v1853 = vmul.f32 %v1841, %v1765
      %v1854 = vmul.f32 %v1841, %v1769
      %v1855 = vmul.f32 %v1841, %v1773
      %v1856 = vmul.f32 %v1841, %v1814
      %v1857 = vmul.f32 %v1841, %v1846
      %v1858 = vadd.f32 %v1826, %v1848
      %v1859 = vadd.f32 %v1827, %v1849
      %v1860 = vadd.f32 %v1828, %v1850
      %v1861 = vadd.f32 %v1829, %v1851
      %v1862 = vadd.f32 %v1830, %v1852
      %v1863 = vadd.f32 %v1831, %v1853
      %v1864 = vadd.f32 %v1832, %v1854
      %v1865 = vadd.f32 %v1833, %v1855
      %v1866 = vadd.f32 %v1834, %v1856
      %v1867 = vadd.f32 %v1835, %v1857
      %1868 = vrot.lane.b32.xlu0 %v308, 117
      %v1869 = vpop.permute.xlu0 %1868
      %1870 = vrot.lane.b32.xlu0 %v309, 117
      %v1871 = vpop.permute.xlu0 %1870
      %v1876 = vcombine.high %v1869, %v1869
      %v1878 = vunpack.c.l.s4 1966171168
      %v1879 = vunpack.c.0.s8 %v1878
      %v1880 = vlaneseq
      %v1881 = vshrl.u32 %v1880, 7
      %v1882 = vsub.s32 %v1879, %v1881
      %v1883 = vrot.slane %v1869, %v1882
      %v1885 = vunpack.c.l.s4 1966171168
      %v1886 = vunpack.c.0.s8 %v1885
      %v1887 = vlaneseq
      %v1888 = vshrl.u32 %v1887, 7
      %v1889 = vsub.s32 %v1886, %v1888
      %v1890 = vrot.slane %v1876, %v1889
      %v1891 = vcombine.high %v1883, %v1883
      %v1892 = vcombine.high %v1890, %v1890
      %v1894 = vunpack.c.l.s4 1966171168
      %v1895 = vunpack.c.0.s8 %v1894
      %v1896 = vlaneseq
      %v1897 = vshrl.u32 %v1896, 7
      %v1898 = vsub.s32 %v1895, %v1897
      %v1899 = vrot.slane %v1883, %v1898
      %v1901 = vunpack.c.l.s4 1966171168
      %v1902 = vunpack.c.0.s8 %v1901
      %v1903 = vlaneseq
      %v1904 = vshrl.u32 %v1903, 7
      %v1905 = vsub.s32 %v1902, %v1904
      %v1906 = vrot.slane %v1890, %v1905
      %v1908 = vunpack.c.l.s4 1966171168
      %v1909 = vunpack.c.0.s8 %v1908
      %v1910 = vlaneseq
      %v1911 = vshrl.u32 %v1910, 7
      %v1912 = vsub.s32 %v1909, %v1911
      %v1913 = vrot.slane %v1891, %v1912
      %v1915 = vunpack.c.l.s4 1966171168
      %v1916 = vunpack.c.0.s8 %v1915
      %v1917 = vlaneseq
      %v1918 = vshrl.u32 %v1917, 7
      %v1919 = vsub.s32 %v1916, %v1918
      %v1920 = vrot.slane %v1892, %v1919
      %v1921 = vcombine.high %v1899, %v1899
      %v1922 = vcombine.high %v1906, %v1906
      %v1923 = vcombine.high %v1913, %v1913
      %v1924 = vcombine.high %v1920, %v1920
      %v1926 = vunpack.c.l.s4 1966171168
      %v1927 = vunpack.c.0.s8 %v1926
      %v1928 = vlaneseq
      %v1929 = vshrl.u32 %v1928, 7
      %v1930 = vsub.s32 %v1927, %v1929
      %v1931 = vrot.slane %v1871, %v1930
      %v1932 = vcombine.high %v1931, %v1931
      %v1934 = vunpack.c.l.s4 1966171168
      %v1935 = vunpack.c.0.s8 %v1934
      %v1936 = vlaneseq
      %v1937 = vshrl.u32 %v1936, 7
      %v1938 = vsub.s32 %v1935, %v1937
      %v1939 = vrot.slane %v1931, %v1938
      %v1941 = vunpack.c.l.s4 1966171168
      %v1942 = vunpack.c.0.s8 %v1941
      %v1943 = vlaneseq
      %v1944 = vshrl.u32 %v1943, 7
      %v1945 = vsub.s32 %v1942, %v1944
      %v1946 = vrot.slane %v1932, %v1945
      %v1947 = vcombine.high %v1939, %v1939
      %v1948 = vcombine.high %v1946, %v1946
      %s1949 = scalar_lea.vmem %s2, 56
      %v1950 = vld [vmem:[%s1949] sm:$0xff]
      %1952 = vset.pattern.permute.xlu0 0
      %1953 = vperm.xlu0 %1952, %v1950
      %v1954 = vpop.permute.xlu0 %1953
      %v1956 = vlaneseq
      %v1957 = vshrl.u32 %v1956, 7
      %v1958 = vsub.s32 0, %v1957
      %v1959 = vrot.slane %v1899, %v1958
      %v1960 = vlaneseq
      %v1961 = vshrl.u32 %v1960, 7
      %v1962 = vsub.s32 0, %v1961
      %v1963 = vrot.slane %v1913, %v1962
      %v1964 = vlaneseq
      %v1965 = vshrl.u32 %v1964, 7
      %v1966 = vsub.s32 0, %v1965
      %v1967 = vrot.slane %v1921, %v1966
      %v1968 = vlaneseq
      %v1969 = vshrl.u32 %v1968, 7
      %v1970 = vsub.s32 0, %v1969
      %v1971 = vrot.slane %v1923, %v1970
      %v1972 = vlaneseq
      %v1973 = vshrl.u32 %v1972, 7
      %v1974 = vsub.s32 0, %v1973
      %v1975 = vrot.slane %v1906, %v1974
      %v1976 = vlaneseq
      %v1977 = vshrl.u32 %v1976, 7
      %v1978 = vsub.s32 0, %v1977
      %v1979 = vrot.slane %v1920, %v1978
      %v1980 = vlaneseq
      %v1981 = vshrl.u32 %v1980, 7
      %v1982 = vsub.s32 0, %v1981
      %v1983 = vrot.slane %v1922, %v1982
      %v1984 = vlaneseq
      %v1985 = vshrl.u32 %v1984, 7
      %v1986 = vsub.s32 0, %v1985
      %v1987 = vrot.slane %v1924, %v1986
      %v1988 = vlaneseq
      %v1989 = vshrl.u32 %v1988, 7
      %v1990 = vsub.s32 0, %v1989
      %v1991 = vrot.slane %v1939, %v1990
      %v1992 = vlaneseq
      %v1993 = vshrl.u32 %v1992, 7
      %v1994 = vsub.s32 0, %v1993
      %v1995 = vrot.slane %v1946, %v1994
      %v2006 = vmul.f32 %v1954, %v1959
      %v2007 = vmul.f32 %v1954, %v1963
      %v2008 = vmul.f32 %v1954, %v1967
      %v2009 = vmul.f32 %v1954, %v1971
      %v2010 = vmul.f32 %v1954, %v1975
      %v2011 = vmul.f32 %v1954, %v1979
      %v2012 = vmul.f32 %v1954, %v1983
      %v2013 = vmul.f32 %v1954, %v1987
      %v2014 = vmul.f32 %v1954, %v1991
      %v2015 = vmul.f32 %v1954, %v1995
      %v2016 = vadd.f32 %v1858, %v2006
      %v2017 = vadd.f32 %v1859, %v2007
      %v2018 = vadd.f32 %v1860, %v2008
      %v2019 = vadd.f32 %v1861, %v2009
      %v2020 = vadd.f32 %v1862, %v2010
      %v2021 = vadd.f32 %v1863, %v2011
      %v2022 = vadd.f32 %v1864, %v2012
      %v2023 = vadd.f32 %v1865, %v2013
      %v2024 = vadd.f32 %v1866, %v2014
      %v2025 = vadd.f32 %v1867, %v2015
      %s2026 = scalar_lea.vmem %s2, 128
      %v2027 = vld [vmem:[%s2026] sm:$0xff]
      %2029 = vset.pattern.permute.xlu0 0
      %2030 = vperm.xlu0 %2029, %v2027
      %v2031 = vpop.permute.xlu0 %2030
      %v2033 = vlaneseq
      %v2034 = vshrl.u32 %v2033, 7
      %v2035 = vsub.s32 0, %v2034
      %v2036 = vrot.slane %v1947, %v2035
      %v2038 = vmul.f32 %v2031, %v1963
      %v2039 = vmul.f32 %v2031, %v1967
      %v2040 = vmul.f32 %v2031, %v1971
      %v2041 = vmul.f32 %v2031, %v1975
      %v2042 = vmul.f32 %v2031, %v1979
      %v2043 = vmul.f32 %v2031, %v1983
      %v2044 = vmul.f32 %v2031, %v1987
      %v2045 = vmul.f32 %v2031, %v1991
      %v2046 = vmul.f32 %v2031, %v1995
      %v2047 = vmul.f32 %v2031, %v2036
      %v2048 = vadd.f32 %v2016, %v2038
      %v2049 = vadd.f32 %v2017, %v2039
      %v2050 = vadd.f32 %v2018, %v2040
      %v2051 = vadd.f32 %v2019, %v2041
      %v2052 = vadd.f32 %v2020, %v2042
      %v2053 = vadd.f32 %v2021, %v2043
      %v2054 = vadd.f32 %v2022, %v2044
      %v2055 = vadd.f32 %v2023, %v2045
      %v2056 = vadd.f32 %v2024, %v2046
      %v2057 = vadd.f32 %v2025, %v2047
      %s2058 = scalar_lea.vmem %s2, 200
      %v2059 = vld [vmem:[%s2058] sm:$0xff]
      %2061 = vset.pattern.permute.xlu0 0
      %2062 = vperm.xlu0 %2061, %v2059
      %v2063 = vpop.permute.xlu0 %2062
      %v2065 = vlaneseq
      %v2066 = vshrl.u32 %v2065, 7
      %v2067 = vsub.s32 0, %v2066
      %v2068 = vrot.slane %v1948, %v2067
      %v2070 = vmul.f32 %v2063, %v1967
      %v2071 = vmul.f32 %v2063, %v1971
      %v2072 = vmul.f32 %v2063, %v1975
      %v2073 = vmul.f32 %v2063, %v1979
      %v2074 = vmul.f32 %v2063, %v1983
      %v2075 = vmul.f32 %v2063, %v1987
      %v2076 = vmul.f32 %v2063, %v1991
      %v2077 = vmul.f32 %v2063, %v1995
      %v2078 = vmul.f32 %v2063, %v2036
      %v2079 = vmul.f32 %v2063, %v2068
      %v2080 = vadd.f32 %v2048, %v2070
      %v2081 = vadd.f32 %v2049, %v2071
      %v2082 = vadd.f32 %v2050, %v2072
      %v2083 = vadd.f32 %v2051, %v2073
      %v2084 = vadd.f32 %v2052, %v2074
      %v2085 = vadd.f32 %v2053, %v2075
      %v2086 = vadd.f32 %v2054, %v2076
      %v2087 = vadd.f32 %v2055, %v2077
      %v2088 = vadd.f32 %v2056, %v2078
      %v2089 = vadd.f32 %v2057, %v2079
      %2090 = vrot.lane.b32.xlu0 %v308, 116
      %v2091 = vpop.permute.xlu0 %2090
      %2092 = vrot.lane.b32.xlu0 %v309, 116
      %v2093 = vpop.permute.xlu0 %2092
      %v2098 = vcombine.high %v2091, %v2091
      %v2100 = vunpack.c.l.s4 1966171168
      %v2101 = vunpack.c.0.s8 %v2100
      %v2102 = vlaneseq
      %v2103 = vshrl.u32 %v2102, 7
      %v2104 = vsub.s32 %v2101, %v2103
      %v2105 = vrot.slane %v2091, %v2104
      %v2107 = vunpack.c.l.s4 1966171168
      %v2108 = vunpack.c.0.s8 %v2107
      %v2109 = vlaneseq
      %v2110 = vshrl.u32 %v2109, 7
      %v2111 = vsub.s32 %v2108, %v2110
      %v2112 = vrot.slane %v2098, %v2111
      %v2113 = vcombine.high %v2105, %v2105
      %v2114 = vcombine.high %v2112, %v2112
      %v2116 = vunpack.c.l.s4 1966171168
      %v2117 = vunpack.c.0.s8 %v2116
      %v2118 = vlaneseq
      %v2119 = vshrl.u32 %v2118, 7
      %v2120 = vsub.s32 %v2117, %v2119
      %v2121 = vrot.slane %v2105, %v2120
      %v2123 = vunpack.c.l.s4 1966171168
      %v2124 = vunpack.c.0.s8 %v2123
      %v2125 = vlaneseq
      %v2126 = vshrl.u32 %v2125, 7
      %v2127 = vsub.s32 %v2124, %v2126
      %v2128 = vrot.slane %v2112, %v2127
      %v2130 = vunpack.c.l.s4 1966171168
      %v2131 = vunpack.c.0.s8 %v2130
      %v2132 = vlaneseq
      %v2133 = vshrl.u32 %v2132, 7
      %v2134 = vsub.s32 %v2131, %v2133
      %v2135 = vrot.slane %v2113, %v2134
      %v2137 = vunpack.c.l.s4 1966171168
      %v2138 = vunpack.c.0.s8 %v2137
      %v2139 = vlaneseq
      %v2140 = vshrl.u32 %v2139, 7
      %v2141 = vsub.s32 %v2138, %v2140
      %v2142 = vrot.slane %v2114, %v2141
      %v2143 = vcombine.high %v2121, %v2121
      %v2144 = vcombine.high %v2128, %v2128
      %v2145 = vcombine.high %v2135, %v2135
      %v2146 = vcombine.high %v2142, %v2142
      %v2148 = vunpack.c.l.s4 1966171168
      %v2149 = vunpack.c.0.s8 %v2148
      %v2150 = vlaneseq
      %v2151 = vshrl.u32 %v2150, 7
      %v2152 = vsub.s32 %v2149, %v2151
      %v2153 = vrot.slane %v2093, %v2152
      %v2154 = vcombine.high %v2153, %v2153
      %v2156 = vunpack.c.l.s4 1966171168
      %v2157 = vunpack.c.0.s8 %v2156
      %v2158 = vlaneseq
      %v2159 = vshrl.u32 %v2158, 7
      %v2160 = vsub.s32 %v2157, %v2159
      %v2161 = vrot.slane %v2153, %v2160
      %v2163 = vunpack.c.l.s4 1966171168
      %v2164 = vunpack.c.0.s8 %v2163
      %v2165 = vlaneseq
      %v2166 = vshrl.u32 %v2165, 7
      %v2167 = vsub.s32 %v2164, %v2166
      %v2168 = vrot.slane %v2154, %v2167
      %v2169 = vcombine.high %v2161, %v2161
      %v2170 = vcombine.high %v2168, %v2168
      %s2171 = scalar_lea.vmem %s2, 64
      %v2172 = vld [vmem:[%s2171] sm:$0xff]
      %2174 = vset.pattern.permute.xlu0 0
      %2175 = vperm.xlu0 %2174, %v2172
      %v2176 = vpop.permute.xlu0 %2175
      %v2178 = vlaneseq
      %v2179 = vshrl.u32 %v2178, 7
      %v2180 = vsub.s32 0, %v2179
      %v2181 = vrot.slane %v2121, %v2180
      %v2182 = vlaneseq
      %v2183 = vshrl.u32 %v2182, 7
      %v2184 = vsub.s32 0, %v2183
      %v2185 = vrot.slane %v2135, %v2184
      %v2186 = vlaneseq
      %v2187 = vshrl.u32 %v2186, 7
      %v2188 = vsub.s32 0, %v2187
      %v2189 = vrot.slane %v2143, %v2188
      %v2190 = vlaneseq
      %v2191 = vshrl.u32 %v2190, 7
      %v2192 = vsub.s32 0, %v2191
      %v2193 = vrot.slane %v2145, %v2192
      %v2194 = vlaneseq
      %v2195 = vshrl.u32 %v2194, 7
      %v2196 = vsub.s32 0, %v2195
      %v2197 = vrot.slane %v2128, %v2196
      %v2198 = vlaneseq
      %v2199 = vshrl.u32 %v2198, 7
      %v2200 = vsub.s32 0, %v2199
      %v2201 = vrot.slane %v2142, %v2200
      %v2202 = vlaneseq
      %v2203 = vshrl.u32 %v2202, 7
      %v2204 = vsub.s32 0, %v2203
      %v2205 = vrot.slane %v2144, %v2204
      %v2206 = vlaneseq
      %v2207 = vshrl.u32 %v2206, 7
      %v2208 = vsub.s32 0, %v2207
      %v2209 = vrot.slane %v2146, %v2208
      %v2210 = vlaneseq
      %v2211 = vshrl.u32 %v2210, 7
      %v2212 = vsub.s32 0, %v2211
      %v2213 = vrot.slane %v2161, %v2212
      %v2214 = vlaneseq
      %v2215 = vshrl.u32 %v2214, 7
      %v2216 = vsub.s32 0, %v2215
      %v2217 = vrot.slane %v2168, %v2216
      %v2228 = vmul.f32 %v2176, %v2181
      %v2229 = vmul.f32 %v2176, %v2185
      %v2230 = vmul.f32 %v2176, %v2189
      %v2231 = vmul.f32 %v2176, %v2193
      %v2232 = vmul.f32 %v2176, %v2197
      %v2233 = vmul.f32 %v2176, %v2201
      %v2234 = vmul.f32 %v2176, %v2205
      %v2235 = vmul.f32 %v2176, %v2209
      %v2236 = vmul.f32 %v2176, %v2213
      %v2237 = vmul.f32 %v2176, %v2217
      %v2238 = vadd.f32 %v2080, %v2228
      %v2239 = vadd.f32 %v2081, %v2229
      %v2240 = vadd.f32 %v2082, %v2230
      %v2241 = vadd.f32 %v2083, %v2231
      %v2242 = vadd.f32 %v2084, %v2232
      %v2243 = vadd.f32 %v2085, %v2233
      %v2244 = vadd.f32 %v2086, %v2234
      %v2245 = vadd.f32 %v2087, %v2235
      %v2246 = vadd.f32 %v2088, %v2236
      %v2247 = vadd.f32 %v2089, %v2237
      %s2248 = scalar_lea.vmem %s2, 136
      %v2249 = vld [vmem:[%s2248] sm:$0xff]
      %2251 = vset.pattern.permute.xlu0 0
      %2252 = vperm.xlu0 %2251, %v2249
      %v2253 = vpop.permute.xlu0 %2252
      %v2255 = vlaneseq
      %v2256 = vshrl.u32 %v2255, 7
      %v2257 = vsub.s32 0, %v2256
      %v2258 = vrot.slane %v2169, %v2257
      %v2260 = vmul.f32 %v2253, %v2185
      %v2261 = vmul.f32 %v2253, %v2189
      %v2262 = vmul.f32 %v2253, %v2193
      %v2263 = vmul.f32 %v2253, %v2197
      %v2264 = vmul.f32 %v2253, %v2201
      %v2265 = vmul.f32 %v2253, %v2205
      %v2266 = vmul.f32 %v2253, %v2209
      %v2267 = vmul.f32 %v2253, %v2213
      %v2268 = vmul.f32 %v2253, %v2217
      %v2269 = vmul.f32 %v2253, %v2258
      %v2270 = vadd.f32 %v2238, %v2260
      %v2271 = vadd.f32 %v2239, %v2261
      %v2272 = vadd.f32 %v2240, %v2262
      %v2273 = vadd.f32 %v2241, %v2263
      %v2274 = vadd.f32 %v2242, %v2264
      %v2275 = vadd.f32 %v2243, %v2265
      %v2276 = vadd.f32 %v2244, %v2266
      %v2277 = vadd.f32 %v2245, %v2267
      %v2278 = vadd.f32 %v2246, %v2268
      %v2279 = vadd.f32 %v2247, %v2269
      %s2280 = scalar_lea.vmem %s2, 208
      %v2281 = vld [vmem:[%s2280] sm:$0xff]
      %2283 = vset.pattern.permute.xlu0 0
      %2284 = vperm.xlu0 %2283, %v2281
      %v2285 = vpop.permute.xlu0 %2284
      %v2287 = vlaneseq
      %v2288 = vshrl.u32 %v2287, 7
      %v2289 = vsub.s32 0, %v2288
      %v2290 = vrot.slane %v2170, %v2289
      %v2292 = vmul.f32 %v2285, %v2189
      %v2293 = vmul.f32 %v2285, %v2193
      %v2294 = vmul.f32 %v2285, %v2197
      %v2295 = vmul.f32 %v2285, %v2201
      %v2296 = vmul.f32 %v2285, %v2205
      %v2297 = vmul.f32 %v2285, %v2209
      %v2298 = vmul.f32 %v2285, %v2213
      %v2299 = vmul.f32 %v2285, %v2217
      %v2300 = vmul.f32 %v2285, %v2258
      %v2301 = vmul.f32 %v2285, %v2290
      %v2302 = vadd.f32 %v2270, %v2292
      %v2303 = vadd.f32 %v2271, %v2293
      %v2304 = vadd.f32 %v2272, %v2294
      %v2305 = vadd.f32 %v2273, %v2295
      %v2306 = vadd.f32 %v2274, %v2296
      %v2307 = vadd.f32 %v2275, %v2297
      %v2308 = vadd.f32 %v2276, %v2298
      %v2309 = vadd.f32 %v2277, %v2299
      %v2310 = vadd.f32 %v2278, %v2300
      %v2311 = vadd.f32 %v2279, %v2301
      %v2312 = vld [vmem:[%s3] sm:$0xff]
      %2314 = vset.pattern.permute.xlu0 0
      %2315 = vperm.xlu0 %2314, %v2312
      %v2316 = vpop.permute.xlu0 %2315
      %v2318 = vadd.f32 %v2302, %v2316
      %v2319 = vadd.f32 %v2303, %v2316
      %v2320 = vadd.f32 %v2304, %v2316
      %v2321 = vadd.f32 %v2305, %v2316
      %v2322 = vadd.f32 %v2306, %v2316
      %v2323 = vadd.f32 %v2307, %v2316
      %v2324 = vadd.f32 %v2308, %v2316
      %v2325 = vadd.f32 %v2309, %v2316
      %v2326 = vadd.f32 %v2310, %v2316
      %v2327 = vadd.f32 %v2311, %v2316
      %v2328 = vmax.f32 %v2318, 0.0
      %v2329 = vmax.f32 %v2319, 0.0
      %v2330 = vmax.f32 %v2320, 0.0
      %v2331 = vmax.f32 %v2321, 0.0
      %v2332 = vmax.f32 %v2322, 0.0
      %v2333 = vmax.f32 %v2323, 0.0
      %v2334 = vmax.f32 %v2324, 0.0
      %v2335 = vmax.f32 %v2325, 0.0
      %v2336 = vmax.f32 %v2326, 0.0
      %v2337 = vmax.f32 %v2327, 0.0
      %v2348 = vlaneseq
      %v2349 = vshrl.u32 %v2348, 7
      %v2350 = vsub.s32 0, %v2349
      %v2351 = vrot.slane %v310, %v2350
      %v2352 = vlaneseq
      %v2353 = vshrl.u32 %v2352, 7
      %v2354 = vsub.s32 0, %v2353
      %v2355 = vrot.slane %v311, %v2354
      %v2356 = vlaneseq
      %v2357 = vshrl.u32 %v2356, 7
      %v2358 = vsub.s32 0, %v2357
      %v2359 = vrot.slane %v312, %v2358
      %v2360 = vlaneseq
      %v2361 = vshrl.u32 %v2360, 7
      %v2362 = vsub.s32 0, %v2361
      %v2363 = vrot.slane %v313, %v2362
      %v2364 = vlaneseq
      %v2365 = vshrl.u32 %v2364, 7
      %v2366 = vsub.s32 0, %v2365
      %v2367 = vrot.slane %v314, %v2366
      %v2368 = vlaneseq
      %v2369 = vshrl.u32 %v2368, 7
      %v2370 = vsub.s32 0, %v2369
      %v2371 = vrot.slane %v315, %v2370
      %v2372 = vlaneseq
      %v2373 = vshrl.u32 %v2372, 7
      %v2374 = vsub.s32 0, %v2373
      %v2375 = vrot.slane %v316, %v2374
      %v2376 = vlaneseq
      %v2377 = vshrl.u32 %v2376, 7
      %v2378 = vsub.s32 0, %v2377
      %v2379 = vrot.slane %v317, %v2378
      %v2380 = vlaneseq
      %v2381 = vshrl.u32 %v2380, 7
      %v2382 = vsub.s32 0, %v2381
      %v2383 = vrot.slane %v318, %v2382
      %v2384 = vlaneseq
      %v2385 = vshrl.u32 %v2384, 7
      %v2386 = vsub.s32 0, %v2385
      %v2387 = vrot.slane %v319, %v2386
      %v2398 = vmul.f32 %v2328, %v2351
      %v2399 = vmul.f32 %v2329, %v2355
      %v2400 = vmul.f32 %v2330, %v2359
      %v2401 = vmul.f32 %v2331, %v2363
      %v2402 = vmul.f32 %v2332, %v2367
      %v2403 = vmul.f32 %v2333, %v2371
      %v2404 = vmul.f32 %v2334, %v2375
      %v2405 = vmul.f32 %v2335, %v2379
      %v2406 = vmul.f32 %v2336, %v2383
      %v2407 = vmul.f32 %v2337, %v2387
      %2418 = vrot.lane.b32.xlu0 %v2398, 12
      %v2419 = vpop.permute.xlu0 %2418
      %2420 = vrot.lane.b32.xlu0 %v2399, 12
      %v2421 = vpop.permute.xlu0 %2420
      %2422 = vrot.lane.b32.xlu0 %v2400, 12
      %v2423 = vpop.permute.xlu0 %2422
      %2424 = vrot.lane.b32.xlu0 %v2401, 12
      %v2425 = vpop.permute.xlu0 %2424
      %2426 = vrot.lane.b32.xlu0 %v2402, 12
      %v2427 = vpop.permute.xlu0 %2426
      %2428 = vrot.lane.b32.xlu0 %v2403, 12
      %v2429 = vpop.permute.xlu0 %2428
      %2430 = vrot.lane.b32.xlu0 %v2404, 12
      %v2431 = vpop.permute.xlu0 %2430
      %2432 = vrot.lane.b32.xlu0 %v2405, 12
      %v2433 = vpop.permute.xlu0 %2432
      %2434 = vrot.lane.b32.xlu0 %v2406, 12
      %v2435 = vpop.permute.xlu0 %2434
      %2436 = vrot.lane.b32.xlu0 %v2407, 12
      %v2437 = vpop.permute.xlu0 %2436
      %2448 = vrot.lane.b32.xlu0 %v2398, 11
      %v2449 = vpop.permute.xlu0 %2448
      %2450 = vrot.lane.b32.xlu0 %v2399, 11
      %v2451 = vpop.permute.xlu0 %2450
      %2452 = vrot.lane.b32.xlu0 %v2400, 11
      %v2453 = vpop.permute.xlu0 %2452
      %2454 = vrot.lane.b32.xlu0 %v2401, 11
      %v2455 = vpop.permute.xlu0 %2454
      %2456 = vrot.lane.b32.xlu0 %v2402, 11
      %v2457 = vpop.permute.xlu0 %2456
      %2458 = vrot.lane.b32.xlu0 %v2403, 11
      %v2459 = vpop.permute.xlu0 %2458
      %2460 = vrot.lane.b32.xlu0 %v2404, 11
      %v2461 = vpop.permute.xlu0 %2460
      %2462 = vrot.lane.b32.xlu0 %v2405, 11
      %v2463 = vpop.permute.xlu0 %2462
      %2464 = vrot.lane.b32.xlu0 %v2406, 11
      %v2465 = vpop.permute.xlu0 %2464
      %2466 = vrot.lane.b32.xlu0 %v2407, 11
      %v2467 = vpop.permute.xlu0 %2466
      %2478 = vrot.lane.b32.xlu0 %v2398, 10
      %v2479 = vpop.permute.xlu0 %2478
      %2480 = vrot.lane.b32.xlu0 %v2399, 10
      %v2481 = vpop.permute.xlu0 %2480
      %2482 = vrot.lane.b32.xlu0 %v2400, 10
      %v2483 = vpop.permute.xlu0 %2482
      %2484 = vrot.lane.b32.xlu0 %v2401, 10
      %v2485 = vpop.permute.xlu0 %2484
      %2486 = vrot.lane.b32.xlu0 %v2402, 10
      %v2487 = vpop.permute.xlu0 %2486
      %2488 = vrot.lane.b32.xlu0 %v2403, 10
      %v2489 = vpop.permute.xlu0 %2488
      %2490 = vrot.lane.b32.xlu0 %v2404, 10
      %v2491 = vpop.permute.xlu0 %2490
      %2492 = vrot.lane.b32.xlu0 %v2405, 10
      %v2493 = vpop.permute.xlu0 %2492
      %2494 = vrot.lane.b32.xlu0 %v2406, 10
      %v2495 = vpop.permute.xlu0 %2494
      %2496 = vrot.lane.b32.xlu0 %v2407, 10
      %v2497 = vpop.permute.xlu0 %2496
      %2508 = vrot.lane.b32.xlu0 %v2398, 1
      %v2509 = vpop.permute.xlu0 %2508
      %2510 = vrot.lane.b32.xlu0 %v2399, 1
      %v2511 = vpop.permute.xlu0 %2510
      %2512 = vrot.lane.b32.xlu0 %v2400, 1
      %v2513 = vpop.permute.xlu0 %2512
      %2514 = vrot.lane.b32.xlu0 %v2401, 1
      %v2515 = vpop.permute.xlu0 %2514
      %2516 = vrot.lane.b32.xlu0 %v2402, 1
      %v2517 = vpop.permute.xlu0 %2516
      %2518 = vrot.lane.b32.xlu0 %v2403, 1
      %v2519 = vpop.permute.xlu0 %2518
      %2520 = vrot.lane.b32.xlu0 %v2404, 1
      %v2521 = vpop.permute.xlu0 %2520
      %2522 = vrot.lane.b32.xlu0 %v2405, 1
      %v2523 = vpop.permute.xlu0 %2522
      %2524 = vrot.lane.b32.xlu0 %v2406, 1
      %v2525 = vpop.permute.xlu0 %2524
      %2526 = vrot.lane.b32.xlu0 %v2407, 1
      %v2527 = vpop.permute.xlu0 %2526
      %2538 = vrot.lane.b32.xlu0 %v2398, 127
      %v2539 = vpop.permute.xlu0 %2538
      %2540 = vrot.lane.b32.xlu0 %v2399, 127
      %v2541 = vpop.permute.xlu0 %2540
      %2542 = vrot.lane.b32.xlu0 %v2400, 127
      %v2543 = vpop.permute.xlu0 %2542
      %2544 = vrot.lane.b32.xlu0 %v2401, 127
      %v2545 = vpop.permute.xlu0 %2544
      %2546 = vrot.lane.b32.xlu0 %v2402, 127
      %v2547 = vpop.permute.xlu0 %2546
      %2548 = vrot.lane.b32.xlu0 %v2403, 127
      %v2549 = vpop.permute.xlu0 %2548
      %2550 = vrot.lane.b32.xlu0 %v2404, 127
      %v2551 = vpop.permute.xlu0 %2550
      %2552 = vrot.lane.b32.xlu0 %v2405, 127
      %v2553 = vpop.permute.xlu0 %2552
      %2554 = vrot.lane.b32.xlu0 %v2406, 127
      %v2555 = vpop.permute.xlu0 %2554
      %2556 = vrot.lane.b32.xlu0 %v2407, 127
      %v2557 = vpop.permute.xlu0 %2556
      %2568 = vrot.lane.b32.xlu0 %v2398, 118
      %v2569 = vpop.permute.xlu0 %2568
      %2570 = vrot.lane.b32.xlu0 %v2399, 118
      %v2571 = vpop.permute.xlu0 %2570
      %2572 = vrot.lane.b32.xlu0 %v2400, 118
      %v2573 = vpop.permute.xlu0 %2572
      %2574 = vrot.lane.b32.xlu0 %v2401, 118
      %v2575 = vpop.permute.xlu0 %2574
      %2576 = vrot.lane.b32.xlu0 %v2402, 118
      %v2577 = vpop.permute.xlu0 %2576
      %2578 = vrot.lane.b32.xlu0 %v2403, 118
      %v2579 = vpop.permute.xlu0 %2578
      %2580 = vrot.lane.b32.xlu0 %v2404, 118
      %v2581 = vpop.permute.xlu0 %2580
      %2582 = vrot.lane.b32.xlu0 %v2405, 118
      %v2583 = vpop.permute.xlu0 %2582
      %2584 = vrot.lane.b32.xlu0 %v2406, 118
      %v2585 = vpop.permute.xlu0 %2584
      %2586 = vrot.lane.b32.xlu0 %v2407, 118
      %v2587 = vpop.permute.xlu0 %2586
      %2598 = vrot.lane.b32.xlu0 %v2398, 117
      %v2599 = vpop.permute.xlu0 %2598
      %2600 = vrot.lane.b32.xlu0 %v2399, 117
      %v2601 = vpop.permute.xlu0 %2600
      %2602 = vrot.lane.b32.xlu0 %v2400, 117
      %v2603 = vpop.permute.xlu0 %2602
      %2604 = vrot.lane.b32.xlu0 %v2401, 117
      %v2605 = vpop.permute.xlu0 %2604
      %2606 = vrot.lane.b32.xlu0 %v2402, 117
      %v2607 = vpop.permute.xlu0 %2606
      %2608 = vrot.lane.b32.xlu0 %v2403, 117
      %v2609 = vpop.permute.xlu0 %2608
      %2610 = vrot.lane.b32.xlu0 %v2404, 117
      %v2611 = vpop.permute.xlu0 %2610
      %2612 = vrot.lane.b32.xlu0 %v2405, 117
      %v2613 = vpop.permute.xlu0 %2612
      %2614 = vrot.lane.b32.xlu0 %v2406, 117
      %v2615 = vpop.permute.xlu0 %2614
      %2616 = vrot.lane.b32.xlu0 %v2407, 117
      %v2617 = vpop.permute.xlu0 %2616
      %2628 = vrot.lane.b32.xlu0 %v2398, 116
      %v2629 = vpop.permute.xlu0 %2628
      %2630 = vrot.lane.b32.xlu0 %v2399, 116
      %v2631 = vpop.permute.xlu0 %2630
      %2632 = vrot.lane.b32.xlu0 %v2400, 116
      %v2633 = vpop.permute.xlu0 %2632
      %2634 = vrot.lane.b32.xlu0 %v2401, 116
      %v2635 = vpop.permute.xlu0 %2634
      %2636 = vrot.lane.b32.xlu0 %v2402, 116
      %v2637 = vpop.permute.xlu0 %2636
      %2638 = vrot.lane.b32.xlu0 %v2403, 116
      %v2639 = vpop.permute.xlu0 %2638
      %2640 = vrot.lane.b32.xlu0 %v2404, 116
      %v2641 = vpop.permute.xlu0 %2640
      %2642 = vrot.lane.b32.xlu0 %v2405, 116
      %v2643 = vpop.permute.xlu0 %2642
      %2644 = vrot.lane.b32.xlu0 %v2406, 116
      %v2645 = vpop.permute.xlu0 %2644
      %2646 = vrot.lane.b32.xlu0 %v2407, 116
      %v2647 = vpop.permute.xlu0 %2646
      %v2658 = vld [vmem:[%s4] sm:$0xff]
      %v2659 = vld [vmem:[%s4 + $0x8] sm:$0xff]
      %v2660 = vld [vmem:[%s4 + $0x10] sm:$0xff]
      %v2661 = vld [vmem:[%s4 + $0x18] sm:$0xff]
      %v2662 = vld [vmem:[%s5] sm:$0xff]
      %v2663 = vld [vmem:[%s5 + $0x8] sm:$0xff]
      %2665 = vset.pattern.permute.xlu0 0
      %2666 = vperm.xlu0 %2665, %v2662
      %v2667 = vpop.permute.xlu0 %2666
      %2670 = vset.pattern.permute.xlu0 0
      %2671 = vperm.xlu0 %2670, %v2663
      %v2672 = vpop.permute.xlu0 %2671
      %vm2674 = vcmask 719872
      %v2676 = vsel %vm2674, %v2659, 0
      %v2679 = vsel %vm2674, %v2661, 0
      %2681 = vmatprep.subr.mxu0 0.0
      %2682 = vmatpush1.msra.mxu0 %v2571
      %2683 = vmatprep.subr.mxu0 0.0
      %2684 = vmatpush1.msra.mxu0 %v2541
      %2685 = vmatprep.subr.mxu0 0.0
      %2686 = vmatpush1.msra.mxu0 %v2399
      %2687 = vmatprep.subr.mxu0 0.0
      %2688 = vmatpush1.msra.mxu0 %v2511
      %2689 = vmatprep.subr.mxu0 0.0
      %2690 = vmatpush1.msra.mxu0 %v2481
      %2691 = vmatprep.subr.mxu0 0.0
      %2692 = vmatpush1.msra.mxu0 %v2451
      %2693 = vmatprep.subr.mxu0 0.0
      %2694 = vmatpush1.msra.mxu0 %v2421
      %2695 = vmatprep.subr.mxu0 0.0
      %2696 = vmatpush1.msra.mxu0 %v2629
      %2697 = vmatprep.subr.mxu0 0.0
      %2698 = vmatpush1.msra.mxu0 %v2599
      %2699 = vmatprep.subr.mxu0 0.0
      %2700 = vmatpush1.msra.mxu0 %v2569
      %2701 = vmatprep.subr.mxu0 0.0
      %2702 = vmatpush1.msra.mxu0 %v2539
      %2703 = vmatprep.subr.mxu0 0.0
      %2704 = vmatpush1.msra.mxu0 %v2398
      %2705 = vmatprep.subr.mxu0 0.0
      %2706 = vmatpush1.msra.mxu0 %v2509
      %2707 = vmatprep.subr.mxu0 0.0
      %2708 = vmatpush1.msra.mxu0 %v2479
      %2709 = vmatprep.subr.mxu0 0.0
      %2710 = vmatpush1.msra.mxu0 %v2449
      %2711 = vmatprep.subr.mxu0 0.0
      %2712 = vmatpush1.msra.mxu0 %v2419
      %2713 = vmatprep.subr.mxu0 0.0
      %2714 = vmatpush2.msra.mxu0 0.0
      %2715 = vmatprep.subr.mxu0 0.0
      %2716 = vmatpush2.msra.mxu0 0.0
      %2717 = vmatprep.subr.mxu0 0.0
      %2718 = vmatpush2.msra.mxu0 0.0
      %2719 = vmatprep.subr.mxu0 0.0
      %2720 = vmatpush2.msra.mxu0 0.0
      %2721 = vmatprep.subr.mxu0 0.0
      %2722 = vmatpush2.msra.mxu0 0.0
      %2723 = vmatprep.subr.mxu0 0.0
      %2724 = vmatpush2.msra.mxu0 %v2633
      %2725 = vmatprep.subr.mxu0 0.0
      %2726 = vmatpush2.msra.mxu0 %v2603
      %2727 = vmatprep.subr.mxu0 0.0
      %2728 = vmatpush2.msra.mxu0 %v2573
      %2729 = vmatprep.subr.mxu0 0.0
      %2730 = vmatpush2.msra.mxu0 %v2543
      %2731 = vmatprep.subr.mxu0 0.0
      %2732 = vmatpush2.msra.mxu0 %v2400
      %2733 = vmatprep.subr.mxu0 0.0
      %2734 = vmatpush2.msra.mxu0 %v2513
      %2735 = vmatprep.subr.mxu0 0.0
      %2736 = vmatpush2.msra.mxu0 %v2483
      %2737 = vmatprep.subr.mxu0 0.0
      %2738 = vmatpush2.msra.mxu0 %v2453
      %2739 = vmatprep.subr.mxu0 0.0
      %2740 = vmatpush2.msra.mxu0 %v2423
      %2741 = vmatprep.subr.mxu0 0.0
      %2742 = vmatpush2.msra.mxu0 %v2631
      %2743 = vmatprep.subr.mxu0 0.0
      %2744 = vmatpush2.msra.mxu0 %v2601
      %2745 = vmatprep.mubr.f32.mxu0 %v2676
      %2746 = vmatmul.mubr.f32.gmra.mxu0 %v2658
      %v2747 = vpop.f32.mrf.mxu0
      %v2748 = vadd.f32 %v2667, %v2747
      %v2749 = vpop.f32.mrf.mxu0
      %2750 = vmatprep.mubr.f32.mxu0 %v2679
      %2751 = vmatmul.mubr.f32.gmra.mxu0 %v2660
      %v2752 = vpop.f32.mrf.mxu0
      %v2753 = vadd.f32 %v2672, %v2752
      %v2754 = vpop.f32.mrf.mxu0
      %2755 = vdwg.mxu0
      %v2756 = vmax.f32 %v2748, 0.0
      %v2757 = vmax.f32 %v2753, 0.0
      %v2758 = vmul.f32 %v2756, %v2355
      %v2759 = vmul.f32 %v2757, %v2355
      %2760 = vadd.xlane.f32.xlu0 %v2758
      %v2761 = vpop.xlane.xlu0 %2760
      %2762 = vadd.xlane.f32.xlu0 %v2759
      %v2763 = vpop.xlane.xlu0 %2762
      %v2764 = vadd.f32 %v2761, 0.0
      %v2765 = vadd.f32 %v2763, 0.0
      %2766 = vmatprep.subr.mxu0 0.0
      %2767 = vmatpush1.msra.mxu0 %v2573
      %2768 = vmatprep.subr.mxu0 0.0
      %2769 = vmatpush1.msra.mxu0 %v2543
      %2770 = vmatprep.subr.mxu0 0.0
      %2771 = vmatpush1.msra.mxu0 %v2400
      %2772 = vmatprep.subr.mxu0 0.0
      %2773 = vmatpush1.msra.mxu0 %v2513
      %2774 = vmatprep.subr.mxu0 0.0
      %2775 = vmatpush1.msra.mxu0 %v2483
      %2776 = vmatprep.subr.mxu0 0.0
      %2777 = vmatpush1.msra.mxu0 %v2453
      %2778 = vmatprep.subr.mxu0 0.0
      %2779 = vmatpush1.msra.mxu0 %v2423
      %2780 = vmatprep.subr.mxu0 0.0
      %2781 = vmatpush1.msra.mxu0 %v2631
      %2782 = vmatprep.subr.mxu0 0.0
      %2783 = vmatpush1.msra.mxu0 %v2601
      %2784 = vmatprep.subr.mxu0 0.0
      %2785 = vmatpush1.msra.mxu0 %v2571
      %2786 = vmatprep.subr.mxu0 0.0
      %2787 = vmatpush1.msra.mxu0 %v2541
      %2788 = vmatprep.subr.mxu0 0.0
      %2789 = vmatpush1.msra.mxu0 %v2399
      %2790 = vmatprep.subr.mxu0 0.0
      %2791 = vmatpush1.msra.mxu0 %v2511
      %2792 = vmatprep.subr.mxu0 0.0
      %2793 = vmatpush1.msra.mxu0 %v2481
      %2794 = vmatprep.subr.mxu0 0.0
      %2795 = vmatpush1.msra.mxu0 %v2451
      %2796 = vmatprep.subr.mxu0 0.0
      %2797 = vmatpush1.msra.mxu0 %v2421
      %2798 = vmatprep.subr.mxu0 0.0
      %2799 = vmatpush2.msra.mxu0 0.0
      %2800 = vmatprep.subr.mxu0 0.0
      %2801 = vmatpush2.msra.mxu0 0.0
      %2802 = vmatprep.subr.mxu0 0.0
      %2803 = vmatpush2.msra.mxu0 0.0
      %2804 = vmatprep.subr.mxu0 0.0
      %2805 = vmatpush2.msra.mxu0 0.0
      %2806 = vmatprep.subr.mxu0 0.0
      %2807 = vmatpush2.msra.mxu0 0.0
      %2808 = vmatprep.subr.mxu0 0.0
      %2809 = vmatpush2.msra.mxu0 %v2635
      %2810 = vmatprep.subr.mxu0 0.0
      %2811 = vmatpush2.msra.mxu0 %v2605
      %2812 = vmatprep.subr.mxu0 0.0
      %2813 = vmatpush2.msra.mxu0 %v2575
      %2814 = vmatprep.subr.mxu0 0.0
      %2815 = vmatpush2.msra.mxu0 %v2545
      %2816 = vmatprep.subr.mxu0 0.0
      %2817 = vmatpush2.msra.mxu0 %v2401
      %2818 = vmatprep.subr.mxu0 0.0
      %2819 = vmatpush2.msra.mxu0 %v2515
      %2820 = vmatprep.subr.mxu0 0.0
      %2821 = vmatpush2.msra.mxu0 %v2485
      %2822 = vmatprep.subr.mxu0 0.0
      %2823 = vmatpush2.msra.mxu0 %v2455
      %2824 = vmatprep.subr.mxu0 0.0
      %2825 = vmatpush2.msra.mxu0 %v2425
      %2826 = vmatprep.subr.mxu0 0.0
      %2827 = vmatpush2.msra.mxu0 %v2633
      %2828 = vmatprep.subr.mxu0 0.0
      %2829 = vmatpush2.msra.mxu0 %v2603
      %2830 = vmatprep.mubr.f32.mxu0 %v2676
      %2831 = vmatmul.mubr.f32.gmra.mxu0 %v2658
      %v2832 = vpop.f32.mrf.mxu0
      %v2833 = vadd.f32 %v2667, %v2832
      %v2834 = vpop.f32.mrf.mxu0
      %2835 = vmatprep.mubr.f32.mxu0 %v2679
      %2836 = vmatmul.mubr.f32.gmra.mxu0 %v2660
      %v2837 = vpop.f32.mrf.mxu0
      %v2838 = vadd.f32 %v2672, %v2837
      %v2839 = vpop.f32.mrf.mxu0
      %2840 = vdwg.mxu0
      %v2841 = vmax.f32 %v2833, 0.0
      %v2842 = vmax.f32 %v2838, 0.0
      %v2843 = vmul.f32 %v2841, %v2359
      %v2844 = vmul.f32 %v2842, %v2359
      %2845 = vadd.xlane.f32.xlu0 %v2843
      %v2846 = vpop.xlane.xlu0 %2845
      %2847 = vadd.xlane.f32.xlu0 %v2844
      %v2848 = vpop.xlane.xlu0 %2847
      %v2849 = vadd.f32 %v2764, %v2846
      %v2850 = vadd.f32 %v2765, %v2848
      %2851 = vmatprep.subr.mxu0 0.0
      %2852 = vmatpush1.msra.mxu0 %v2575
      %2853 = vmatprep.subr.mxu0 0.0
      %2854 = vmatpush1.msra.mxu0 %v2545
      %2855 = vmatprep.subr.mxu0 0.0
      %2856 = vmatpush1.msra.mxu0 %v2401
      %2857 = vmatprep.subr.mxu0 0.0
      %2858 = vmatpush1.msra.mxu0 %v2515
      %2859 = vmatprep.subr.mxu0 0.0
      %2860 = vmatpush1.msra.mxu0 %v2485
      %2861 = vmatprep.subr.mxu0 0.0
      %2862 = vmatpush1.msra.mxu0 %v2455
      %2863 = vmatprep.subr.mxu0 0.0
      %2864 = vmatpush1.msra.mxu0 %v2425
      %2865 = vmatprep.subr.mxu0 0.0
      %2866 = vmatpush1.msra.mxu0 %v2633
      %2867 = vmatprep.subr.mxu0 0.0
      %2868 = vmatpush1.msra.mxu0 %v2603
      %2869 = vmatprep.subr.mxu0 0.0
      %2870 = vmatpush1.msra.mxu0 %v2573
      %2871 = vmatprep.subr.mxu0 0.0
      %2872 = vmatpush1.msra.mxu0 %v2543
      %2873 = vmatprep.subr.mxu0 0.0
      %2874 = vmatpush1.msra.mxu0 %v2400
      %2875 = vmatprep.subr.mxu0 0.0
      %2876 = vmatpush1.msra.mxu0 %v2513
      %2877 = vmatprep.subr.mxu0 0.0
      %2878 = vmatpush1.msra.mxu0 %v2483
      %2879 = vmatprep.subr.mxu0 0.0
      %2880 = vmatpush1.msra.mxu0 %v2453
      %2881 = vmatprep.subr.mxu0 0.0
      %2882 = vmatpush1.msra.mxu0 %v2423
      %2883 = vmatprep.subr.mxu0 0.0
      %2884 = vmatpush2.msra.mxu0 0.0
      %2885 = vmatprep.subr.mxu0 0.0
      %2886 = vmatpush2.msra.mxu0 0.0
      %2887 = vmatprep.subr.mxu0 0.0
      %2888 = vmatpush2.msra.mxu0 0.0
      %2889 = vmatprep.subr.mxu0 0.0
      %2890 = vmatpush2.msra.mxu0 0.0
      %2891 = vmatprep.subr.mxu0 0.0
      %2892 = vmatpush2.msra.mxu0 0.0
      %2893 = vmatprep.subr.mxu0 0.0
      %2894 = vmatpush2.msra.mxu0 %v2637
      %2895 = vmatprep.subr.mxu0 0.0
      %2896 = vmatpush2.msra.mxu0 %v2607
      %2897 = vmatprep.subr.mxu0 0.0
      %2898 = vmatpush2.msra.mxu0 %v2577
      %2899 = vmatprep.subr.mxu0 0.0
      %2900 = vmatpush2.msra.mxu0 %v2547
      %2901 = vmatprep.subr.mxu0 0.0
      %2902 = vmatpush2.msra.mxu0 %v2402
      %2903 = vmatprep.subr.mxu0 0.0
      %2904 = vmatpush2.msra.mxu0 %v2517
      %2905 = vmatprep.subr.mxu0 0.0
      %2906 = vmatpush2.msra.mxu0 %v2487
      %2907 = vmatprep.subr.mxu0 0.0
      %2908 = vmatpush2.msra.mxu0 %v2457
      %2909 = vmatprep.subr.mxu0 0.0
      %2910 = vmatpush2.msra.mxu0 %v2427
      %2911 = vmatprep.subr.mxu0 0.0
      %2912 = vmatpush2.msra.mxu0 %v2635
      %2913 = vmatprep.subr.mxu0 0.0
      %2914 = vmatpush2.msra.mxu0 %v2605
      %2915 = vmatprep.mubr.f32.mxu0 %v2676
      %2916 = vmatmul.mubr.f32.gmra.mxu0 %v2658
      %v2917 = vpop.f32.mrf.mxu0
      %v2918 = vadd.f32 %v2667, %v2917
      %v2919 = vpop.f32.mrf.mxu0
      %2920 = vmatprep.mubr.f32.mxu0 %v2679
      %2921 = vmatmul.mubr.f32.gmra.mxu0 %v2660
      %v2922 = vpop.f32.mrf.mxu0
      %v2923 = vadd.f32 %v2672, %v2922
      %v2924 = vpop.f32.mrf.mxu0
      %2925 = vdwg.mxu0
      %v2926 = vmax.f32 %v2918, 0.0
      %v2927 = vmax.f32 %v2923, 0.0
      %v2928 = vmul.f32 %v2926, %v2363
      %v2929 = vmul.f32 %v2927, %v2363
      %2930 = vadd.xlane.f32.xlu0 %v2928
      %v2931 = vpop.xlane.xlu0 %2930
      %2932 = vadd.xlane.f32.xlu0 %v2929
      %v2933 = vpop.xlane.xlu0 %2932
      %v2934 = vadd.f32 %v2849, %v2931
      %v2935 = vadd.f32 %v2850, %v2933
      %2936 = vmatprep.subr.mxu0 0.0
      %2937 = vmatpush1.msra.mxu0 %v2577
      %2938 = vmatprep.subr.mxu0 0.0
      %2939 = vmatpush1.msra.mxu0 %v2547
      %2940 = vmatprep.subr.mxu0 0.0
      %2941 = vmatpush1.msra.mxu0 %v2402
      %2942 = vmatprep.subr.mxu0 0.0
      %2943 = vmatpush1.msra.mxu0 %v2517
      %2944 = vmatprep.subr.mxu0 0.0
      %2945 = vmatpush1.msra.mxu0 %v2487
      %2946 = vmatprep.subr.mxu0 0.0
      %2947 = vmatpush1.msra.mxu0 %v2457
      %2948 = vmatprep.subr.mxu0 0.0
      %2949 = vmatpush1.msra.mxu0 %v2427
      %2950 = vmatprep.subr.mxu0 0.0
      %2951 = vmatpush1.msra.mxu0 %v2635
      %2952 = vmatprep.subr.mxu0 0.0
      %2953 = vmatpush1.msra.mxu0 %v2605
      %2954 = vmatprep.subr.mxu0 0.0
      %2955 = vmatpush1.msra.mxu0 %v2575
      %2956 = vmatprep.subr.mxu0 0.0
      %2957 = vmatpush1.msra.mxu0 %v2545
      %2958 = vmatprep.subr.mxu0 0.0
      %2959 = vmatpush1.msra.mxu0 %v2401
      %2960 = vmatprep.subr.mxu0 0.0
      %2961 = vmatpush1.msra.mxu0 %v2515
      %2962 = vmatprep.subr.mxu0 0.0
      %2963 = vmatpush1.msra.mxu0 %v2485
      %2964 = vmatprep.subr.mxu0 0.0
      %2965 = vmatpush1.msra.mxu0 %v2455
      %2966 = vmatprep.subr.mxu0 0.0
      %2967 = vmatpush1.msra.mxu0 %v2425
      %2968 = vmatprep.subr.mxu0 0.0
      %2969 = vmatpush2.msra.mxu0 0.0
      %2970 = vmatprep.subr.mxu0 0.0
      %2971 = vmatpush2.msra.mxu0 0.0
      %2972 = vmatprep.subr.mxu0 0.0
      %2973 = vmatpush2.msra.mxu0 0.0
      %2974 = vmatprep.subr.mxu0 0.0
      %2975 = vmatpush2.msra.mxu0 0.0
      %2976 = vmatprep.subr.mxu0 0.0
      %2977 = vmatpush2.msra.mxu0 0.0
      %2978 = vmatprep.subr.mxu0 0.0
      %2979 = vmatpush2.msra.mxu0 %v2639
      %2980 = vmatprep.subr.mxu0 0.0
      %2981 = vmatpush2.msra.mxu0 %v2609
      %2982 = vmatprep.subr.mxu0 0.0
      %2983 = vmatpush2.msra.mxu0 %v2579
      %2984 = vmatprep.subr.mxu0 0.0
      %2985 = vmatpush2.msra.mxu0 %v2549
      %2986 = vmatprep.subr.mxu0 0.0
      %2987 = vmatpush2.msra.mxu0 %v2403
      %2988 = vmatprep.subr.mxu0 0.0
      %2989 = vmatpush2.msra.mxu0 %v2519
      %2990 = vmatprep.subr.mxu0 0.0
      %2991 = vmatpush2.msra.mxu0 %v2489
      %2992 = vmatprep.subr.mxu0 0.0
      %2993 = vmatpush2.msra.mxu0 %v2459
      %2994 = vmatprep.subr.mxu0 0.0
      %2995 = vmatpush2.msra.mxu0 %v2429
      %2996 = vmatprep.subr.mxu0 0.0
      %2997 = vmatpush2.msra.mxu0 %v2637
      %2998 = vmatprep.subr.mxu0 0.0
      %2999 = vmatpush2.msra.mxu0 %v2607
      %3000 = vmatprep.mubr.f32.mxu0 %v2676
      %3001 = vmatmul.mubr.f32.gmra.mxu0 %v2658
      %v3002 = vpop.f32.mrf.mxu0
      %v3003 = vadd.f32 %v2667, %v3002
      %v3004 = vpop.f32.mrf.mxu0
      %3005 = vmatprep.mubr.f32.mxu0 %v2679
      %3006 = vmatmul.mubr.f32.gmra.mxu0 %v2660
      %v3007 = vpop.f32.mrf.mxu0
      %v3008 = vadd.f32 %v2672, %v3007
      %v3009 = vpop.f32.mrf.mxu0
      %3010 = vdwg.mxu0
      %v3011 = vmax.f32 %v3003, 0.0
      %v3012 = vmax.f32 %v3008, 0.0
      %v3013 = vmul.f32 %v3011, %v2367
      %v3014 = vmul.f32 %v3012, %v2367
      %3015 = vadd.xlane.f32.xlu0 %v3013
      %v3016 = vpop.xlane.xlu0 %3015
      %3017 = vadd.xlane.f32.xlu0 %v3014
      %v3018 = vpop.xlane.xlu0 %3017
      %v3019 = vadd.f32 %v2934, %v3016
      %v3020 = vadd.f32 %v2935, %v3018
      %3021 = vmatprep.subr.mxu0 0.0
      %3022 = vmatpush1.msra.mxu0 %v2579
      %3023 = vmatprep.subr.mxu0 0.0
      %3024 = vmatpush1.msra.mxu0 %v2549
      %3025 = vmatprep.subr.mxu0 0.0
      %3026 = vmatpush1.msra.mxu0 %v2403
      %3027 = vmatprep.subr.mxu0 0.0
      %3028 = vmatpush1.msra.mxu0 %v2519
      %3029 = vmatprep.subr.mxu0 0.0
      %3030 = vmatpush1.msra.mxu0 %v2489
      %3031 = vmatprep.subr.mxu0 0.0
      %3032 = vmatpush1.msra.mxu0 %v2459
      %3033 = vmatprep.subr.mxu0 0.0
      %3034 = vmatpush1.msra.mxu0 %v2429
      %3035 = vmatprep.subr.mxu0 0.0
      %3036 = vmatpush1.msra.mxu0 %v2637
      %3037 = vmatprep.subr.mxu0 0.0
      %3038 = vmatpush1.msra.mxu0 %v2607
      %3039 = vmatprep.subr.mxu0 0.0
      %3040 = vmatpush1.msra.mxu0 %v2577
      %3041 = vmatprep.subr.mxu0 0.0
      %3042 = vmatpush1.msra.mxu0 %v2547
      %3043 = vmatprep.subr.mxu0 0.0
      %3044 = vmatpush1.msra.mxu0 %v2402
      %3045 = vmatprep.subr.mxu0 0.0
      %3046 = vmatpush1.msra.mxu0 %v2517
      %3047 = vmatprep.subr.mxu0 0.0
      %3048 = vmatpush1.msra.mxu0 %v2487
      %3049 = vmatprep.subr.mxu0 0.0
      %3050 = vmatpush1.msra.mxu0 %v2457
      %3051 = vmatprep.subr.mxu0 0.0
      %3052 = vmatpush1.msra.mxu0 %v2427
      %3053 = vmatprep.subr.mxu0 0.0
      %3054 = vmatpush2.msra.mxu0 0.0
      %3055 = vmatprep.subr.mxu0 0.0
      %3056 = vmatpush2.msra.mxu0 0.0
      %3057 = vmatprep.subr.mxu0 0.0
      %3058 = vmatpush2.msra.mxu0 0.0
      %3059 = vmatprep.subr.mxu0 0.0
      %3060 = vmatpush2.msra.mxu0 0.0
      %3061 = vmatprep.subr.mxu0 0.0
      %3062 = vmatpush2.msra.mxu0 0.0
      %3063 = vmatprep.subr.mxu0 0.0
      %3064 = vmatpush2.msra.mxu0 %v2641
      %3065 = vmatprep.subr.mxu0 0.0
      %3066 = vmatpush2.msra.mxu0 %v2611
      %3067 = vmatprep.subr.mxu0 0.0
      %3068 = vmatpush2.msra.mxu0 %v2581
      %3069 = vmatprep.subr.mxu0 0.0
      %3070 = vmatpush2.msra.mxu0 %v2551
      %3071 = vmatprep.subr.mxu0 0.0
      %3072 = vmatpush2.msra.mxu0 %v2404
      %3073 = vmatprep.subr.mxu0 0.0
      %3074 = vmatpush2.msra.mxu0 %v2521
      %3075 = vmatprep.subr.mxu0 0.0
      %3076 = vmatpush2.msra.mxu0 %v2491
      %3077 = vmatprep.subr.mxu0 0.0
      %3078 = vmatpush2.msra.mxu0 %v2461
      %3079 = vmatprep.subr.mxu0 0.0
      %3080 = vmatpush2.msra.mxu0 %v2431
      %3081 = vmatprep.subr.mxu0 0.0
      %3082 = vmatpush2.msra.mxu0 %v2639
      %3083 = vmatprep.subr.mxu0 0.0
      %3084 = vmatpush2.msra.mxu0 %v2609
      %3085 = vmatprep.mubr.f32.mxu0 %v2676
      %3086 = vmatmul.mubr.f32.gmra.mxu0 %v2658
      %v3087 = vpop.f32.mrf.mxu0
      %v3088 = vadd.f32 %v2667, %v3087
      %v3089 = vpop.f32.mrf.mxu0
      %3090 = vmatprep.mubr.f32.mxu0 %v2679
      %3091 = vmatmul.mubr.f32.gmra.mxu0 %v2660
      %v3092 = vpop.f32.mrf.mxu0
      %v3093 = vadd.f32 %v2672, %v3092
      %v3094 = vpop.f32.mrf.mxu0
      %3095 = vdwg.mxu0
      %v3096 = vmax.f32 %v3088, 0.0
      %v3097 = vmax.f32 %v3093, 0.0
      %v3098 = vmul.f32 %v3096, %v2371
      %v3099 = vmul.f32 %v3097, %v2371
      %3100 = vadd.xlane.f32.xlu0 %v3098
      %v3101 = vpop.xlane.xlu0 %3100
      %3102 = vadd.xlane.f32.xlu0 %v3099
      %v3103 = vpop.xlane.xlu0 %3102
      %v3104 = vadd.f32 %v3019, %v3101
      %v3105 = vadd.f32 %v3020, %v3103
      %3106 = vmatprep.subr.mxu0 0.0
      %3107 = vmatpush1.msra.mxu0 %v2581
      %3108 = vmatprep.subr.mxu0 0.0
      %3109 = vmatpush1.msra.mxu0 %v2551
      %3110 = vmatprep.subr.mxu0 0.0
      %3111 = vmatpush1.msra.mxu0 %v2404
      %3112 = vmatprep.subr.mxu0 0.0
      %3113 = vmatpush1.msra.mxu0 %v2521
      %3114 = vmatprep.subr.mxu0 0.0
      %3115 = vmatpush1.msra.mxu0 %v2491
      %3116 = vmatprep.subr.mxu0 0.0
      %3117 = vmatpush1.msra.mxu0 %v2461
      %3118 = vmatprep.subr.mxu0 0.0
      %3119 = vmatpush1.msra.mxu0 %v2431
      %3120 = vmatprep.subr.mxu0 0.0
      %3121 = vmatpush1.msra.mxu0 %v2639
      %3122 = vmatprep.subr.mxu0 0.0
      %3123 = vmatpush1.msra.mxu0 %v2609
      %3124 = vmatprep.subr.mxu0 0.0
      %3125 = vmatpush1.msra.mxu0 %v2579
      %3126 = vmatprep.subr.mxu0 0.0
      %3127 = vmatpush1.msra.mxu0 %v2549
      %3128 = vmatprep.subr.mxu0 0.0
      %3129 = vmatpush1.msra.mxu0 %v2403
      %3130 = vmatprep.subr.mxu0 0.0
      %3131 = vmatpush1.msra.mxu0 %v2519
      %3132 = vmatprep.subr.mxu0 0.0
      %3133 = vmatpush1.msra.mxu0 %v2489
      %3134 = vmatprep.subr.mxu0 0.0
      %3135 = vmatpush1.msra.mxu0 %v2459
      %3136 = vmatprep.subr.mxu0 0.0
      %3137 = vmatpush1.msra.mxu0 %v2429
      %3138 = vmatprep.subr.mxu0 0.0
      %3139 = vmatpush2.msra.mxu0 0.0
      %3140 = vmatprep.subr.mxu0 0.0
      %3141 = vmatpush2.msra.mxu0 0.0
      %3142 = vmatprep.subr.mxu0 0.0
      %3143 = vmatpush2.msra.mxu0 0.0
      %3144 = vmatprep.subr.mxu0 0.0
      %3145 = vmatpush2.msra.mxu0 0.0
      %3146 = vmatprep.subr.mxu0 0.0
      %3147 = vmatpush2.msra.mxu0 0.0
      %3148 = vmatprep.subr.mxu0 0.0
      %3149 = vmatpush2.msra.mxu0 %v2643
      %3150 = vmatprep.subr.mxu0 0.0
      %3151 = vmatpush2.msra.mxu0 %v2613
      %3152 = vmatprep.subr.mxu0 0.0
      %3153 = vmatpush2.msra.mxu0 %v2583
      %3154 = vmatprep.subr.mxu0 0.0
      %3155 = vmatpush2.msra.mxu0 %v2553
      %3156 = vmatprep.subr.mxu0 0.0
      %3157 = vmatpush2.msra.mxu0 %v2405
      %3158 = vmatprep.subr.mxu0 0.0
      %3159 = vmatpush2.msra.mxu0 %v2523
      %3160 = vmatprep.subr.mxu0 0.0
      %3161 = vmatpush2.msra.mxu0 %v2493
      %3162 = vmatprep.subr.mxu0 0.0
      %3163 = vmatpush2.msra.mxu0 %v2463
      %3164 = vmatprep.subr.mxu0 0.0
      %3165 = vmatpush2.msra.mxu0 %v2433
      %3166 = vmatprep.subr.mxu0 0.0
      %3167 = vmatpush2.msra.mxu0 %v2641
      %3168 = vmatprep.subr.mxu0 0.0
      %3169 = vmatpush2.msra.mxu0 %v2611
      %3170 = vmatprep.mubr.f32.mxu0 %v2676
      %3171 = vmatmul.mubr.f32.gmra.mxu0 %v2658
      %v3172 = vpop.f32.mrf.mxu0
      %v3173 = vadd.f32 %v2667, %v3172
      %v3174 = vpop.f32.mrf.mxu0
      %3175 = vmatprep.mubr.f32.mxu0 %v2679
      %3176 = vmatmul.mubr.f32.gmra.mxu0 %v2660
      %v3177 = vpop.f32.mrf.mxu0
      %v3178 = vadd.f32 %v2672, %v3177
      %v3179 = vpop.f32.mrf.mxu0
      %3180 = vdwg.mxu0
      %v3181 = vmax.f32 %v3173, 0.0
      %v3182 = vmax.f32 %v3178, 0.0
      %v3183 = vmul.f32 %v3181, %v2375
      %v3184 = vmul.f32 %v3182, %v2375
      %3185 = vadd.xlane.f32.xlu0 %v3183
      %v3186 = vpop.xlane.xlu0 %3185
      %3187 = vadd.xlane.f32.xlu0 %v3184
      %v3188 = vpop.xlane.xlu0 %3187
      %v3189 = vadd.f32 %v3104, %v3186
      %v3190 = vadd.f32 %v3105, %v3188
      %3191 = vmatprep.subr.mxu0 0.0
      %3192 = vmatpush1.msra.mxu0 %v2583
      %3193 = vmatprep.subr.mxu0 0.0
      %3194 = vmatpush1.msra.mxu0 %v2553
      %3195 = vmatprep.subr.mxu0 0.0
      %3196 = vmatpush1.msra.mxu0 %v2405
      %3197 = vmatprep.subr.mxu0 0.0
      %3198 = vmatpush1.msra.mxu0 %v2523
      %3199 = vmatprep.subr.mxu0 0.0
      %3200 = vmatpush1.msra.mxu0 %v2493
      %3201 = vmatprep.subr.mxu0 0.0
      %3202 = vmatpush1.msra.mxu0 %v2463
      %3203 = vmatprep.subr.mxu0 0.0
      %3204 = vmatpush1.msra.mxu0 %v2433
      %3205 = vmatprep.subr.mxu0 0.0
      %3206 = vmatpush1.msra.mxu0 %v2641
      %3207 = vmatprep.subr.mxu0 0.0
      %3208 = vmatpush1.msra.mxu0 %v2611
      %3209 = vmatprep.subr.mxu0 0.0
      %3210 = vmatpush1.msra.mxu0 %v2581
      %3211 = vmatprep.subr.mxu0 0.0
      %3212 = vmatpush1.msra.mxu0 %v2551
      %3213 = vmatprep.subr.mxu0 0.0
      %3214 = vmatpush1.msra.mxu0 %v2404
      %3215 = vmatprep.subr.mxu0 0.0
      %3216 = vmatpush1.msra.mxu0 %v2521
      %3217 = vmatprep.subr.mxu0 0.0
      %3218 = vmatpush1.msra.mxu0 %v2491
      %3219 = vmatprep.subr.mxu0 0.0
      %3220 = vmatpush1.msra.mxu0 %v2461
      %3221 = vmatprep.subr.mxu0 0.0
      %3222 = vmatpush1.msra.mxu0 %v2431
      %3223 = vmatprep.subr.mxu0 0.0
      %3224 = vmatpush2.msra.mxu0 0.0
      %3225 = vmatprep.subr.mxu0 0.0
      %3226 = vmatpush2.msra.mxu0 0.0
      %3227 = vmatprep.subr.mxu0 0.0
      %3228 = vmatpush2.msra.mxu0 0.0
      %3229 = vmatprep.subr.mxu0 0.0
      %3230 = vmatpush2.msra.mxu0 0.0
      %3231 = vmatprep.subr.mxu0 0.0
      %3232 = vmatpush2.msra.mxu0 0.0
      %3233 = vmatprep.subr.mxu0 0.0
      %3234 = vmatpush2.msra.mxu0 %v2645
      %3235 = vmatprep.subr.mxu0 0.0
      %3236 = vmatpush2.msra.mxu0 %v2615
      %3237 = vmatprep.subr.mxu0 0.0
      %3238 = vmatpush2.msra.mxu0 %v2585
      %3239 = vmatprep.subr.mxu0 0.0
      %3240 = vmatpush2.msra.mxu0 %v2555
      %3241 = vmatprep.subr.mxu0 0.0
      %3242 = vmatpush2.msra.mxu0 %v2406
      %3243 = vmatprep.subr.mxu0 0.0
      %3244 = vmatpush2.msra.mxu0 %v2525
      %3245 = vmatprep.subr.mxu0 0.0
      %3246 = vmatpush2.msra.mxu0 %v2495
      %3247 = vmatprep.subr.mxu0 0.0
      %3248 = vmatpush2.msra.mxu0 %v2465
      %3249 = vmatprep.subr.mxu0 0.0
      %3250 = vmatpush2.msra.mxu0 %v2435
      %3251 = vmatprep.subr.mxu0 0.0
      %3252 = vmatpush2.msra.mxu0 %v2643
      %3253 = vmatprep.subr.mxu0 0.0
      %3254 = vmatpush2.msra.mxu0 %v2613
      %3255 = vmatprep.mubr.f32.mxu0 %v2676
      %3256 = vmatmul.mubr.f32.gmra.mxu0 %v2658
      %v3257 = vpop.f32.mrf.mxu0
      %v3258 = vadd.f32 %v2667, %v3257
      %v3259 = vpop.f32.mrf.mxu0
      %3260 = vmatprep.mubr.f32.mxu0 %v2679
      %3261 = vmatmul.mubr.f32.gmra.mxu0 %v2660
      %v3262 = vpop.f32.mrf.mxu0
      %v3263 = vadd.f32 %v2672, %v3262
      %v3264 = vpop.f32.mrf.mxu0
      %3265 = vdwg.mxu0
      %v3266 = vmax.f32 %v3258, 0.0
      %v3267 = vmax.f32 %v3263, 0.0
      %v3268 = vmul.f32 %v3266, %v2379
      %v3269 = vmul.f32 %v3267, %v2379
      %3270 = vadd.xlane.f32.xlu0 %v3268
      %v3271 = vpop.xlane.xlu0 %3270
      %3272 = vadd.xlane.f32.xlu0 %v3269
      %v3273 = vpop.xlane.xlu0 %3272
      %v3274 = vadd.f32 %v3189, %v3271
      %v3275 = vadd.f32 %v3190, %v3273
      %3276 = vmatprep.subr.mxu0 0.0
      %3277 = vmatpush1.msra.mxu0 %v2585
      %3278 = vmatprep.subr.mxu0 0.0
      %3279 = vmatpush1.msra.mxu0 %v2555
      %3280 = vmatprep.subr.mxu0 0.0
      %3281 = vmatpush1.msra.mxu0 %v2406
      %3282 = vmatprep.subr.mxu0 0.0
      %3283 = vmatpush1.msra.mxu0 %v2525
      %3284 = vmatprep.subr.mxu0 0.0
      %3285 = vmatpush1.msra.mxu0 %v2495
      %3286 = vmatprep.subr.mxu0 0.0
      %3287 = vmatpush1.msra.mxu0 %v2465
      %3288 = vmatprep.subr.mxu0 0.0
      %3289 = vmatpush1.msra.mxu0 %v2435
      %3290 = vmatprep.subr.mxu0 0.0
      %3291 = vmatpush1.msra.mxu0 %v2643
      %3292 = vmatprep.subr.mxu0 0.0
      %3293 = vmatpush1.msra.mxu0 %v2613
      %3294 = vmatprep.subr.mxu0 0.0
      %3295 = vmatpush1.msra.mxu0 %v2583
      %3296 = vmatprep.subr.mxu0 0.0
      %3297 = vmatpush1.msra.mxu0 %v2553
      %3298 = vmatprep.subr.mxu0 0.0
      %3299 = vmatpush1.msra.mxu0 %v2405
      %3300 = vmatprep.subr.mxu0 0.0
      %3301 = vmatpush1.msra.mxu0 %v2523
      %3302 = vmatprep.subr.mxu0 0.0
      %3303 = vmatpush1.msra.mxu0 %v2493
      %3304 = vmatprep.subr.mxu0 0.0
      %3305 = vmatpush1.msra.mxu0 %v2463
      %3306 = vmatprep.subr.mxu0 0.0
      %3307 = vmatpush1.msra.mxu0 %v2433
      %3308 = vmatprep.subr.mxu0 0.0
      %3309 = vmatpush2.msra.mxu0 0.0
      %3310 = vmatprep.subr.mxu0 0.0
      %3311 = vmatpush2.msra.mxu0 0.0
      %3312 = vmatprep.subr.mxu0 0.0
      %3313 = vmatpush2.msra.mxu0 0.0
      %3314 = vmatprep.subr.mxu0 0.0
      %3315 = vmatpush2.msra.mxu0 0.0
      %3316 = vmatprep.subr.mxu0 0.0
      %3317 = vmatpush2.msra.mxu0 0.0
      %3318 = vmatprep.subr.mxu0 0.0
      %3319 = vmatpush2.msra.mxu0 %v2647
      %3320 = vmatprep.subr.mxu0 0.0
      %3321 = vmatpush2.msra.mxu0 %v2617
      %3322 = vmatprep.subr.mxu0 0.0
      %3323 = vmatpush2.msra.mxu0 %v2587
      %3324 = vmatprep.subr.mxu0 0.0
      %3325 = vmatpush2.msra.mxu0 %v2557
      %3326 = vmatprep.subr.mxu0 0.0
      %3327 = vmatpush2.msra.mxu0 %v2407
      %3328 = vmatprep.subr.mxu0 0.0
      %3329 = vmatpush2.msra.mxu0 %v2527
      %3330 = vmatprep.subr.mxu0 0.0
      %3331 = vmatpush2.msra.mxu0 %v2497
      %3332 = vmatprep.subr.mxu0 0.0
      %3333 = vmatpush2.msra.mxu0 %v2467
      %3334 = vmatprep.subr.mxu0 0.0
      %3335 = vmatpush2.msra.mxu0 %v2437
      %3336 = vmatprep.subr.mxu0 0.0
      %3337 = vmatpush2.msra.mxu0 %v2645
      %3338 = vmatprep.subr.mxu0 0.0
      %3339 = vmatpush2.msra.mxu0 %v2615
      %3340 = vmatprep.mubr.f32.mxu0 %v2676
      %3341 = vmatmul.mubr.f32.gmra.mxu0 %v2658
      %v3342 = vpop.f32.mrf.mxu0
      %v3343 = vadd.f32 %v2667, %v3342
      %v3344 = vpop.f32.mrf.mxu0
      %3345 = vmatprep.mubr.f32.mxu0 %v2679
      %3346 = vmatmul.mubr.f32.gmra.mxu0 %v2660
      %v3347 = vpop.f32.mrf.mxu0
      %v3348 = vadd.f32 %v2672, %v3347
      %v3349 = vpop.f32.mrf.mxu0
      %3350 = vdwg.mxu0
      %v3351 = vmax.f32 %v3343, 0.0
      %v3352 = vmax.f32 %v3348, 0.0
      %v3353 = vmul.f32 %v3351, %v2383
      %v3354 = vmul.f32 %v3352, %v2383
      %3355 = vadd.xlane.f32.xlu0 %v3353
      %v3356 = vpop.xlane.xlu0 %3355
      %3357 = vadd.xlane.f32.xlu0 %v3354
      %v3358 = vpop.xlane.xlu0 %3357
      %v3359 = vadd.f32 %v3274, %v3356
      %v3360 = vadd.f32 %v3275, %v3358
      %3361 = vst.msk [vmem:[%s244] sm:$0xff] %vm993, %v3359
      %3362 = vst.msk [vmem:[%s244 + $0x8] sm:$0xff] %vm993, %v3360
      %p3363 = scmp.lt.s32.totalorder %s21, 1
      %s3364 = scalar_select %p3363, %s21, 1
      %p3365 = scmp.lt.s32.totalorder %s22, 1
      %s3366 = scalar_select %p3365, %s22, 1
      %s3367 = smul.addr %s3366, 2
      %s3368 = smul.addr %s3364, 4
      %s3369 = sadd.s32 %s3367, %s3368
      %s3370 = smul.addr %s3369, 8
      %s3371 = scalar_lea.vmem %s6, %s3370
      // Predicated region
      $region78: #{shallow_3dcnn_forward.1} parent=39 // pred_check
        %p3372 = pneg %p159
      $region79: #{shallow_3dcnn_forward.1} parent=39 // pred_check_branch
        %3374 = sbr.rel (%p3372) target = $region81
      $region80: #{shallow_3dcnn_forward.1} parent=39 // pred_region
        _
      $region81: #{shallow_3dcnn_forward.1} parent=39 // pred_fallthru
        _
    $region40: #{shallow_3dcnn_forward.1} parent=5 // pred_fallthru
      _
    %p3375 = scmp.le.s32.totalorder 2, %s12
    // Predicated region
    $region82: #{shallow_3dcnn_forward.1} parent=5 // pred_check
      %p3376 = pneg %p3375
    $region83: #{shallow_3dcnn_forward.1} parent=5 // pred_check_branch
      %3378 = sbr.rel (%p3376) target = $region85
    $region84: #{shallow_3dcnn_forward.1} parent=5 // pred_region
      %s3379 = ssub.s32 %s12, 2
      // Predicated region
      $region86: #{shallow_3dcnn_forward.1} parent=84 // pred_check
        %p3380 = pneg %p165
      $region87: #{shallow_3dcnn_forward.1} parent=84 // pred_check_branch
        %3382 = sbr.rel (%p3380) target = $region89
      $region88: #{shallow_3dcnn_forward.1} parent=84 // pred_region
        %p3383 = scmp.lt.s32.totalorder %s23, 1
        %s3384 = scalar_select %p3383, %s23, 1
        %p3385 = scmp.lt.s32.totalorder %s24, 1
        %s3386 = scalar_select %p3385, %s24, 1
        %s3387 = smul.addr %s3386, 2
        %s3388 = smul.addr %s3384, 4
        %s3389 = sadd.s32 %s3387, %s3388
        %s3390 = smul.addr %s3389, 8
        %s3391 = scalar_lea.vmem %s6, %s3390
      $region89: #{shallow_3dcnn_forward.1} parent=84 // pred_fallthru
        _
    $region85: #{shallow_3dcnn_forward.1} parent=5 // pred_fallthru
      _
  $region6: #{shallow_3dcnn_forward.1} parent=0 // loop_footer
    %s16 = sadd.s32 1, %s12
  $region7: #{shallow_3dcnn_forward.1} parent=0 // loop_footer_branch
    %11 = sbr.rel target = $region3
  $region8: #{shallow_3dcnn_forward.1} parent=0 // loop_exit
    _
  %3392 = vsyncmov [#allocation3]
  %s3393 = vpop.sfrf %3392
  %p3394 = scmp.eq.s32.totalorder %s3393, 0
  %p3395 = pneg %p3394
  %3397 = shalt.err (%p3395)

</llo_original>
